<compile_context>
chip_gen: v6e
topology: v6e:2x2x1
jax: 0.10.0
libtpu: 0.0.40
codegen_flags: <defaults>
</compile_context>

<pallas_src>
import functools

import jax
import jax.numpy as jnp
from jax import lax
from jax.experimental import pallas as pl
from jax.experimental.pallas import tpu as pltpu
from jax.scipy.linalg import block_diag


# ----------------------------- Fused kernel ---------------------------------

def _attn_kernel(x_ref, g_ref, b_ref, wqkv_ref, wo_ref, bo_ref, o_ref,
                 *, scale, eps, num_heads, dim_head):
    G = num_heads
    D = dim_head
    d = D // G

    # ---- channel-wise LayerNorm (prenorm), two-pass moments over C ----------
    x = x_ref[...].astype(jnp.float32)                       # (C, HW)
    mean = jnp.mean(x, axis=0, keepdims=True)                 # (1, HW)
    xc = x - mean
    var = jnp.mean(xc * xc, axis=0, keepdims=True)
    xn = (xc * lax.rsqrt(var + eps) * g_ref[...].astype(jnp.float32)
          + b_ref[...].astype(jnp.float32))                   # (C, HW)

    # ---- grouped 1x1 QKV conv as a single dense block-diagonal matmul -------
    qkv = jnp.dot(wqkv_ref[...].astype(jnp.float32), xn,
                  preferred_element_type=jnp.float32)         # (3D, HW)

    # ---- per-head softmax attention over the HW spatial positions -----------
    # Static Python loop over heads (unrolled at trace time; G is small).
    outs = []
    for g in range(G):
        qg = qkv[g * d:(g + 1) * d] * scale                   # (d, HW)
        kg = qkv[D + g * d:D + (g + 1) * d]                   # (d, HW)
        vg = qkv[2 * D + g * d:2 * D + (g + 1) * d]           # (d, HW)

        # sim[i, j] = sum_d q[d, i] * k[d, j]
        sim = lax.dot_general(qg, kg, (((0,), (0,)), ((), ())),
                              preferred_element_type=jnp.float32)   # (HW, HW)
        m = jnp.max(sim, axis=-1, keepdims=True)
        p = jnp.exp(sim - m)
        attn = p * pl.reciprocal(jnp.sum(p, axis=-1, keepdims=True), approx=True)

        # out[d, i] = sum_j v[d, j] * attn[i, j]
        outs.append(lax.dot_general(vg, attn, (((1,), (1,)), ((), ())),
                                    preferred_element_type=jnp.float32))

    # Head-major channel layout 'b (h d) x y' expected by to_out.
    out_img = jnp.concatenate(outs, axis=0)                   # (D, HW)

    # ---- 1x1 output projection + bias + residual (residual = normalized x) --
    y = (xn + bo_ref[...].astype(jnp.float32)
         + jnp.dot(wo_ref[...].astype(jnp.float32), out_img,
                   preferred_element_type=jnp.float32))       # (C, HW)
    o_ref[...] = y.astype(o_ref.dtype)


def _grouped_conv_to_dense(w, num_heads):
    """(dim_head, C//num_heads) grouped-1x1-conv weight -> dense (dim_head, C)."""
    Dh, Cg = w.shape
    d = Dh // num_heads
    wg = w.reshape(num_heads, d, Cg)
    return block_diag(*[wg[i] for i in range(num_heads)])


def attention_forward(x, g_ln, b_ln, wq, wk, wv, wo, bo, num_heads):
    """x: (N, C, H, W). wq/wk/wv: (dim_head, C//num_heads) grouped-conv weights.
    wo: (C, dim_head), bo: (C,). Returns (N, C, H, W)."""
    N, C, H, W = x.shape
    HW = H * W
    D = wq.shape[0]               # dim_head
    assert C % num_heads == 0 and D % num_heads == 0
    scale = float(D / num_heads) ** -0.5
    eps = 1e-5 if x.dtype == jnp.float32 else 1e-3   # matches the PyTorch module

    x3 = x.reshape(N, C, HW)
    gamma = jnp.asarray(g_ln).reshape(C, 1).astype(x.dtype)
    beta = (jnp.zeros((C, 1), x.dtype) if b_ln is None
            else jnp.asarray(b_ln).reshape(C, 1).astype(x.dtype))
    wqkv = jnp.concatenate(
        [_grouped_conv_to_dense(jnp.asarray(w), num_heads) for w in (wq, wk, wv)],
        axis=0).astype(x.dtype)                                  # (3D, C)
    wo2 = jnp.asarray(wo).astype(x.dtype)                        # (C, D)
    bo2 = jnp.asarray(bo).reshape(C, 1).astype(x.dtype)

    # TODO(synk): for large H*W the (HW, HW) per-head score tile should be
    # flash-tiled (and HW padded to a multiple of 128); the (N,) grid with the
    # whole image per step is sized for the small spatial extents this
    # diffusion attention block runs at.
    y = pl.pallas_call(
        functools.partial(_attn_kernel, scale=scale, eps=eps,
                          num_heads=num_heads, dim_head=D),
        out_shape=jax.ShapeDtypeStruct((N, C, HW), x.dtype),
        grid_spec=pltpu.PrefetchScalarGridSpec(
            num_scalar_prefetch=0,
            grid=(N,),
            in_specs=[
                pl.BlockSpec((None, C, HW), lambda n: (n, 0, 0)),
                pl.BlockSpec((C, 1), lambda n: (0, 0)),
                pl.BlockSpec((C, 1), lambda n: (0, 0)),
                pl.BlockSpec((3 * D, C), lambda n: (0, 0)),
                pl.BlockSpec((C, D), lambda n: (0, 0)),
                pl.BlockSpec((C, 1), lambda n: (0, 0)),
            ],
            out_specs=pl.BlockSpec((None, C, HW), lambda n: (n, 0, 0)),
        ),
        compiler_params=pltpu.CompilerParams(
            dimension_semantics=("parallel",)),
    )(x3, gamma, beta, wqkv, wo2, bo2)

    return y.reshape(N, C, H, W)


# ------------------------------ Reference -----------------------------------

def _reference(x, g_ln, b_ln, wq, wk, wv, wo, bo, num_heads):
    N, C, H, W = x.shape
    HW = H * W
    D = wq.shape[0]
    G = num_heads
    Cg = C // G
    d = D // G
    scale = (D / G) ** -0.5
    hp = lax.Precision.HIGHEST

    eps = 1e-5 if x.dtype == jnp.float32 else 1e-3
    mean = jnp.mean(x, axis=1, keepdims=True)
    var = jnp.mean((x - mean) ** 2, axis=1, keepdims=True)
    xn = (x - mean) * lax.rsqrt(var + eps) * jnp.asarray(g_ln).reshape(1, C, 1, 1)
    if b_ln is not None:
        xn = xn + jnp.asarray(b_ln).reshape(1, C, 1, 1)

    xg = xn.reshape(N, G, Cg, HW)
    q = jnp.einsum('gdc,ngci->ngdi', wq.reshape(G, d, Cg), xg, precision=hp) * scale
    k = jnp.einsum('gdc,ngci->ngdi', wk.reshape(G, d, Cg), xg, precision=hp)
    v = jnp.einsum('gdc,ngci->ngdi', wv.reshape(G, d, Cg), xg, precision=hp)
    sim = jnp.einsum('ngdi,ngdj->ngij', q, k, precision=hp)
    attn = jax.nn.softmax(sim, axis=-1)
    out = jnp.einsum('ngij,ngdj->ngid', attn, v, precision=hp)      # (N,G,HW,d)
    out_img = out.transpose(0, 1, 3, 2).reshape(N, D, HW)           # b (h d) (xy)
    y = jnp.einsum('cd,ndi->nci', wo, out_img, precision=hp) + bo.reshape(1, C, 1)
    y = y + xn.reshape(N, C, HW)
    return y.reshape(N, C, H, W)


# --------------------------------- Main --------------------------------------

if __name__ == "__main__":
    key = jax.random.PRNGKey(0)
    N, C, H, W = 2, 32, 16, 16          # batch=2, dim=32, 16x16 spatial
    num_heads = 4
    dim_head = C                         # module default: dim_head = dim
    Cg = C // num_heads

    k0, k1, k2, k3, k4, k5 = jax.random.split(key, 6)
    x = jax.random.normal(k0, (N, C, H, W), dtype=jnp.float32)

    # LayerNorm params (module init: g = ones, bias=False -> b is None)
    g_ln = jnp.ones((1, C, 1, 1), jnp.float32)
    b_ln = None

    # Grouped 1x1 conv weights (PyTorch layout (out_ch, in_ch/groups, 1, 1),
    # squeezed to 2D), output 1x1 conv weight (C, dim_head) + bias (C,)
    wq = jax.random.normal(k1, (dim_head, Cg), jnp.float32) * 0.1
    wk = jax.random.normal(k2, (dim_head, Cg), jnp.float32) * 0.1
    wv = jax.random.normal(k3, (dim_head, Cg), jnp.float32) * 0.1
    wo = jax.random.normal(k4, (C, dim_head), jnp.float32) * 0.1
    bo = jax.random.normal(k5, (C,), jnp.float32) * 0.1

    y = attention_forward(x, g_ln, b_ln, wq, wk, wv, wo, bo, num_heads)
    y = jax.block_until_ready(y)

    y_ref = _reference(x, g_ln, b_ln, wq, wk, wv, wo, bo, num_heads)
    assert y.shape == (N, C, H, W)
    err = float(jnp.max(jnp.abs(y - y_ref)))
    assert jnp.allclose(y, y_ref, atol=1e-3, rtol=1e-3), err

    print("KERNEL_OK")
</pallas_src>

<mosaic_0001>
module attributes {stable_mosaic.version = 11 : i64} {
  func.func @_attn_kernel(%arg0: i32, %arg1: memref<1x32x256xf32, #tpu.memory_space<vmem>>, %arg2: memref<32x1xf32, #tpu.memory_space<vmem>>, %arg3: memref<32x1xf32, #tpu.memory_space<vmem>>, %arg4: memref<96x32xf32, #tpu.memory_space<vmem>>, %arg5: memref<32x32xf32, #tpu.memory_space<vmem>>, %arg6: memref<32x1xf32, #tpu.memory_space<vmem>>, %arg7: memref<1x32x256xf32, #tpu.memory_space<vmem>>) attributes {dimension_semantics = [#tpu.dimension_semantics<parallel>], iteration_bounds = array<i64: 2>, scalar_prefetch = 0 : i64, scratch_operands = 0 : i64, tpu.core_type = #tpu.core_type<tc>, window_params = [{transform_indices = @transform_0, window_bounds = array<i64: 1, 32, 256>}, {pipeline_mode = #tpu.pipeline_mode<synchronous>, transform_indices = @transform_1, window_bounds = array<i64: 32, 1>}, {pipeline_mode = #tpu.pipeline_mode<synchronous>, transform_indices = @transform_2, window_bounds = array<i64: 32, 1>}, {pipeline_mode = #tpu.pipeline_mode<synchronous>, transform_indices = @transform_3, window_bounds = array<i64: 96, 32>}, {pipeline_mode = #tpu.pipeline_mode<synchronous>, transform_indices = @transform_4, window_bounds = array<i64: 32, 32>}, {pipeline_mode = #tpu.pipeline_mode<synchronous>, transform_indices = @transform_5, window_bounds = array<i64: 32, 1>}, {transform_indices = @transform_6, window_bounds = array<i64: 1, 32, 256>}]} {
    %c0 = arith.constant 0 : index
    %c0_0 = arith.constant 0 : index
    %c0_1 = arith.constant 0 : index
    %0 = vector.load %arg1[%c0, %c0_0, %c0_1] : memref<1x32x256xf32, #tpu.memory_space<vmem>>, vector<1x32x256xf32>
    %1 = vector.shape_cast %0 : vector<1x32x256xf32> to vector<32x256xf32>
    %cst = arith.constant dense<0.000000e+00> : vector<256xf32>
    %2 = vector.multi_reduction <add>, %1, %cst [0] : vector<32x256xf32> to vector<256xf32>
    %3 = vector.shape_cast %2 : vector<256xf32> to vector<1x256xf32>
    %cst_2 = arith.constant 3.200000e+01 : f32
    %4 = vector.broadcast %cst_2 : f32 to vector<1x256xf32>
    %5 = arith.divf %3, %4 : vector<1x256xf32>
    %6 = vector.broadcast %5 : vector<1x256xf32> to vector<32x256xf32>
    %7 = arith.subf %1, %6 : vector<32x256xf32>
    %8 = arith.mulf %7, %7 : vector<32x256xf32>
    %cst_3 = arith.constant dense<0.000000e+00> : vector<256xf32>
    %9 = vector.multi_reduction <add>, %8, %cst_3 [0] : vector<32x256xf32> to vector<256xf32>
    %10 = vector.shape_cast %9 : vector<256xf32> to vector<1x256xf32>
    %cst_4 = arith.constant 3.200000e+01 : f32
    %11 = vector.broadcast %cst_4 : f32 to vector<1x256xf32>
    %12 = arith.divf %10, %11 : vector<1x256xf32>
    %cst_5 = arith.constant 9.99999974E-6 : f32
    %13 = vector.broadcast %cst_5 : f32 to vector<1x256xf32>
    %14 = arith.addf %12, %13 : vector<1x256xf32>
    %15 = math.rsqrt %14 : vector<1x256xf32>
    %16 = vector.broadcast %15 : vector<1x256xf32> to vector<32x256xf32>
    %17 = arith.mulf %7, %16 : vector<32x256xf32>
    %c0_6 = arith.constant 0 : index
    %c0_7 = arith.constant 0 : index
    %18 = vector.load %arg2[%c0_6, %c0_7] : memref<32x1xf32, #tpu.memory_space<vmem>>, vector<32x1xf32>
    %19 = vector.broadcast %18 : vector<32x1xf32> to vector<32x256xf32>
    %20 = arith.mulf %17, %19 : vector<32x256xf32>
    %c0_8 = arith.constant 0 : index
    %c0_9 = arith.constant 0 : index
    %21 = vector.load %arg3[%c0_8, %c0_9] : memref<32x1xf32, #tpu.memory_space<vmem>>, vector<32x1xf32>
    %22 = vector.broadcast %21 : vector<32x1xf32> to vector<32x256xf32>
    %23 = arith.addf %20, %22 : vector<32x256xf32>
    %c0_10 = arith.constant 0 : index
    %c0_11 = arith.constant 0 : index
    %24 = vector.load %arg4[%c0_10, %c0_11] : memref<96x32xf32, #tpu.memory_space<vmem>>, vector<96x32xf32>
    %cst_12 = arith.constant dense<0.000000e+00> : vector<96x256xf32>
    %25 = tpu.matmul %24, %23, %cst_12 {dimension_numbers = #tpu.dot_dimension_numbers<[1], [0], [0], [1], [0, 0, 1, 1], [], []>} : vector<96x32xf32>, vector<32x256xf32>, vector<96x256xf32> -> vector<96x256xf32>
    %26 = vector.extract_strided_slice %25 {offsets = [0, 0], sizes = [8, 256], strides = [1, 1]} : vector<96x256xf32> to vector<8x256xf32>
    %cst_13 = arith.constant 0.353553385 : f32
    %27 = vector.broadcast %cst_13 : f32 to vector<8x256xf32>
    %28 = arith.mulf %26, %27 : vector<8x256xf32>
    %29 = vector.extract_strided_slice %25 {offsets = [32, 0], sizes = [8, 256], strides = [1, 1]} : vector<96x256xf32> to vector<8x256xf32>
    %30 = vector.extract_strided_slice %25 {offsets = [64, 0], sizes = [8, 256], strides = [1, 1]} : vector<96x256xf32> to vector<8x256xf32>
    %cst_14 = arith.constant dense<0.000000e+00> : vector<256x256xf32>
    %31 = tpu.matmul %28, %29, %cst_14 {dimension_numbers = #tpu.dot_dimension_numbers<[0], [0], [1], [1], [0, 1, 1, 1], [], []>} : vector<8x256xf32>, vector<8x256xf32>, vector<256x256xf32> -> vector<256x256xf32>
    %cst_15 = arith.constant dense<0xFF800000> : vector<256xf32>
    %32 = vector.multi_reduction <maximumf>, %31, %cst_15 [1] : vector<256x256xf32> to vector<256xf32>
    %33 = vector.shape_cast %32 : vector<256xf32> to vector<256x1xf32>
    %34 = vector.broadcast %33 : vector<256x1xf32> to vector<256x256xf32>
    %35 = arith.subf %31, %34 : vector<256x256xf32>
    %36 = math.exp %35 : vector<256x256xf32>
    %cst_16 = arith.constant dense<0.000000e+00> : vector<256xf32>
    %37 = vector.multi_reduction <add>, %36, %cst_16 [1] : vector<256x256xf32> to vector<256xf32>
    %38 = vector.shape_cast %37 : vector<256xf32> to vector<256x1xf32>
    %39 = tpu.reciprocal %38 {approx = true} : vector<256x1xf32> -> vector<256x1xf32>
    %40 = vector.broadcast %39 : vector<256x1xf32> to vector<256x256xf32>
    %41 = arith.mulf %36, %40 : vector<256x256xf32>
    %cst_17 = arith.constant dense<0.000000e+00> : vector<8x256xf32>
    %42 = tpu.matmul %30, %41, %cst_17 {dimension_numbers = #tpu.dot_dimension_numbers<[1], [1], [0], [0], [0, 0, 1, 0], [], []>} : vector<8x256xf32>, vector<256x256xf32>, vector<8x256xf32> -> vector<8x256xf32>
    %43 = vector.extract_strided_slice %25 {offsets = [8, 0], sizes = [8, 256], strides = [1, 1]} : vector<96x256xf32> to vector<8x256xf32>
    %cst_18 = arith.constant 0.353553385 : f32
    %44 = vector.broadcast %cst_18 : f32 to vector<8x256xf32>
    %45 = arith.mulf %43, %44 : vector<8x256xf32>
    %46 = vector.extract_strided_slice %25 {offsets = [40, 0], sizes = [8, 256], strides = [1, 1]} : vector<96x256xf32> to vector<8x256xf32>
    %47 = vector.extract_strided_slice %25 {offsets = [72, 0], sizes = [8, 256], strides = [1, 1]} : vector<96x256xf32> to vector<8x256xf32>
    %cst_19 = arith.constant dense<0.000000e+00> : vector<256x256xf32>
    %48 = tpu.matmul %45, %46, %cst_19 {dimension_numbers = #tpu.dot_dimension_numbers<[0], [0], [1], [1], [0, 1, 1, 1], [], []>} : vector<8x256xf32>, vector<8x256xf32>, vector<256x256xf32> -> vector<256x256xf32>
    %cst_20 = arith.constant dense<0xFF800000> : vector<256xf32>
    %49 = vector.multi_reduction <maximumf>, %48, %cst_20 [1] : vector<256x256xf32> to vector<256xf32>
    %50 = vector.shape_cast %49 : vector<256xf32> to vector<256x1xf32>
    %51 = vector.broadcast %50 : vector<256x1xf32> to vector<256x256xf32>
    %52 = arith.subf %48, %51 : vector<256x256xf32>
    %53 = math.exp %52 : vector<256x256xf32>
    %cst_21 = arith.constant dense<0.000000e+00> : vector<256xf32>
    %54 = vector.multi_reduction <add>, %53, %cst_21 [1] : vector<256x256xf32> to vector<256xf32>
    %55 = vector.shape_cast %54 : vector<256xf32> to vector<256x1xf32>
    %56 = tpu.reciprocal %55 {approx = true} : vector<256x1xf32> -> vector<256x1xf32>
    %57 = vector.broadcast %56 : vector<256x1xf32> to vector<256x256xf32>
    %58 = arith.mulf %53, %57 : vector<256x256xf32>
    %cst_22 = arith.constant dense<0.000000e+00> : vector<8x256xf32>
    %59 = tpu.matmul %47, %58, %cst_22 {dimension_numbers = #tpu.dot_dimension_numbers<[1], [1], [0], [0], [0, 0, 1, 0], [], []>} : vector<8x256xf32>, vector<256x256xf32>, vector<8x256xf32> -> vector<8x256xf32>
    %60 = vector.extract_strided_slice %25 {offsets = [16, 0], sizes = [8, 256], strides = [1, 1]} : vector<96x256xf32> to vector<8x256xf32>
    %cst_23 = arith.constant 0.353553385 : f32
    %61 = vector.broadcast %cst_23 : f32 to vector<8x256xf32>
    %62 = arith.mulf %60, %61 : vector<8x256xf32>
    %63 = vector.extract_strided_slice %25 {offsets = [48, 0], sizes = [8, 256], strides = [1, 1]} : vector<96x256xf32> to vector<8x256xf32>
    %64 = vector.extract_strided_slice %25 {offsets = [80, 0], sizes = [8, 256], strides = [1, 1]} : vector<96x256xf32> to vector<8x256xf32>
    %cst_24 = arith.constant dense<0.000000e+00> : vector<256x256xf32>
    %65 = tpu.matmul %62, %63, %cst_24 {dimension_numbers = #tpu.dot_dimension_numbers<[0], [0], [1], [1], [0, 1, 1, 1], [], []>} : vector<8x256xf32>, vector<8x256xf32>, vector<256x256xf32> -> vector<256x256xf32>
    %cst_25 = arith.constant dense<0xFF800000> : vector<256xf32>
    %66 = vector.multi_reduction <maximumf>, %65, %cst_25 [1] : vector<256x256xf32> to vector<256xf32>
    %67 = vector.shape_cast %66 : vector<256xf32> to vector<256x1xf32>
    %68 = vector.broadcast %67 : vector<256x1xf32> to vector<256x256xf32>
    %69 = arith.subf %65, %68 : vector<256x256xf32>
    %70 = math.exp %69 : vector<256x256xf32>
    %cst_26 = arith.constant dense<0.000000e+00> : vector<256xf32>
    %71 = vector.multi_reduction <add>, %70, %cst_26 [1] : vector<256x256xf32> to vector<256xf32>
    %72 = vector.shape_cast %71 : vector<256xf32> to vector<256x1xf32>
    %73 = tpu.reciprocal %72 {approx = true} : vector<256x1xf32> -> vector<256x1xf32>
    %74 = vector.broadcast %73 : vector<256x1xf32> to vector<256x256xf32>
    %75 = arith.mulf %70, %74 : vector<256x256xf32>
    %cst_27 = arith.constant dense<0.000000e+00> : vector<8x256xf32>
    %76 = tpu.matmul %64, %75, %cst_27 {dimension_numbers = #tpu.dot_dimension_numbers<[1], [1], [0], [0], [0, 0, 1, 0], [], []>} : vector<8x256xf32>, vector<256x256xf32>, vector<8x256xf32> -> vector<8x256xf32>
    %77 = vector.extract_strided_slice %25 {offsets = [24, 0], sizes = [8, 256], strides = [1, 1]} : vector<96x256xf32> to vector<8x256xf32>
    %cst_28 = arith.constant 0.353553385 : f32
    %78 = vector.broadcast %cst_28 : f32 to vector<8x256xf32>
    %79 = arith.mulf %77, %78 : vector<8x256xf32>
    %80 = vector.extract_strided_slice %25 {offsets = [56, 0], sizes = [8, 256], strides = [1, 1]} : vector<96x256xf32> to vector<8x256xf32>
    %81 = vector.extract_strided_slice %25 {offsets = [88, 0], sizes = [8, 256], strides = [1, 1]} : vector<96x256xf32> to vector<8x256xf32>
    %cst_29 = arith.constant dense<0.000000e+00> : vector<256x256xf32>
    %82 = tpu.matmul %79, %80, %cst_29 {dimension_numbers = #tpu.dot_dimension_numbers<[0], [0], [1], [1], [0, 1, 1, 1], [], []>} : vector<8x256xf32>, vector<8x256xf32>, vector<256x256xf32> -> vector<256x256xf32>
    %cst_30 = arith.constant dense<0xFF800000> : vector<256xf32>
    %83 = vector.multi_reduction <maximumf>, %82, %cst_30 [1] : vector<256x256xf32> to vector<256xf32>
    %84 = vector.shape_cast %83 : vector<256xf32> to vector<256x1xf32>
    %85 = vector.broadcast %84 : vector<256x1xf32> to vector<256x256xf32>
    %86 = arith.subf %82, %85 : vector<256x256xf32>
    %87 = math.exp %86 : vector<256x256xf32>
    %cst_31 = arith.constant dense<0.000000e+00> : vector<256xf32>
    %88 = vector.multi_reduction <add>, %87, %cst_31 [1] : vector<256x256xf32> to vector<256xf32>
    %89 = vector.shape_cast %88 : vector<256xf32> to vector<256x1xf32>
    %90 = tpu.reciprocal %89 {approx = true} : vector<256x1xf32> -> vector<256x1xf32>
    %91 = vector.broadcast %90 : vector<256x1xf32> to vector<256x256xf32>
    %92 = arith.mulf %87, %91 : vector<256x256xf32>
    %cst_32 = arith.constant dense<0.000000e+00> : vector<8x256xf32>
    %93 = tpu.matmul %81, %92, %cst_32 {dimension_numbers = #tpu.dot_dimension_numbers<[1], [1], [0], [0], [0, 0, 1, 0], [], []>} : vector<8x256xf32>, vector<256x256xf32>, vector<8x256xf32> -> vector<8x256xf32>
    %94 = tpu.concatenate %42, %59, %76, %93 in 0 : vector<8x256xf32>, vector<8x256xf32>, vector<8x256xf32>, vector<8x256xf32> -> vector<32x256xf32>
    %c0_33 = arith.constant 0 : index
    %c0_34 = arith.constant 0 : index
    %95 = vector.load %arg6[%c0_33, %c0_34] : memref<32x1xf32, #tpu.memory_space<vmem>>, vector<32x1xf32>
    %96 = vector.broadcast %95 : vector<32x1xf32> to vector<32x256xf32>
    %97 = arith.addf %23, %96 : vector<32x256xf32>
    %c0_35 = arith.constant 0 : index
    %c0_36 = arith.constant 0 : index
    %98 = vector.load %arg5[%c0_35, %c0_36] : memref<32x32xf32, #tpu.memory_space<vmem>>, vector<32x32xf32>
    %cst_37 = arith.constant dense<0.000000e+00> : vector<32x256xf32>
    %99 = tpu.matmul %98, %94, %cst_37 {dimension_numbers = #tpu.dot_dimension_numbers<[1], [0], [0], [1], [0, 0, 1, 1], [], []>} : vector<32x32xf32>, vector<32x256xf32>, vector<32x256xf32> -> vector<32x256xf32>
    %100 = arith.addf %97, %99 : vector<32x256xf32>
    %c0_38 = arith.constant 0 : index
    %c0_39 = arith.constant 0 : index
    %c0_40 = arith.constant 0 : index
    %101 = vector.load %arg7[%c0_38, %c0_39, %c0_40] : memref<1x32x256xf32, #tpu.memory_space<vmem>>, vector<1x32x256xf32>
    %102 = vector.shape_cast %101 : vector<1x32x256xf32> to vector<32x256xf32>
    %103 = vector.shape_cast %100 : vector<32x256xf32> to vector<1x32x256xf32>
    tpu.vector_store %arg7[%c0_38, %c0_39, %c0_40], %103 {strides = array<i32>} : memref<1x32x256xf32, #tpu.memory_space<vmem>>, vector<1x32x256xf32>,
    return
  }
  func.func @transform_0(%arg0: i32) -> (i32, i32, i32) {
    %c0_i32 = arith.constant 0 : i32
    %c0_i32_0 = arith.constant 0 : i32
    %c0_i32_1 = arith.constant 0 : i32
    return %arg0, %c0_i32, %c0_i32_0 : i32, i32, i32
  }
  func.func @transform_1(%arg0: i32) -> (i32, i32) {
    %c0_i32 = arith.constant 0 : i32
    %c0_i32_0 = arith.constant 0 : i32
    %c0_i32_1 = arith.constant 0 : i32
    return %c0_i32, %c0_i32_0 : i32, i32
  }
  func.func @transform_2(%arg0: i32) -> (i32, i32) {
    %c0_i32 = arith.constant 0 : i32
    %c0_i32_0 = arith.constant 0 : i32
    %c0_i32_1 = arith.constant 0 : i32
    return %c0_i32, %c0_i32_0 : i32, i32
  }
  func.func @transform_3(%arg0: i32) -> (i32, i32) {
    %c0_i32 = arith.constant 0 : i32
    %c0_i32_0 = arith.constant 0 : i32
    %c0_i32_1 = arith.constant 0 : i32
    return %c0_i32, %c0_i32_0 : i32, i32
  }
  func.func @transform_4(%arg0: i32) -> (i32, i32) {
    %c0_i32 = arith.constant 0 : i32
    %c0_i32_0 = arith.constant 0 : i32
    %c0_i32_1 = arith.constant 0 : i32
    return %c0_i32, %c0_i32_0 : i32, i32
  }
  func.func @transform_5(%arg0: i32) -> (i32, i32) {
    %c0_i32 = arith.constant 0 : i32
    %c0_i32_0 = arith.constant 0 : i32
    %c0_i32_1 = arith.constant 0 : i32
    return %c0_i32, %c0_i32_0 : i32, i32
  }
  func.func @transform_6(%arg0: i32) -> (i32, i32, i32) {
    %c0_i32 = arith.constant 0 : i32
    %c0_i32_0 = arith.constant 0 : i32
    %c0_i32_1 = arith.constant 0 : i32
    return %arg0, %c0_i32, %c0_i32_0 : i32, i32, i32
  }
}

</mosaic_0001>

<llo_original>
// kernel: tpu_custom_call.1
$region0: #{tpu_custom_call.1}
  #allocation0 [shape = 'u32[]', space=smem, size = 0x4, offset = 0x4, fixed_abs, tag = 'smem constant byte address 0x4 - core index']
  #allocation1 [shape = 'u32[144,128]{1,0:T(1,128)}', space=vmem, size = 0x12000, scoped, tag = 'internal scratch']
  %s0 = inlined_call_operand.vmem [shape: f32[2,32,256], index: 0, kind: input, shape index: {}]
  %s1 = inlined_call_operand.vmem [shape: f32[32,1], index: 1, kind: input, shape index: {}]
  %s2 = inlined_call_operand.vmem [shape: f32[32,1], index: 2, kind: input, shape index: {}]
  %s3 = inlined_call_operand.vmem [shape: f32[96,32], index: 3, kind: input, shape index: {}]
  %s4 = inlined_call_operand.vmem [shape: f32[32,32], index: 4, kind: input, shape index: {}]
  %s5 = inlined_call_operand.vmem [shape: f32[32,1], index: 5, kind: input, shape index: {}]
  %s6 = inlined_call_operand.hbm [shape: f32[2,32,256], index: 6, kind: output, shape index: {}]
  %s7 = sld [smem:[#allocation0]]
  $region57: #{tpu_custom_call.1} parent=0
    _
  %s9 = ssub.s32 1, %s7
  %s10 = scalar_select 0, %s9, %s7
  $region1: #{tpu_custom_call.1} parent=0
    #allocation2 [shape = 'u8[65536]{0}', space=vmem, size = 0x10000, scoped, tag = 'output window, operand 0']
    #allocation3 [shape = 's32[2]{0}', space=sflag, size = 0x8, scoped, tag = 'scoped memory for tpu_custom_call.1']
    %11 = vsyncpa [#allocation3], 0
    %s12 = scalar_lea.sflag [#allocation3], 1
    %13 = vsyncpa %s12, 0
    loop: start=0, step=1, limit=4
    $region2: #{tpu_custom_call.1} parent=1 // loop_pre_header
      _
    $region3: #{tpu_custom_call.1} parent=1 // loop_header
      %s15 = sphi 0, %s19
      %p16 = scmp.ge.s32.totalorder %s15, 4
      %s25 = sphi 0, %s27
      %s28 = sphi 0, %s25
      %s29 = sphi 0, %s28
      %s45 = sphi 0, %s29
      %s49 = sphi 0, %s49
      %s51 = sphi 0, %s49
      %s52 = sphi 0, %s51
      %s66 = sphi 0, %s52
      %s70 = sphi 0, %s70
      %s72 = sphi 0, %s70
      %s73 = sphi 0, %s72
      %s87 = sphi 0, %s73
      %s91 = sphi 0, %s91
      %s93 = sphi 0, %s91
      %s94 = sphi 0, %s93
      %s108 = sphi 0, %s94
      %s112 = sphi 0, %s112
      %s114 = sphi 0, %s112
      %s115 = sphi 0, %s114
      %s129 = sphi 0, %s115
      %s133 = sphi 0, %s133
      %s135 = sphi 0, %s133
      %s136 = sphi 0, %s135
      %s150 = sphi 0, %s136
      %s156 = sphi 0, %s158
      %s159 = sphi 0, %s156
      %s160 = sphi 0, %s159
      %s176 = sphi 0, %s160
    $region4: #{tpu_custom_call.1} parent=1 // loop_header_branch
      %18 = sbr.rel (%p16) target = $region8
    $region5: #{tpu_custom_call.1} parent=1 // loop_body
      %s20 = ssub.s32 %s15, 1
      %s21 = ssub.s32 %s15, 2
      %s22 = sadd.s32 %s15, 1
      %s23 = ssub.s32 %s15, %s22
      %p24 = scmp.eq.s32.totalorder %s23, 0
      %s26 = sadd.s32 %s25, 1
      %s27 = scalar_select %p24, %s25, %s26
      %p30 = pneg %p24
      %p31 = scmp.eq.s32.totalorder %s15, 1
      %p32 = por %p30, %p31
      %p33 = scmp.ne.s32.totalorder %s25, %s28
      %p34 = scmp.eq.s32.totalorder %s15, 0
      %p35 = por %p33, %p34
      %p36 = scmp.ne.s32.totalorder %s25, %s28
      %p37 = scmp.eq.s32.totalorder %s20, 1
      %p38 = por %p36, %p37
      %p39 = scmp.ne.s32.totalorder %s28, %s29
      %p40 = scmp.eq.s32.totalorder %s20, 0
      %p41 = por %p39, %p40
      %p42 = scmp.ne.s32.totalorder %s28, %s29
      %p43 = scmp.eq.s32.totalorder %s21, 1
      %p44 = por %p42, %p43
      %p46 = scmp.ne.s32.totalorder %s29, %s45
      %p47 = scmp.eq.s32.totalorder %s21, 0
      %p48 = por %p46, %p47
      %s50 = sadd.s32 %s49, 1
      %p53 = scmp.eq.s32.totalorder %s15, 1
      %p54 = scmp.ne.s32.totalorder %s49, %s51
      %p55 = scmp.eq.s32.totalorder %s15, 0
      %p56 = por %p54, %p55
      %p57 = scmp.ne.s32.totalorder %s49, %s51
      %p58 = scmp.eq.s32.totalorder %s20, 1
      %p59 = por %p57, %p58
      %p60 = scmp.ne.s32.totalorder %s51, %s52
      %p61 = scmp.eq.s32.totalorder %s20, 0
      %p62 = por %p60, %p61
      %p63 = scmp.ne.s32.totalorder %s51, %s52
      %p64 = scmp.eq.s32.totalorder %s21, 1
      %p65 = por %p63, %p64
      %p67 = scmp.ne.s32.totalorder %s52, %s66
      %p68 = scmp.eq.s32.totalorder %s21, 0
      %p69 = por %p67, %p68
      %s71 = sadd.s32 %s70, 1
      %p74 = scmp.eq.s32.totalorder %s15, 1
      %p75 = scmp.ne.s32.totalorder %s70, %s72
      %p76 = scmp.eq.s32.totalorder %s15, 0
      %p77 = por %p75, %p76
      %p78 = scmp.ne.s32.totalorder %s70, %s72
      %p79 = scmp.eq.s32.totalorder %s20, 1
      %p80 = por %p78, %p79
      %p81 = scmp.ne.s32.totalorder %s72, %s73
      %p82 = scmp.eq.s32.totalorder %s20, 0
      %p83 = por %p81, %p82
      %p84 = scmp.ne.s32.totalorder %s72, %s73
      %p85 = scmp.eq.s32.totalorder %s21, 1
      %p86 = por %p84, %p85
      %p88 = scmp.ne.s32.totalorder %s73, %s87
      %p89 = scmp.eq.s32.totalorder %s21, 0
      %p90 = por %p88, %p89
      %s92 = sadd.s32 %s91, 1
      %p95 = scmp.eq.s32.totalorder %s15, 1
      %p96 = scmp.ne.s32.totalorder %s91, %s93
      %p97 = scmp.eq.s32.totalorder %s15, 0
      %p98 = por %p96, %p97
      %p99 = scmp.ne.s32.totalorder %s91, %s93
      %p100 = scmp.eq.s32.totalorder %s20, 1
      %p101 = por %p99, %p100
      %p102 = scmp.ne.s32.totalorder %s93, %s94
      %p103 = scmp.eq.s32.totalorder %s20, 0
      %p104 = por %p102, %p103
      %p105 = scmp.ne.s32.totalorder %s93, %s94
      %p106 = scmp.eq.s32.totalorder %s21, 1
      %p107 = por %p105, %p106
      %p109 = scmp.ne.s32.totalorder %s94, %s108
      %p110 = scmp.eq.s32.totalorder %s21, 0
      %p111 = por %p109, %p110
      %s113 = sadd.s32 %s112, 1
      %p116 = scmp.eq.s32.totalorder %s15, 1
      %p117 = scmp.ne.s32.totalorder %s112, %s114
      %p118 = scmp.eq.s32.totalorder %s15, 0
      %p119 = por %p117, %p118
      %p120 = scmp.ne.s32.totalorder %s112, %s114
      %p121 = scmp.eq.s32.totalorder %s20, 1
      %p122 = por %p120, %p121
      %p123 = scmp.ne.s32.totalorder %s114, %s115
      %p124 = scmp.eq.s32.totalorder %s20, 0
      %p125 = por %p123, %p124
      %p126 = scmp.ne.s32.totalorder %s114, %s115
      %p127 = scmp.eq.s32.totalorder %s21, 1
      %p128 = por %p126, %p127
      %p130 = scmp.ne.s32.totalorder %s115, %s129
      %p131 = scmp.eq.s32.totalorder %s21, 0
      %p132 = por %p130, %p131
      %s134 = sadd.s32 %s133, 1
      %p137 = scmp.eq.s32.totalorder %s15, 1
      %p138 = scmp.ne.s32.totalorder %s133, %s135
      %p139 = scmp.eq.s32.totalorder %s15, 0
      %p140 = por %p138, %p139
      %p141 = scmp.ne.s32.totalorder %s133, %s135
      %p142 = scmp.eq.s32.totalorder %s20, 1
      %p143 = por %p141, %p142
      %p144 = scmp.ne.s32.totalorder %s135, %s136
      %p145 = scmp.eq.s32.totalorder %s20, 0
      %p146 = por %p144, %p145
      %p147 = scmp.ne.s32.totalorder %s135, %s136
      %p148 = scmp.eq.s32.totalorder %s21, 1
      %p149 = por %p147, %p148
      %p151 = scmp.ne.s32.totalorder %s136, %s150
      %p152 = scmp.eq.s32.totalorder %s21, 0
      %p153 = por %p151, %p152
      %s154 = ssub.s32 %s15, %s22
      %p155 = scmp.eq.s32.totalorder %s154, 0
      %s157 = sadd.s32 %s156, 1
      %s158 = scalar_select %p155, %s156, %s157
      %p161 = pneg %p155
      %p162 = scmp.eq.s32.totalorder %s15, 1
      %p163 = por %p161, %p162
      %p164 = scmp.ne.s32.totalorder %s156, %s159
      %p165 = scmp.eq.s32.totalorder %s15, 0
      %p166 = por %p164, %p165
      %p167 = scmp.ne.s32.totalorder %s156, %s159
      %p168 = scmp.eq.s32.totalorder %s20, 1
      %p169 = por %p167, %p168
      %p170 = scmp.ne.s32.totalorder %s159, %s160
      %p171 = scmp.eq.s32.totalorder %s20, 0
      %p172 = por %p170, %p171
      %p173 = scmp.ne.s32.totalorder %s159, %s160
      %p174 = scmp.eq.s32.totalorder %s21, 1
      %p175 = por %p173, %p174
      %p177 = scmp.ne.s32.totalorder %s160, %s176
      %p178 = scmp.eq.s32.totalorder %s21, 0
      %p179 = por %p177, %p178
      %p180 = scmp.le.s32.totalorder 1, %s15
      %p181 = scmp.lt.s32.totalorder %s15, 3
      %p182 = pnand %p180, %p181
      %p183 = pneg %p182
      // Predicated region
      $region9: #{tpu_custom_call.1} parent=5 // pred_check
        _
      $region10: #{tpu_custom_call.1} parent=5 // pred_check_branch
        %185 = sbr.rel (%p182) target = $region12
      $region11: #{tpu_custom_call.1} parent=5 // pred_region
        %s186 = ssub.s32 %s15, 1
        // Predicated region
        $region13: #{tpu_custom_call.1} parent=11 // pred_check
          %p187 = pneg %p62
        $region14: #{tpu_custom_call.1} parent=11 // pred_check_branch
          %189 = sbr.rel (%p187) target = $region16
        $region15: #{tpu_custom_call.1} parent=11 // pred_region
          _
        $region16: #{tpu_custom_call.1} parent=11 // pred_fallthru
          _
        // Predicated region
        $region17: #{tpu_custom_call.1} parent=11 // pred_check
          %p190 = pneg %p83
        $region18: #{tpu_custom_call.1} parent=11 // pred_check_branch
          %192 = sbr.rel (%p190) target = $region20
        $region19: #{tpu_custom_call.1} parent=11 // pred_region
          _
        $region20: #{tpu_custom_call.1} parent=11 // pred_fallthru
          _
        // Predicated region
        $region21: #{tpu_custom_call.1} parent=11 // pred_check
          %p193 = pneg %p104
        $region22: #{tpu_custom_call.1} parent=11 // pred_check_branch
          %195 = sbr.rel (%p193) target = $region24
        $region23: #{tpu_custom_call.1} parent=11 // pred_region
          _
        $region24: #{tpu_custom_call.1} parent=11 // pred_fallthru
          _
        // Predicated region
        $region25: #{tpu_custom_call.1} parent=11 // pred_check
          %p196 = pneg %p125
        $region26: #{tpu_custom_call.1} parent=11 // pred_check_branch
          %198 = sbr.rel (%p196) target = $region28
        $region27: #{tpu_custom_call.1} parent=11 // pred_region
          _
        $region28: #{tpu_custom_call.1} parent=11 // pred_fallthru
          _
        // Predicated region
        $region29: #{tpu_custom_call.1} parent=11 // pred_check
          %p199 = pneg %p146
        $region30: #{tpu_custom_call.1} parent=11 // pred_check_branch
          %201 = sbr.rel (%p199) target = $region32
        $region31: #{tpu_custom_call.1} parent=11 // pred_region
          _
        $region32: #{tpu_custom_call.1} parent=11 // pred_fallthru
          _
      $region12: #{tpu_custom_call.1} parent=5 // pred_fallthru
        _
      %p202 = scmp.lt.s32.totalorder %s15, 2
      // Predicated region
      $region33: #{tpu_custom_call.1} parent=5 // pred_check
        %p203 = pneg %p202
      $region34: #{tpu_custom_call.1} parent=5 // pred_check_branch
        %205 = sbr.rel (%p203) target = $region36
      $region35: #{tpu_custom_call.1} parent=5 // pred_region
        // Predicated region
        $region37: #{tpu_custom_call.1} parent=35 // pred_check
          %p206 = pneg %p35
        $region38: #{tpu_custom_call.1} parent=35 // pred_check_branch
          %208 = sbr.rel (%p206) target = $region40
        $region39: #{tpu_custom_call.1} parent=35 // pred_region
          %p209 = scmp.lt.s32.totalorder %s15, 1
          %s210 = scalar_select %p209, %s15, 1
          %s211 = smul.addr %s210, 8
          %s212 = smul.addr %s211, 8
          %s213 = scalar_lea.vmem %s0, %s212
        $region40: #{tpu_custom_call.1} parent=35 // pred_fallthru
          _
      $region36: #{tpu_custom_call.1} parent=5 // pred_fallthru
        _
      %p214 = scmp.le.s32.totalorder 1, %s15
      %p215 = scmp.lt.s32.totalorder %s15, 3
      %p216 = pnand %p214, %p215
      %p217 = pneg %p216
      // Predicated region
      $region41: #{tpu_custom_call.1} parent=5 // pred_check
        _
      $region42: #{tpu_custom_call.1} parent=5 // pred_check_branch
        %219 = sbr.rel (%p216) target = $region44
      $region43: #{tpu_custom_call.1} parent=5 // pred_region
        %s220 = ssub.s32 %s15, 1
        %p221 = scmp.lt.s32.totalorder %s20, 1
        %s222 = scalar_select %p221, %s20, 1
        %s223 = smul.addr %s222, 8
        %s224 = smul.addr %s223, 8
        %s225 = scalar_lea.vmem %s0, %s224
        %p226 = pneg %p41
        %p227 = pneg %p38
        %p228 = pneg %p62
        %p229 = pneg %p59
        %p230 = pneg %p83
        %p231 = pneg %p80
        %p232 = pneg %p104
        %p233 = pneg %p101
        %p234 = pneg %p125
        %p235 = pneg %p122
        %p236 = pneg %p146
        %p237 = pneg %p143
        %p238 = pneg %p172
        %p239 = pneg %p169
        %s240 = sand.u32 %s159, 1
        %s241 = scalar_lea.sflag [#allocation3], %s240
        %s242 = sand.u32 %s159, 1
        %s243 = smul.addr %s242, 64
        %s244 = scalar_lea.vmem [#allocation2], %s243
        %p245 = scmp.lt.s32.totalorder %s20, 1
        %s246 = scalar_select %p245, %s20, 1
        %s247 = smul.addr %s246, 8
        %s248 = smul.addr %s247, 8
        %s249 = scalar_lea.vmem %s0, %s248
        %v250 = vld [vmem:[%s249] sm:$0xff]
        %v251 = vld [vmem:[%s249 + $0x8] sm:$0xff]
        %v252 = vld [vmem:[%s249 + $0x10] sm:$0xff]
        %v253 = vld [vmem:[%s249 + $0x18] sm:$0xff]
        %v254 = vld [vmem:[%s249 + $0x20] sm:$0xff]
        %v255 = vld [vmem:[%s249 + $0x28] sm:$0xff]
        %v256 = vld [vmem:[%s249 + $0x30] sm:$0xff]
        %v257 = vld [vmem:[%s249 + $0x38] sm:$0xff]
        %v258 = vadd.f32 %v250, %v252
        %v259 = vadd.f32 %v258, %v254
        %v260 = vadd.f32 %v259, %v256
        %v261 = vrot.slane %v260, 4
        %v262 = vadd.f32 %v260, %v261
        %v263 = vrot.slane %v262, 2
        %v264 = vadd.f32 %v262, %v263
        %v265 = vrot.slane %v264, 1
        %v266 = vadd.f32 %v264, %v265
        %v267 = vadd.f32 %v251, %v253
        %v268 = vadd.f32 %v267, %v255
        %v269 = vadd.f32 %v268, %v257
        %v270 = vrot.slane %v269, 4
        %v271 = vadd.f32 %v269, %v270
        %v272 = vrot.slane %v271, 2
        %v273 = vadd.f32 %v271, %v272
        %v274 = vrot.slane %v273, 1
        %v275 = vadd.f32 %v273, %v274
        %v276 = vrcp.pop 32.0
        %v277 = vmul.f32 %v266, %v276
        %v278 = vmul.f32 %v275, %v276
        %v279 = vsub.f32 %v250, %v277
        %v280 = vsub.f32 %v251, %v278
        %v281 = vsub.f32 %v252, %v277
        %v282 = vsub.f32 %v253, %v278
        %v283 = vsub.f32 %v254, %v277
        %v284 = vsub.f32 %v255, %v278
        %v285 = vsub.f32 %v256, %v277
        %v286 = vsub.f32 %v257, %v278
        %v287 = vmul.f32 %v279, %v279
        %v288 = vmul.f32 %v280, %v280
        %v289 = vmul.f32 %v281, %v281
        %v290 = vmul.f32 %v282, %v282
        %v291 = vmul.f32 %v283, %v283
        %v292 = vmul.f32 %v284, %v284
        %v293 = vmul.f32 %v285, %v285
        %v294 = vmul.f32 %v286, %v286
        %v295 = vadd.f32 %v287, %v289
        %v296 = vadd.f32 %v295, %v291
        %v297 = vadd.f32 %v296, %v293
        %v298 = vrot.slane %v297, 4
        %v299 = vadd.f32 %v297, %v298
        %v300 = vrot.slane %v299, 2
        %v301 = vadd.f32 %v299, %v300
        %v302 = vrot.slane %v301, 1
        %v303 = vadd.f32 %v301, %v302
        %v304 = vadd.f32 %v288, %v290
        %v305 = vadd.f32 %v304, %v292
        %v306 = vadd.f32 %v305, %v294
        %v307 = vrot.slane %v306, 4
        %v308 = vadd.f32 %v306, %v307
        %v309 = vrot.slane %v308, 2
        %v310 = vadd.f32 %v308, %v309
        %v311 = vrot.slane %v310, 1
        %v312 = vadd.f32 %v310, %v311
        %v313 = vmul.f32 %v303, %v276
        %v314 = vmul.f32 %v312, %v276
        %v315 = vadd.f32 %v313, 1e-05
        %v316 = vadd.f32 %v314, 1e-05
        %v317 = vrsqrt.pop %v315
        %v318 = vrsqrt.pop %v316
        %v319 = vmul.f32 %v279, %v317
        %v320 = vmul.f32 %v280, %v318
        %v321 = vmul.f32 %v281, %v317
        %v322 = vmul.f32 %v282, %v318
        %v323 = vmul.f32 %v283, %v317
        %v324 = vmul.f32 %v284, %v318
        %v325 = vmul.f32 %v285, %v317
        %v326 = vmul.f32 %v286, %v318
        %v327 = vld [vmem:[%s1] sm:$0xff]
        %v328 = vld [vmem:[%s1 + $0x8] sm:$0xff]
        %v329 = vld [vmem:[%s1 + $0x10] sm:$0xff]
        %v330 = vld [vmem:[%s1 + $0x18] sm:$0xff]
        %332 = vset.pattern.permute.xlu0 0
        %333 = vperm.xlu0 %332, %v327
        %v334 = vpop.permute.xlu0 %333
        %337 = vset.pattern.permute.xlu0 0
        %338 = vperm.xlu0 %337, %v328
        %v339 = vpop.permute.xlu0 %338
        %342 = vset.pattern.permute.xlu0 0
        %343 = vperm.xlu0 %342, %v329
        %v344 = vpop.permute.xlu0 %343
        %347 = vset.pattern.permute.xlu0 0
        %348 = vperm.xlu0 %347, %v330
        %v349 = vpop.permute.xlu0 %348
        %v351 = vmul.f32 %v319, %v334
        %v352 = vmul.f32 %v320, %v334
        %v353 = vmul.f32 %v321, %v339
        %v354 = vmul.f32 %v322, %v339
        %v355 = vmul.f32 %v323, %v344
        %v356 = vmul.f32 %v324, %v344
        %v357 = vmul.f32 %v325, %v349
        %v358 = vmul.f32 %v326, %v349
        %v359 = vld [vmem:[%s2] sm:$0xff]
        %v360 = vld [vmem:[%s2 + $0x8] sm:$0xff]
        %v361 = vld [vmem:[%s2 + $0x10] sm:$0xff]
        %v362 = vld [vmem:[%s2 + $0x18] sm:$0xff]
        %364 = vset.pattern.permute.xlu0 0
        %365 = vperm.xlu0 %364, %v359
        %v366 = vpop.permute.xlu0 %365
        %369 = vset.pattern.permute.xlu0 0
        %370 = vperm.xlu0 %369, %v360
        %v371 = vpop.permute.xlu0 %370
        %374 = vset.pattern.permute.xlu0 0
        %375 = vperm.xlu0 %374, %v361
        %v376 = vpop.permute.xlu0 %375
        %379 = vset.pattern.permute.xlu0 0
        %380 = vperm.xlu0 %379, %v362
        %v381 = vpop.permute.xlu0 %380
        %v383 = vadd.f32 %v351, %v366
        %v384 = vadd.f32 %v352, %v366
        %v385 = vadd.f32 %v353, %v371
        %v386 = vadd.f32 %v354, %v371
        %v387 = vadd.f32 %v355, %v376
        %v388 = vadd.f32 %v356, %v376
        %v389 = vadd.f32 %v357, %v381
        %v390 = vadd.f32 %v358, %v381
        %v391 = vld [vmem:[%s3] sm:$0xff]
        %v392 = vld [vmem:[%s3 + $0x8] sm:$0xff]
        %v393 = vld [vmem:[%s3 + $0x10] sm:$0xff]
        %v394 = vld [vmem:[%s3 + $0x18] sm:$0xff]
        %v395 = vld [vmem:[%s3 + $0x20] sm:$0xff]
        %v396 = vld [vmem:[%s3 + $0x28] sm:$0xff]
        %v397 = vld [vmem:[%s3 + $0x30] sm:$0xff]
        %v398 = vld [vmem:[%s3 + $0x38] sm:$0xff]
        %v399 = vld [vmem:[%s3 + $0x40] sm:$0xff]
        %v400 = vld [vmem:[%s3 + $0x48] sm:$0xff]
        %v401 = vld [vmem:[%s3 + $0x50] sm:$0xff]
        %v402 = vld [vmem:[%s3 + $0x58] sm:$0xff]
        %vm403 = vcmask 261120
        %v405 = vsel %vm403, %v391, 0
        %v408 = vsel %vm403, %v392, 0
        %v411 = vsel %vm403, %v393, 0
        %v414 = vsel %vm403, %v394, 0
        %v417 = vsel %vm403, %v395, 0
        %v420 = vsel %vm403, %v396, 0
        %v423 = vsel %vm403, %v397, 0
        %v426 = vsel %vm403, %v398, 0
        %v429 = vsel %vm403, %v399, 0
        %v432 = vsel %vm403, %v400, 0
        %v435 = vsel %vm403, %v401, 0
        %v438 = vsel %vm403, %v402, 0
        %440 = vmatprep.subr.mxu0 0.0
        %441 = vmatpush1.msra.mxu0 0.0
        %442 = vmatprep.subr.mxu0 0.0
        %443 = vmatpush1.msra.mxu0 0.0
        %444 = vmatprep.subr.mxu0 0.0
        %445 = vmatpush1.msra.mxu0 0.0
        %446 = vmatprep.subr.mxu0 0.0
        %447 = vmatpush1.msra.mxu0 0.0
        %448 = vmatprep.subr.mxu0 0.0
        %449 = vmatpush1.msra.mxu0 0.0
        %450 = vmatprep.subr.mxu0 0.0
        %451 = vmatpush1.msra.mxu0 0.0
        %452 = vmatprep.subr.mxu0 0.0
        %453 = vmatpush1.msra.mxu0 0.0
        %454 = vmatprep.subr.mxu0 0.0
        %455 = vmatpush1.msra.mxu0 0.0
        %456 = vmatprep.subr.mxu0 0.0
        %457 = vmatpush1.msra.mxu0 0.0
        %458 = vmatprep.subr.mxu0 0.0
        %459 = vmatpush1.msra.mxu0 0.0
        %460 = vmatprep.subr.mxu0 0.0
        %461 = vmatpush1.msra.mxu0 0.0
        %462 = vmatprep.subr.mxu0 0.0
        %463 = vmatpush1.msra.mxu0 0.0
        %464 = vmatprep.subr.mxu0 %v390
        %465 = vmatpush1.msra.mxu0 %v389
        %466 = vmatprep.subr.mxu0 %v388
        %467 = vmatpush1.msra.mxu0 %v387
        %468 = vmatprep.subr.mxu0 %v386
        %469 = vmatpush1.msra.mxu0 %v385
        %470 = vmatprep.subr.mxu0 %v384
        %471 = vmatpush1.msra.mxu0 %v383
        %472 = vmatprep.subr.mxu0 0.0
        %473 = vmatpush2.msra.mxu0 0.0
        %474 = vmatprep.subr.mxu0 0.0
        %475 = vmatpush2.msra.mxu0 0.0
        %476 = vmatprep.subr.mxu0 0.0
        %477 = vmatpush2.msra.mxu0 0.0
        %478 = vmatprep.subr.mxu0 0.0
        %479 = vmatpush2.msra.mxu0 0.0
        %480 = vmatprep.subr.mxu0 0.0
        %481 = vmatpush2.msra.mxu0 0.0
        %482 = vmatprep.subr.mxu0 0.0
        %483 = vmatpush2.msra.mxu0 0.0
        %484 = vmatprep.subr.mxu0 0.0
        %485 = vmatpush2.msra.mxu0 0.0
        %486 = vmatprep.subr.mxu0 0.0
        %487 = vmatpush2.msra.mxu0 0.0
        %488 = vmatprep.subr.mxu0 0.0
        %489 = vmatpush2.msra.mxu0 0.0
        %490 = vmatprep.subr.mxu0 0.0
        %491 = vmatpush2.msra.mxu0 0.0
        %492 = vmatprep.subr.mxu0 0.0
        %493 = vmatpush2.msra.mxu0 0.0
        %494 = vmatprep.subr.mxu0 0.0
        %495 = vmatpush2.msra.mxu0 0.0
        %496 = vmatprep.subr.mxu0 0.0
        %497 = vmatpush2.msra.mxu0 0.0
        %498 = vmatprep.subr.mxu0 0.0
        %499 = vmatpush2.msra.mxu0 0.0
        %500 = vmatprep.subr.mxu0 0.0
        %501 = vmatpush2.msra.mxu0 0.0
        %502 = vmatprep.subr.mxu0 0.0
        %503 = vmatpush2.msra.mxu0 0.0
        %504 = vmatprep.mubr.f32.mxu0 0.0
        %505 = vmatmul.mubr.f32.gmra.mxu0 %v405
        %v506 = vpop.f32.mrf.mxu0
        %v507 = vadd.f32 0.0, %v506
        %v508 = vpop.f32.mrf.mxu0
        %v509 = vadd.f32 0.0, %v508
        %510 = vmatprep.mubr.f32.mxu0 0.0
        %511 = vmatmul.mubr.f32.gmra.mxu0 %v408
        %v512 = vpop.f32.mrf.mxu0
        %v513 = vadd.f32 0.0, %v512
        %v514 = vpop.f32.mrf.mxu0
        %v515 = vadd.f32 0.0, %v514
        %516 = vmatprep.mubr.f32.mxu0 0.0
        %517 = vmatmul.mubr.f32.gmra.mxu0 %v411
        %v518 = vpop.f32.mrf.mxu0
        %v519 = vadd.f32 0.0, %v518
        %v520 = vpop.f32.mrf.mxu0
        %v521 = vadd.f32 0.0, %v520
        %522 = vmatprep.mubr.f32.mxu0 0.0
        %523 = vmatmul.mubr.f32.gmra.mxu0 %v414
        %v524 = vpop.f32.mrf.mxu0
        %v525 = vadd.f32 0.0, %v524
        %v526 = vpop.f32.mrf.mxu0
        %v527 = vadd.f32 0.0, %v526
        %528 = vmatprep.mubr.f32.mxu0 0.0
        %529 = vmatmul.mubr.f32.gmra.mxu0 %v417
        %v530 = vpop.f32.mrf.mxu0
        %v531 = vadd.f32 0.0, %v530
        %v532 = vpop.f32.mrf.mxu0
        %v533 = vadd.f32 0.0, %v532
        %534 = vmatprep.mubr.f32.mxu0 0.0
        %535 = vmatmul.mubr.f32.gmra.mxu0 %v420
        %v536 = vpop.f32.mrf.mxu0
        %v537 = vadd.f32 0.0, %v536
        %v538 = vpop.f32.mrf.mxu0
        %v539 = vadd.f32 0.0, %v538
        %540 = vmatprep.mubr.f32.mxu0 0.0
        %541 = vmatmul.mubr.f32.gmra.mxu0 %v423
        %v542 = vpop.f32.mrf.mxu0
        %v543 = vadd.f32 0.0, %v542
        %v544 = vpop.f32.mrf.mxu0
        %v545 = vadd.f32 0.0, %v544
        %546 = vmatprep.mubr.f32.mxu0 0.0
        %547 = vmatmul.mubr.f32.gmra.mxu0 %v426
        %v548 = vpop.f32.mrf.mxu0
        %v549 = vadd.f32 0.0, %v548
        %v550 = vpop.f32.mrf.mxu0
        %v551 = vadd.f32 0.0, %v550
        %552 = vmatprep.mubr.f32.mxu0 0.0
        %553 = vmatmul.mubr.f32.gmra.mxu0 %v429
        %v554 = vpop.f32.mrf.mxu0
        %v555 = vadd.f32 0.0, %v554
        %v556 = vpop.f32.mrf.mxu0
        %v557 = vadd.f32 0.0, %v556
        %558 = vmatprep.mubr.f32.mxu0 0.0
        %559 = vmatmul.mubr.f32.gmra.mxu0 %v432
        %v560 = vpop.f32.mrf.mxu0
        %v561 = vadd.f32 0.0, %v560
        %v562 = vpop.f32.mrf.mxu0
        %v563 = vadd.f32 0.0, %v562
        %564 = vmatprep.mubr.f32.mxu0 0.0
        %565 = vmatmul.mubr.f32.gmra.mxu0 %v435
        %v566 = vpop.f32.mrf.mxu0
        %v567 = vadd.f32 0.0, %v566
        %v568 = vpop.f32.mrf.mxu0
        %v569 = vadd.f32 0.0, %v568
        %570 = vmatprep.mubr.f32.mxu0 0.0
        %571 = vmatmul.mubr.f32.gmra.mxu0 %v438
        %v572 = vpop.f32.mrf.mxu0
        %v573 = vadd.f32 0.0, %v572
        %v574 = vpop.f32.mrf.mxu0
        %v575 = vadd.f32 0.0, %v574
        %576 = vdwg.mxu0
        %v577 = vmul.f32 %v507, 0.35355338
        %v578 = vmul.f32 %v509, 0.35355338
        %579 = vxpose.xlu0.b32.start [1/16] %v577, 128
        %580 = vxpose.xlu0.b32.cont [2/16] 0.0, 128
        %581 = vxpose.xlu0.b32.cont [3/16] 0.0, 128
        %582 = vxpose.xlu0.b32.cont [4/16] 0.0, 128
        %583 = vxpose.xlu0.b32.cont [5/16] 0.0, 128
        %584 = vxpose.xlu0.b32.cont [6/16] 0.0, 128
        %585 = vxpose.xlu0.b32.cont [7/16] 0.0, 128
        %586 = vxpose.xlu0.b32.cont [8/16] 0.0, 128
        %587 = vxpose.xlu0.b32.cont [9/16] 0.0, 128
        %588 = vxpose.xlu0.b32.cont [10/16] 0.0, 128
        %589 = vxpose.xlu0.b32.cont [11/16] 0.0, 128
        %590 = vxpose.xlu0.b32.cont [12/16] 0.0, 128
        %591 = vxpose.xlu0.b32.cont [13/16] 0.0, 128
        %592 = vxpose.xlu0.b32.cont [14/16] 0.0, 128
        %593 = vxpose.xlu0.b32.cont [15/16] 0.0, 128
        %594 = vxpose.xlu0.b32.end [16/16] 0.0, 128
        %v595 = vpop.trf.xlu0
        %v596 = vpop.trf.xlu0
        %v597 = vpop.trf.xlu0
        %v598 = vpop.trf.xlu0
        %v599 = vpop.trf.xlu0
        %v600 = vpop.trf.xlu0
        %v601 = vpop.trf.xlu0
        %v602 = vpop.trf.xlu0
        %v603 = vpop.trf.xlu0
        %v604 = vpop.trf.xlu0
        %v605 = vpop.trf.xlu0
        %v606 = vpop.trf.xlu0
        %v607 = vpop.trf.xlu0
        %v608 = vpop.trf.xlu0
        %v609 = vpop.trf.xlu0
        %v610 = vpop.trf.xlu0
        %611 = vxpose.xlu0.b32.start [1/16] %v578, 128
        %612 = vxpose.xlu0.b32.cont [2/16] 0.0, 128
        %613 = vxpose.xlu0.b32.cont [3/16] 0.0, 128
        %614 = vxpose.xlu0.b32.cont [4/16] 0.0, 128
        %615 = vxpose.xlu0.b32.cont [5/16] 0.0, 128
        %616 = vxpose.xlu0.b32.cont [6/16] 0.0, 128
        %617 = vxpose.xlu0.b32.cont [7/16] 0.0, 128
        %618 = vxpose.xlu0.b32.cont [8/16] 0.0, 128
        %619 = vxpose.xlu0.b32.cont [9/16] 0.0, 128
        %620 = vxpose.xlu0.b32.cont [10/16] 0.0, 128
        %621 = vxpose.xlu0.b32.cont [11/16] 0.0, 128
        %622 = vxpose.xlu0.b32.cont [12/16] 0.0, 128
        %623 = vxpose.xlu0.b32.cont [13/16] 0.0, 128
        %624 = vxpose.xlu0.b32.cont [14/16] 0.0, 128
        %625 = vxpose.xlu0.b32.cont [15/16] 0.0, 128
        %626 = vxpose.xlu0.b32.end [16/16] 0.0, 128
        %v627 = vpop.trf.xlu0
        %v628 = vpop.trf.xlu0
        %v629 = vpop.trf.xlu0
        %v630 = vpop.trf.xlu0
        %v631 = vpop.trf.xlu0
        %v632 = vpop.trf.xlu0
        %v633 = vpop.trf.xlu0
        %v634 = vpop.trf.xlu0
        %v635 = vpop.trf.xlu0
        %v636 = vpop.trf.xlu0
        %v637 = vpop.trf.xlu0
        %v638 = vpop.trf.xlu0
        %v639 = vpop.trf.xlu0
        %v640 = vpop.trf.xlu0
        %v641 = vpop.trf.xlu0
        %v642 = vpop.trf.xlu0
        %vm643 = vcmask 64512
        %v645 = vsel %vm643, %v595, 0
        %v648 = vsel %vm643, %v596, 0
        %v651 = vsel %vm643, %v597, 0
        %v654 = vsel %vm643, %v598, 0
        %v657 = vsel %vm643, %v599, 0
        %v660 = vsel %vm643, %v600, 0
        %v663 = vsel %vm643, %v601, 0
        %v666 = vsel %vm643, %v602, 0
        %v669 = vsel %vm643, %v603, 0
        %v672 = vsel %vm643, %v604, 0
        %v675 = vsel %vm643, %v605, 0
        %v678 = vsel %vm643, %v606, 0
        %v681 = vsel %vm643, %v607, 0
        %v684 = vsel %vm643, %v608, 0
        %v687 = vsel %vm643, %v609, 0
        %v690 = vsel %vm643, %v610, 0
        %v693 = vsel %vm643, %v627, 0
        %v696 = vsel %vm643, %v628, 0
        %v699 = vsel %vm643, %v629, 0
        %v702 = vsel %vm643, %v630, 0
        %v705 = vsel %vm643, %v631, 0
        %v708 = vsel %vm643, %v632, 0
        %v711 = vsel %vm643, %v633, 0
        %v714 = vsel %vm643, %v634, 0
        %v717 = vsel %vm643, %v635, 0
        %v720 = vsel %vm643, %v636, 0
        %v723 = vsel %vm643, %v637, 0
        %v726 = vsel %vm643, %v638, 0
        %v729 = vsel %vm643, %v639, 0
        %v732 = vsel %vm643, %v640, 0
        %v735 = vsel %vm643, %v641, 0
        %v738 = vsel %vm643, %v642, 0
        %740 = vmatprep.subr.mxu0 0.0
        %741 = vmatpush1.msra.mxu0 0.0
        %742 = vmatprep.subr.mxu0 0.0
        %743 = vmatpush1.msra.mxu0 0.0
        %744 = vmatprep.subr.mxu0 0.0
        %745 = vmatpush1.msra.mxu0 0.0
        %746 = vmatprep.subr.mxu0 0.0
        %747 = vmatpush1.msra.mxu0 0.0
        %748 = vmatprep.subr.mxu0 0.0
        %749 = vmatpush1.msra.mxu0 0.0
        %750 = vmatprep.subr.mxu0 0.0
        %751 = vmatpush1.msra.mxu0 0.0
        %752 = vmatprep.subr.mxu0 0.0
        %753 = vmatpush1.msra.mxu0 0.0
        %754 = vmatprep.subr.mxu0 0.0
        %755 = vmatpush1.msra.mxu0 0.0
        %756 = vmatprep.subr.mxu0 0.0
        %757 = vmatpush1.msra.mxu0 0.0
        %758 = vmatprep.subr.mxu0 0.0
        %759 = vmatpush1.msra.mxu0 0.0
        %760 = vmatprep.subr.mxu0 0.0
        %761 = vmatpush1.msra.mxu0 0.0
        %762 = vmatprep.subr.mxu0 0.0
        %763 = vmatpush1.msra.mxu0 0.0
        %764 = vmatprep.subr.mxu0 0.0
        %765 = vmatpush1.msra.mxu0 0.0
        %766 = vmatprep.subr.mxu0 0.0
        %767 = vmatpush1.msra.mxu0 0.0
        %768 = vmatprep.subr.mxu0 0.0
        %769 = vmatpush1.msra.mxu0 0.0
        %770 = vmatprep.subr.mxu0 %v533
        %771 = vmatpush1.msra.mxu0 %v531
        %772 = vmatprep.subr.mxu0 0.0
        %773 = vmatpush2.msra.mxu0 0.0
        %774 = vmatprep.subr.mxu0 0.0
        %775 = vmatpush2.msra.mxu0 0.0
        %776 = vmatprep.subr.mxu0 0.0
        %777 = vmatpush2.msra.mxu0 0.0
        %778 = vmatprep.subr.mxu0 0.0
        %779 = vmatpush2.msra.mxu0 0.0
        %780 = vmatprep.subr.mxu0 0.0
        %781 = vmatpush2.msra.mxu0 0.0
        %782 = vmatprep.subr.mxu0 0.0
        %783 = vmatpush2.msra.mxu0 0.0
        %784 = vmatprep.subr.mxu0 0.0
        %785 = vmatpush2.msra.mxu0 0.0
        %786 = vmatprep.subr.mxu0 0.0
        %787 = vmatpush2.msra.mxu0 0.0
        %788 = vmatprep.subr.mxu0 0.0
        %789 = vmatpush2.msra.mxu0 0.0
        %790 = vmatprep.subr.mxu0 0.0
        %791 = vmatpush2.msra.mxu0 0.0
        %792 = vmatprep.subr.mxu0 0.0
        %793 = vmatpush2.msra.mxu0 0.0
        %794 = vmatprep.subr.mxu0 0.0
        %795 = vmatpush2.msra.mxu0 0.0
        %796 = vmatprep.subr.mxu0 0.0
        %797 = vmatpush2.msra.mxu0 0.0
        %798 = vmatprep.subr.mxu0 0.0
        %799 = vmatpush2.msra.mxu0 0.0
        %800 = vmatprep.subr.mxu0 0.0
        %801 = vmatpush2.msra.mxu0 0.0
        %802 = vmatprep.subr.mxu0 0.0
        %803 = vmatpush2.msra.mxu0 0.0
        %804 = vmatprep.mubr.f32.mxu0 0.0
        %805 = vmatmul.mubr.f32.gmra.mxu0 %v645
        %v806 = vpop.f32.mrf.mxu0
        %v807 = vadd.f32 0.0, %v806
        %v808 = vpop.f32.mrf.mxu0
        %v809 = vadd.f32 0.0, %v808
        %810 = vmatprep.mubr.f32.mxu0 0.0
        %811 = vmatmul.mubr.f32.gmra.mxu0 %v648
        %v812 = vpop.f32.mrf.mxu0
        %v813 = vadd.f32 0.0, %v812
        %v814 = vpop.f32.mrf.mxu0
        %v815 = vadd.f32 0.0, %v814
        %816 = vmatprep.mubr.f32.mxu0 0.0
        %817 = vmatmul.mubr.f32.gmra.mxu0 %v651
        %v818 = vpop.f32.mrf.mxu0
        %v819 = vadd.f32 0.0, %v818
        %v820 = vpop.f32.mrf.mxu0
        %v821 = vadd.f32 0.0, %v820
        %822 = vmatprep.mubr.f32.mxu0 0.0
        %823 = vmatmul.mubr.f32.gmra.mxu0 %v654
        %v824 = vpop.f32.mrf.mxu0
        %v825 = vadd.f32 0.0, %v824
        %v826 = vpop.f32.mrf.mxu0
        %v827 = vadd.f32 0.0, %v826
        %828 = vmatprep.mubr.f32.mxu0 0.0
        %829 = vmatmul.mubr.f32.gmra.mxu0 %v657
        %v830 = vpop.f32.mrf.mxu0
        %v831 = vadd.f32 0.0, %v830
        %v832 = vpop.f32.mrf.mxu0
        %v833 = vadd.f32 0.0, %v832
        %834 = vmatprep.mubr.f32.mxu0 0.0
        %835 = vmatmul.mubr.f32.gmra.mxu0 %v660
        %v836 = vpop.f32.mrf.mxu0
        %v837 = vadd.f32 0.0, %v836
        %v838 = vpop.f32.mrf.mxu0
        %v839 = vadd.f32 0.0, %v838
        %840 = vmatprep.mubr.f32.mxu0 0.0
        %841 = vmatmul.mubr.f32.gmra.mxu0 %v663
        %v842 = vpop.f32.mrf.mxu0
        %v843 = vadd.f32 0.0, %v842
        %v844 = vpop.f32.mrf.mxu0
        %v845 = vadd.f32 0.0, %v844
        %846 = vmatprep.mubr.f32.mxu0 0.0
        %847 = vmatmul.mubr.f32.gmra.mxu0 %v666
        %v848 = vpop.f32.mrf.mxu0
        %v849 = vadd.f32 0.0, %v848
        %v850 = vpop.f32.mrf.mxu0
        %v851 = vadd.f32 0.0, %v850
        %852 = vmatprep.mubr.f32.mxu0 0.0
        %853 = vmatmul.mubr.f32.gmra.mxu0 %v669
        %v854 = vpop.f32.mrf.mxu0
        %v855 = vadd.f32 0.0, %v854
        %v856 = vpop.f32.mrf.mxu0
        %v857 = vadd.f32 0.0, %v856
        %858 = vmatprep.mubr.f32.mxu0 0.0
        %859 = vmatmul.mubr.f32.gmra.mxu0 %v672
        %v860 = vpop.f32.mrf.mxu0
        %v861 = vadd.f32 0.0, %v860
        %v862 = vpop.f32.mrf.mxu0
        %v863 = vadd.f32 0.0, %v862
        %864 = vmatprep.mubr.f32.mxu0 0.0
        %865 = vmatmul.mubr.f32.gmra.mxu0 %v675
        %v866 = vpop.f32.mrf.mxu0
        %v867 = vadd.f32 0.0, %v866
        %v868 = vpop.f32.mrf.mxu0
        %v869 = vadd.f32 0.0, %v868
        %870 = vmatprep.mubr.f32.mxu0 0.0
        %871 = vmatmul.mubr.f32.gmra.mxu0 %v678
        %v872 = vpop.f32.mrf.mxu0
        %v873 = vadd.f32 0.0, %v872
        %v874 = vpop.f32.mrf.mxu0
        %v875 = vadd.f32 0.0, %v874
        %876 = vmatprep.mubr.f32.mxu0 0.0
        %877 = vmatmul.mubr.f32.gmra.mxu0 %v681
        %v878 = vpop.f32.mrf.mxu0
        %v879 = vadd.f32 0.0, %v878
        %v880 = vpop.f32.mrf.mxu0
        %v881 = vadd.f32 0.0, %v880
        %882 = vmatprep.mubr.f32.mxu0 0.0
        %883 = vmatmul.mubr.f32.gmra.mxu0 %v684
        %v884 = vpop.f32.mrf.mxu0
        %v885 = vadd.f32 0.0, %v884
        %v886 = vpop.f32.mrf.mxu0
        %v887 = vadd.f32 0.0, %v886
        %888 = vmatprep.mubr.f32.mxu0 0.0
        %889 = vmatmul.mubr.f32.gmra.mxu0 %v687
        %v890 = vpop.f32.mrf.mxu0
        %v891 = vadd.f32 0.0, %v890
        %v892 = vpop.f32.mrf.mxu0
        %v893 = vadd.f32 0.0, %v892
        %894 = vmatprep.mubr.f32.mxu0 0.0
        %895 = vmatmul.mubr.f32.gmra.mxu0 %v690
        %v896 = vpop.f32.mrf.mxu0
        %v897 = vadd.f32 0.0, %v896
        %v898 = vpop.f32.mrf.mxu0
        %v899 = vadd.f32 0.0, %v898
        %900 = vmatprep.mubr.f32.mxu0 0.0
        %901 = vmatmul.mubr.f32.gmra.mxu0 %v693
        %v902 = vpop.f32.mrf.mxu0
        %v903 = vadd.f32 0.0, %v902
        %v904 = vpop.f32.mrf.mxu0
        %v905 = vadd.f32 0.0, %v904
        %906 = vmatprep.mubr.f32.mxu0 0.0
        %907 = vmatmul.mubr.f32.gmra.mxu0 %v696
        %v908 = vpop.f32.mrf.mxu0
        %v909 = vadd.f32 0.0, %v908
        %v910 = vpop.f32.mrf.mxu0
        %v911 = vadd.f32 0.0, %v910
        %912 = vmatprep.mubr.f32.mxu0 0.0
        %913 = vmatmul.mubr.f32.gmra.mxu0 %v699
        %v914 = vpop.f32.mrf.mxu0
        %v915 = vadd.f32 0.0, %v914
        %v916 = vpop.f32.mrf.mxu0
        %v917 = vadd.f32 0.0, %v916
        %918 = vmatprep.mubr.f32.mxu0 0.0
        %919 = vmatmul.mubr.f32.gmra.mxu0 %v702
        %v920 = vpop.f32.mrf.mxu0
        %v921 = vadd.f32 0.0, %v920
        %v922 = vpop.f32.mrf.mxu0
        %v923 = vadd.f32 0.0, %v922
        %924 = vmatprep.mubr.f32.mxu0 0.0
        %925 = vmatmul.mubr.f32.gmra.mxu0 %v705
        %v926 = vpop.f32.mrf.mxu0
        %v927 = vadd.f32 0.0, %v926
        %v928 = vpop.f32.mrf.mxu0
        %v929 = vadd.f32 0.0, %v928
        %930 = vmatprep.mubr.f32.mxu0 0.0
        %931 = vmatmul.mubr.f32.gmra.mxu0 %v708
        %v932 = vpop.f32.mrf.mxu0
        %v933 = vadd.f32 0.0, %v932
        %v934 = vpop.f32.mrf.mxu0
        %v935 = vadd.f32 0.0, %v934
        %936 = vmatprep.mubr.f32.mxu0 0.0
        %937 = vmatmul.mubr.f32.gmra.mxu0 %v711
        %v938 = vpop.f32.mrf.mxu0
        %v939 = vadd.f32 0.0, %v938
        %v940 = vpop.f32.mrf.mxu0
        %v941 = vadd.f32 0.0, %v940
        %942 = vmatprep.mubr.f32.mxu0 0.0
        %943 = vmatmul.mubr.f32.gmra.mxu0 %v714
        %v944 = vpop.f32.mrf.mxu0
        %v945 = vadd.f32 0.0, %v944
        %v946 = vpop.f32.mrf.mxu0
        %v947 = vadd.f32 0.0, %v946
        %948 = vmatprep.mubr.f32.mxu0 0.0
        %949 = vmatmul.mubr.f32.gmra.mxu0 %v717
        %v950 = vpop.f32.mrf.mxu0
        %v951 = vadd.f32 0.0, %v950
        %v952 = vpop.f32.mrf.mxu0
        %v953 = vadd.f32 0.0, %v952
        %954 = vmatprep.mubr.f32.mxu0 0.0
        %955 = vmatmul.mubr.f32.gmra.mxu0 %v720
        %v956 = vpop.f32.mrf.mxu0
        %v957 = vadd.f32 0.0, %v956
        %v958 = vpop.f32.mrf.mxu0
        %v959 = vadd.f32 0.0, %v958
        %960 = vmatprep.mubr.f32.mxu0 0.0
        %961 = vmatmul.mubr.f32.gmra.mxu0 %v723
        %v962 = vpop.f32.mrf.mxu0
        %v963 = vadd.f32 0.0, %v962
        %v964 = vpop.f32.mrf.mxu0
        %v965 = vadd.f32 0.0, %v964
        %966 = vmatprep.mubr.f32.mxu0 0.0
        %967 = vmatmul.mubr.f32.gmra.mxu0 %v726
        %v968 = vpop.f32.mrf.mxu0
        %v969 = vadd.f32 0.0, %v968
        %v970 = vpop.f32.mrf.mxu0
        %v971 = vadd.f32 0.0, %v970
        %972 = vmatprep.mubr.f32.mxu0 0.0
        %973 = vmatmul.mubr.f32.gmra.mxu0 %v729
        %v974 = vpop.f32.mrf.mxu0
        %v975 = vadd.f32 0.0, %v974
        %v976 = vpop.f32.mrf.mxu0
        %v977 = vadd.f32 0.0, %v976
        %978 = vmatprep.mubr.f32.mxu0 0.0
        %979 = vmatmul.mubr.f32.gmra.mxu0 %v732
        %v980 = vpop.f32.mrf.mxu0
        %v981 = vadd.f32 0.0, %v980
        %v982 = vpop.f32.mrf.mxu0
        %v983 = vadd.f32 0.0, %v982
        %984 = vmatprep.mubr.f32.mxu0 0.0
        %985 = vmatmul.mubr.f32.gmra.mxu0 %v735
        %v986 = vpop.f32.mrf.mxu0
        %v987 = vadd.f32 0.0, %v986
        %v988 = vpop.f32.mrf.mxu0
        %v989 = vadd.f32 0.0, %v988
        %990 = vmatprep.mubr.f32.mxu0 0.0
        %991 = vmatmul.mubr.f32.gmra.mxu0 %v738
        %v992 = vpop.f32.mrf.mxu0
        %v993 = vadd.f32 0.0, %v992
        %v994 = vpop.f32.mrf.mxu0
        %v995 = vadd.f32 0.0, %v994
        %996 = vdwg.mxu0
        %v997 = vmax.f32 %v807, %v809
        %998 = vmax.xlane.f32.xlu0 %v997
        %v999 = vpop.xlane.xlu0 %998
        %v1000 = vmax.f32 %v813, %v815
        %1001 = vmax.xlane.f32.xlu0 %v1000
        %v1002 = vpop.xlane.xlu0 %1001
        %v1003 = vmax.f32 %v819, %v821
        %1004 = vmax.xlane.f32.xlu0 %v1003
        %v1005 = vpop.xlane.xlu0 %1004
        %v1006 = vmax.f32 %v825, %v827
        %1007 = vmax.xlane.f32.xlu0 %v1006
        %v1008 = vpop.xlane.xlu0 %1007
        %v1009 = vmax.f32 %v831, %v833
        %1010 = vmax.xlane.f32.xlu0 %v1009
        %v1011 = vpop.xlane.xlu0 %1010
        %v1012 = vmax.f32 %v837, %v839
        %1013 = vmax.xlane.f32.xlu0 %v1012
        %v1014 = vpop.xlane.xlu0 %1013
        %v1015 = vmax.f32 %v843, %v845
        %1016 = vmax.xlane.f32.xlu0 %v1015
        %v1017 = vpop.xlane.xlu0 %1016
        %v1018 = vmax.f32 %v849, %v851
        %1019 = vmax.xlane.f32.xlu0 %v1018
        %v1020 = vpop.xlane.xlu0 %1019
        %v1021 = vmax.f32 %v855, %v857
        %1022 = vmax.xlane.f32.xlu0 %v1021
        %v1023 = vpop.xlane.xlu0 %1022
        %v1024 = vmax.f32 %v861, %v863
        %1025 = vmax.xlane.f32.xlu0 %v1024
        %v1026 = vpop.xlane.xlu0 %1025
        %v1027 = vmax.f32 %v867, %v869
        %1028 = vmax.xlane.f32.xlu0 %v1027
        %v1029 = vpop.xlane.xlu0 %1028
        %v1030 = vmax.f32 %v873, %v875
        %1031 = vmax.xlane.f32.xlu0 %v1030
        %v1032 = vpop.xlane.xlu0 %1031
        %v1033 = vmax.f32 %v879, %v881
        %1034 = vmax.xlane.f32.xlu0 %v1033
        %v1035 = vpop.xlane.xlu0 %1034
        %v1036 = vmax.f32 %v885, %v887
        %1037 = vmax.xlane.f32.xlu0 %v1036
        %v1038 = vpop.xlane.xlu0 %1037
        %v1039 = vmax.f32 %v891, %v893
        %1040 = vmax.xlane.f32.xlu0 %v1039
        %v1041 = vpop.xlane.xlu0 %1040
        %v1042 = vmax.f32 %v897, %v899
        %1043 = vmax.xlane.f32.xlu0 %v1042
        %v1044 = vpop.xlane.xlu0 %1043
        %v1045 = vmax.f32 %v903, %v905
        %1046 = vmax.xlane.f32.xlu0 %v1045
        %v1047 = vpop.xlane.xlu0 %1046
        %v1048 = vmax.f32 %v909, %v911
        %1049 = vmax.xlane.f32.xlu0 %v1048
        %v1050 = vpop.xlane.xlu0 %1049
        %v1051 = vmax.f32 %v915, %v917
        %1052 = vmax.xlane.f32.xlu0 %v1051
        %v1053 = vpop.xlane.xlu0 %1052
        %v1054 = vmax.f32 %v921, %v923
        %1055 = vmax.xlane.f32.xlu0 %v1054
        %v1056 = vpop.xlane.xlu0 %1055
        %v1057 = vmax.f32 %v927, %v929
        %1058 = vmax.xlane.f32.xlu0 %v1057
        %v1059 = vpop.xlane.xlu0 %1058
        %v1060 = vmax.f32 %v933, %v935
        %1061 = vmax.xlane.f32.xlu0 %v1060
        %v1062 = vpop.xlane.xlu0 %1061
        %v1063 = vmax.f32 %v939, %v941
        %1064 = vmax.xlane.f32.xlu0 %v1063
        %v1065 = vpop.xlane.xlu0 %1064
        %v1066 = vmax.f32 %v945, %v947
        %1067 = vmax.xlane.f32.xlu0 %v1066
        %v1068 = vpop.xlane.xlu0 %1067
        %v1069 = vmax.f32 %v951, %v953
        %1070 = vmax.xlane.f32.xlu0 %v1069
        %v1071 = vpop.xlane.xlu0 %1070
        %v1072 = vmax.f32 %v957, %v959
        %1073 = vmax.xlane.f32.xlu0 %v1072
        %v1074 = vpop.xlane.xlu0 %1073
        %v1075 = vmax.f32 %v963, %v965
        %1076 = vmax.xlane.f32.xlu0 %v1075
        %v1077 = vpop.xlane.xlu0 %1076
        %v1078 = vmax.f32 %v969, %v971
        %1079 = vmax.xlane.f32.xlu0 %v1078
        %v1080 = vpop.xlane.xlu0 %1079
        %v1081 = vmax.f32 %v975, %v977
        %1082 = vmax.xlane.f32.xlu0 %v1081
        %v1083 = vpop.xlane.xlu0 %1082
        %v1084 = vmax.f32 %v981, %v983
        %1085 = vmax.xlane.f32.xlu0 %v1084
        %v1086 = vpop.xlane.xlu0 %1085
        %v1087 = vmax.f32 %v987, %v989
        %1088 = vmax.xlane.f32.xlu0 %v1087
        %v1089 = vpop.xlane.xlu0 %1088
        %v1090 = vmax.f32 %v993, %v995
        %1091 = vmax.xlane.f32.xlu0 %v1090
        %v1092 = vpop.xlane.xlu0 %1091
        %v1093 = vsub.f32 %v807, %v999
        %v1094 = vsub.f32 %v809, %v999
        %v1095 = vsub.f32 %v813, %v1002
        %v1096 = vsub.f32 %v815, %v1002
        %v1097 = vsub.f32 %v819, %v1005
        %v1098 = vsub.f32 %v821, %v1005
        %v1099 = vsub.f32 %v825, %v1008
        %v1100 = vsub.f32 %v827, %v1008
        %v1101 = vsub.f32 %v831, %v1011
        %v1102 = vsub.f32 %v833, %v1011
        %v1103 = vsub.f32 %v837, %v1014
        %v1104 = vsub.f32 %v839, %v1014
        %v1105 = vsub.f32 %v843, %v1017
        %v1106 = vsub.f32 %v845, %v1017
        %v1107 = vsub.f32 %v849, %v1020
        %v1108 = vsub.f32 %v851, %v1020
        %v1109 = vsub.f32 %v855, %v1023
        %v1110 = vsub.f32 %v857, %v1023
        %v1111 = vsub.f32 %v861, %v1026
        %v1112 = vsub.f32 %v863, %v1026
        %v1113 = vsub.f32 %v867, %v1029
        %v1114 = vsub.f32 %v869, %v1029
        %v1115 = vsub.f32 %v873, %v1032
        %v1116 = vsub.f32 %v875, %v1032
        %v1117 = vsub.f32 %v879, %v1035
        %v1118 = vsub.f32 %v881, %v1035
        %v1119 = vsub.f32 %v885, %v1038
        %v1120 = vsub.f32 %v887, %v1038
        %v1121 = vsub.f32 %v891, %v1041
        %v1122 = vsub.f32 %v893, %v1041
        %v1123 = vsub.f32 %v897, %v1044
        %v1124 = vsub.f32 %v899, %v1044
        %v1125 = vsub.f32 %v903, %v1047
        %v1126 = vsub.f32 %v905, %v1047
        %v1127 = vsub.f32 %v909, %v1050
        %v1128 = vsub.f32 %v911, %v1050
        %v1129 = vsub.f32 %v915, %v1053
        %v1130 = vsub.f32 %v917, %v1053
        %v1131 = vsub.f32 %v921, %v1056
        %v1132 = vsub.f32 %v923, %v1056
        %v1133 = vsub.f32 %v927, %v1059
        %v1134 = vsub.f32 %v929, %v1059
        %v1135 = vsub.f32 %v933, %v1062
        %v1136 = vsub.f32 %v935, %v1062
        %v1137 = vsub.f32 %v939, %v1065
        %v1138 = vsub.f32 %v941, %v1065
        %v1139 = vsub.f32 %v945, %v1068
        %v1140 = vsub.f32 %v947, %v1068
        %v1141 = vsub.f32 %v951, %v1071
        %v1142 = vsub.f32 %v953, %v1071
        %v1143 = vsub.f32 %v957, %v1074
        %v1144 = vsub.f32 %v959, %v1074
        %v1145 = vsub.f32 %v963, %v1077
        %v1146 = vsub.f32 %v965, %v1077
        %v1147 = vsub.f32 %v969, %v1080
        %v1148 = vsub.f32 %v971, %v1080
        %v1149 = vsub.f32 %v975, %v1083
        %v1150 = vsub.f32 %v977, %v1083
        %v1151 = vsub.f32 %v981, %v1086
        %v1152 = vsub.f32 %v983, %v1086
        %v1153 = vsub.f32 %v987, %v1089
        %v1154 = vsub.f32 %v989, %v1089
        %v1155 = vsub.f32 %v993, %v1092
        %v1156 = vsub.f32 %v995, %v1092
        %v1157 = vmul.f32 %v1093, 1.442695
        %v1158 = vpow.pop %v1157
        %v1159 = vmul.f32 %v1094, 1.442695
        %v1160 = vpow.pop %v1159
        %v1161 = vmul.f32 %v1095, 1.442695
        %v1162 = vpow.pop %v1161
        %v1163 = vmul.f32 %v1096, 1.442695
        %v1164 = vpow.pop %v1163
        %v1165 = vmul.f32 %v1097, 1.442695
        %v1166 = vpow.pop %v1165
        %v1167 = vmul.f32 %v1098, 1.442695
        %v1168 = vpow.pop %v1167
        %v1169 = vmul.f32 %v1099, 1.442695
        %v1170 = vpow.pop %v1169
        %v1171 = vmul.f32 %v1100, 1.442695
        %v1172 = vpow.pop %v1171
        %v1173 = vmul.f32 %v1101, 1.442695
        %v1174 = vpow.pop %v1173
        %v1175 = vmul.f32 %v1102, 1.442695
        %v1176 = vpow.pop %v1175
        %v1177 = vmul.f32 %v1103, 1.442695
        %v1178 = vpow.pop %v1177
        %v1179 = vmul.f32 %v1104, 1.442695
        %v1180 = vpow.pop %v1179
        %v1181 = vmul.f32 %v1105, 1.442695
        %v1182 = vpow.pop %v1181
        %v1183 = vmul.f32 %v1106, 1.442695
        %v1184 = vpow.pop %v1183
        %v1185 = vmul.f32 %v1107, 1.442695
        %v1186 = vpow.pop %v1185
        %v1187 = vmul.f32 %v1108, 1.442695
        %v1188 = vpow.pop %v1187
        %v1189 = vmul.f32 %v1109, 1.442695
        %v1190 = vpow.pop %v1189
        %v1191 = vmul.f32 %v1110, 1.442695
        %v1192 = vpow.pop %v1191
        %v1193 = vmul.f32 %v1111, 1.442695
        %v1194 = vpow.pop %v1193
        %v1195 = vmul.f32 %v1112, 1.442695
        %v1196 = vpow.pop %v1195
        %v1197 = vmul.f32 %v1113, 1.442695
        %v1198 = vpow.pop %v1197
        %v1199 = vmul.f32 %v1114, 1.442695
        %v1200 = vpow.pop %v1199
        %v1201 = vmul.f32 %v1115, 1.442695
        %v1202 = vpow.pop %v1201
        %v1203 = vmul.f32 %v1116, 1.442695
        %v1204 = vpow.pop %v1203
        %v1205 = vmul.f32 %v1117, 1.442695
        %v1206 = vpow.pop %v1205
        %v1207 = vmul.f32 %v1118, 1.442695
        %v1208 = vpow.pop %v1207
        %v1209 = vmul.f32 %v1119, 1.442695
        %v1210 = vpow.pop %v1209
        %v1211 = vmul.f32 %v1120, 1.442695
        %v1212 = vpow.pop %v1211
        %v1213 = vmul.f32 %v1121, 1.442695
        %v1214 = vpow.pop %v1213
        %v1215 = vmul.f32 %v1122, 1.442695
        %v1216 = vpow.pop %v1215
        %v1217 = vmul.f32 %v1123, 1.442695
        %v1218 = vpow.pop %v1217
        %v1219 = vmul.f32 %v1124, 1.442695
        %v1220 = vpow.pop %v1219
        %v1221 = vmul.f32 %v1125, 1.442695
        %v1222 = vpow.pop %v1221
        %v1223 = vmul.f32 %v1126, 1.442695
        %v1224 = vpow.pop %v1223
        %v1225 = vmul.f32 %v1127, 1.442695
        %v1226 = vpow.pop %v1225
        %v1227 = vmul.f32 %v1128, 1.442695
        %v1228 = vpow.pop %v1227
        %v1229 = vmul.f32 %v1129, 1.442695
        %v1230 = vpow.pop %v1229
        %v1231 = vmul.f32 %v1130, 1.442695
        %v1232 = vpow.pop %v1231
        %v1233 = vmul.f32 %v1131, 1.442695
        %v1234 = vpow.pop %v1233
        %v1235 = vmul.f32 %v1132, 1.442695
        %v1236 = vpow.pop %v1235
        %v1237 = vmul.f32 %v1133, 1.442695
        %v1238 = vpow.pop %v1237
        %v1239 = vmul.f32 %v1134, 1.442695
        %v1240 = vpow.pop %v1239
        %v1241 = vmul.f32 %v1135, 1.442695
        %v1242 = vpow.pop %v1241
        %v1243 = vmul.f32 %v1136, 1.442695
        %v1244 = vpow.pop %v1243
        %v1245 = vmul.f32 %v1137, 1.442695
        %v1246 = vpow.pop %v1245
        %v1247 = vmul.f32 %v1138, 1.442695
        %v1248 = vpow.pop %v1247
        %v1249 = vmul.f32 %v1139, 1.442695
        %v1250 = vpow.pop %v1249
        %v1251 = vmul.f32 %v1140, 1.442695
        %v1252 = vpow.pop %v1251
        %v1253 = vmul.f32 %v1141, 1.442695
        %v1254 = vpow.pop %v1253
        %v1255 = vmul.f32 %v1142, 1.442695
        %v1256 = vpow.pop %v1255
        %v1257 = vmul.f32 %v1143, 1.442695
        %v1258 = vpow.pop %v1257
        %v1259 = vmul.f32 %v1144, 1.442695
        %v1260 = vpow.pop %v1259
        %v1261 = vmul.f32 %v1145, 1.442695
        %v1262 = vpow.pop %v1261
        %v1263 = vmul.f32 %v1146, 1.442695
        %v1264 = vpow.pop %v1263
        %v1265 = vmul.f32 %v1147, 1.442695
        %v1266 = vpow.pop %v1265
        %v1267 = vmul.f32 %v1148, 1.442695
        %v1268 = vpow.pop %v1267
        %v1269 = vmul.f32 %v1149, 1.442695
        %v1270 = vpow.pop %v1269
        %v1271 = vmul.f32 %v1150, 1.442695
        %v1272 = vpow.pop %v1271
        %v1273 = vmul.f32 %v1151, 1.442695
        %v1274 = vpow.pop %v1273
        %v1275 = vmul.f32 %v1152, 1.442695
        %v1276 = vpow.pop %v1275
        %v1277 = vmul.f32 %v1153, 1.442695
        %v1278 = vpow.pop %v1277
        %v1279 = vmul.f32 %v1154, 1.442695
        %v1280 = vpow.pop %v1279
        %v1281 = vmul.f32 %v1155, 1.442695
        %v1282 = vpow.pop %v1281
        %v1283 = vmul.f32 %v1156, 1.442695
        %v1284 = vpow.pop %v1283
        %v1285 = vadd.f32 %v1158, %v1160
        %1286 = vadd.xlane.f32.xlu0 %v1285
        %v1287 = vpop.xlane.xlu0 %1286
        %v1288 = vadd.f32 %v1162, %v1164
        %1289 = vadd.xlane.f32.xlu0 %v1288
        %v1290 = vpop.xlane.xlu0 %1289
        %v1291 = vadd.f32 %v1166, %v1168
        %1292 = vadd.xlane.f32.xlu0 %v1291
        %v1293 = vpop.xlane.xlu0 %1292
        %v1294 = vadd.f32 %v1170, %v1172
        %1295 = vadd.xlane.f32.xlu0 %v1294
        %v1296 = vpop.xlane.xlu0 %1295
        %v1297 = vadd.f32 %v1174, %v1176
        %1298 = vadd.xlane.f32.xlu0 %v1297
        %v1299 = vpop.xlane.xlu0 %1298
        %v1300 = vadd.f32 %v1178, %v1180
        %1301 = vadd.xlane.f32.xlu0 %v1300
        %v1302 = vpop.xlane.xlu0 %1301
        %v1303 = vadd.f32 %v1182, %v1184
        %1304 = vadd.xlane.f32.xlu0 %v1303
        %v1305 = vpop.xlane.xlu0 %1304
        %v1306 = vadd.f32 %v1186, %v1188
        %1307 = vadd.xlane.f32.xlu0 %v1306
        %v1308 = vpop.xlane.xlu0 %1307
        %v1309 = vadd.f32 %v1190, %v1192
        %1310 = vadd.xlane.f32.xlu0 %v1309
        %v1311 = vpop.xlane.xlu0 %1310
        %v1312 = vadd.f32 %v1194, %v1196
        %1313 = vadd.xlane.f32.xlu0 %v1312
        %v1314 = vpop.xlane.xlu0 %1313
        %v1315 = vadd.f32 %v1198, %v1200
        %1316 = vadd.xlane.f32.xlu0 %v1315
        %v1317 = vpop.xlane.xlu0 %1316
        %v1318 = vadd.f32 %v1202, %v1204
        %1319 = vadd.xlane.f32.xlu0 %v1318
        %v1320 = vpop.xlane.xlu0 %1319
        %v1321 = vadd.f32 %v1206, %v1208
        %1322 = vadd.xlane.f32.xlu0 %v1321
        %v1323 = vpop.xlane.xlu0 %1322
        %v1324 = vadd.f32 %v1210, %v1212
        %1325 = vadd.xlane.f32.xlu0 %v1324
        %v1326 = vpop.xlane.xlu0 %1325
        %v1327 = vadd.f32 %v1214, %v1216
        %1328 = vadd.xlane.f32.xlu0 %v1327
        %v1329 = vpop.xlane.xlu0 %1328
        %v1330 = vadd.f32 %v1218, %v1220
        %1331 = vadd.xlane.f32.xlu0 %v1330
        %v1332 = vpop.xlane.xlu0 %1331
        %v1333 = vadd.f32 %v1222, %v1224
        %1334 = vadd.xlane.f32.xlu0 %v1333
        %v1335 = vpop.xlane.xlu0 %1334
        %v1336 = vadd.f32 %v1226, %v1228
        %1337 = vadd.xlane.f32.xlu0 %v1336
        %v1338 = vpop.xlane.xlu0 %1337
        %v1339 = vadd.f32 %v1230, %v1232
        %1340 = vadd.xlane.f32.xlu0 %v1339
        %v1341 = vpop.xlane.xlu0 %1340
        %v1342 = vadd.f32 %v1234, %v1236
        %1343 = vadd.xlane.f32.xlu0 %v1342
        %v1344 = vpop.xlane.xlu0 %1343
        %v1345 = vadd.f32 %v1238, %v1240
        %1346 = vadd.xlane.f32.xlu0 %v1345
        %v1347 = vpop.xlane.xlu0 %1346
        %v1348 = vadd.f32 %v1242, %v1244
        %1349 = vadd.xlane.f32.xlu0 %v1348
        %v1350 = vpop.xlane.xlu0 %1349
        %v1351 = vadd.f32 %v1246, %v1248
        %1352 = vadd.xlane.f32.xlu0 %v1351
        %v1353 = vpop.xlane.xlu0 %1352
        %v1354 = vadd.f32 %v1250, %v1252
        %1355 = vadd.xlane.f32.xlu0 %v1354
        %v1356 = vpop.xlane.xlu0 %1355
        %v1357 = vadd.f32 %v1254, %v1256
        %1358 = vadd.xlane.f32.xlu0 %v1357
        %v1359 = vpop.xlane.xlu0 %1358
        %v1360 = vadd.f32 %v1258, %v1260
        %1361 = vadd.xlane.f32.xlu0 %v1360
        %v1362 = vpop.xlane.xlu0 %1361
        %v1363 = vadd.f32 %v1262, %v1264
        %1364 = vadd.xlane.f32.xlu0 %v1363
        %v1365 = vpop.xlane.xlu0 %1364
        %v1366 = vadd.f32 %v1266, %v1268
        %1367 = vadd.xlane.f32.xlu0 %v1366
        %v1368 = vpop.xlane.xlu0 %1367
        %v1369 = vadd.f32 %v1270, %v1272
        %1370 = vadd.xlane.f32.xlu0 %v1369
        %v1371 = vpop.xlane.xlu0 %1370
        %v1372 = vadd.f32 %v1274, %v1276
        %1373 = vadd.xlane.f32.xlu0 %v1372
        %v1374 = vpop.xlane.xlu0 %1373
        %v1375 = vadd.f32 %v1278, %v1280
        %1376 = vadd.xlane.f32.xlu0 %v1375
        %v1377 = vpop.xlane.xlu0 %1376
        %v1378 = vadd.f32 %v1282, %v1284
        %1379 = vadd.xlane.f32.xlu0 %v1378
        %v1380 = vpop.xlane.xlu0 %1379
        %v1381 = vrcp.pop %v1287
        %v1382 = vrcp.pop %v1290
        %v1383 = vrcp.pop %v1293
        %v1384 = vrcp.pop %v1296
        %v1385 = vrcp.pop %v1299
        %v1386 = vrcp.pop %v1302
        %v1387 = vrcp.pop %v1305
        %v1388 = vrcp.pop %v1308
        %v1389 = vrcp.pop %v1311
        %v1390 = vrcp.pop %v1314
        %v1391 = vrcp.pop %v1317
        %v1392 = vrcp.pop %v1320
        %v1393 = vrcp.pop %v1323
        %v1394 = vrcp.pop %v1326
        %v1395 = vrcp.pop %v1329
        %v1396 = vrcp.pop %v1332
        %v1397 = vrcp.pop %v1335
        %v1398 = vrcp.pop %v1338
        %v1399 = vrcp.pop %v1341
        %v1400 = vrcp.pop %v1344
        %v1401 = vrcp.pop %v1347
        %v1402 = vrcp.pop %v1350
        %v1403 = vrcp.pop %v1353
        %v1404 = vrcp.pop %v1356
        %v1405 = vrcp.pop %v1359
        %v1406 = vrcp.pop %v1362
        %v1407 = vrcp.pop %v1365
        %v1408 = vrcp.pop %v1368
        %v1409 = vrcp.pop %v1371
        %v1410 = vrcp.pop %v1374
        %v1411 = vrcp.pop %v1377
        %v1412 = vrcp.pop %v1380
        %v1413 = vmul.f32 %v1158, %v1381
        %v1414 = vmul.f32 %v1160, %v1381
        %v1415 = vmul.f32 %v1162, %v1382
        %v1416 = vmul.f32 %v1164, %v1382
        %v1417 = vmul.f32 %v1166, %v1383
        %v1418 = vmul.f32 %v1168, %v1383
        %v1419 = vmul.f32 %v1170, %v1384
        %v1420 = vmul.f32 %v1172, %v1384
        %v1421 = vmul.f32 %v1174, %v1385
        %v1422 = vmul.f32 %v1176, %v1385
        %v1423 = vmul.f32 %v1178, %v1386
        %v1424 = vmul.f32 %v1180, %v1386
        %v1425 = vmul.f32 %v1182, %v1387
        %v1426 = vmul.f32 %v1184, %v1387
        %v1427 = vmul.f32 %v1186, %v1388
        %v1428 = vmul.f32 %v1188, %v1388
        %v1429 = vmul.f32 %v1190, %v1389
        %v1430 = vmul.f32 %v1192, %v1389
        %v1431 = vmul.f32 %v1194, %v1390
        %v1432 = vmul.f32 %v1196, %v1390
        %v1433 = vmul.f32 %v1198, %v1391
        %v1434 = vmul.f32 %v1200, %v1391
        %v1435 = vmul.f32 %v1202, %v1392
        %v1436 = vmul.f32 %v1204, %v1392
        %v1437 = vmul.f32 %v1206, %v1393
        %v1438 = vmul.f32 %v1208, %v1393
        %v1439 = vmul.f32 %v1210, %v1394
        %v1440 = vmul.f32 %v1212, %v1394
        %v1441 = vmul.f32 %v1214, %v1395
        %v1442 = vmul.f32 %v1216, %v1395
        %v1443 = vmul.f32 %v1218, %v1396
        %v1444 = vmul.f32 %v1220, %v1396
        %v1445 = vmul.f32 %v1222, %v1397
        %v1446 = vmul.f32 %v1224, %v1397
        %v1447 = vmul.f32 %v1226, %v1398
        %v1448 = vmul.f32 %v1228, %v1398
        %v1449 = vmul.f32 %v1230, %v1399
        %v1450 = vmul.f32 %v1232, %v1399
        %v1451 = vmul.f32 %v1234, %v1400
        %v1452 = vmul.f32 %v1236, %v1400
        %v1453 = vmul.f32 %v1238, %v1401
        %v1454 = vmul.f32 %v1240, %v1401
        %v1455 = vmul.f32 %v1242, %v1402
        %v1456 = vmul.f32 %v1244, %v1402
        %v1457 = vmul.f32 %v1246, %v1403
        %v1458 = vmul.f32 %v1248, %v1403
        %v1459 = vmul.f32 %v1250, %v1404
        %v1460 = vmul.f32 %v1252, %v1404
        %v1461 = vmul.f32 %v1254, %v1405
        %v1462 = vmul.f32 %v1256, %v1405
        %v1463 = vmul.f32 %v1258, %v1406
        %v1464 = vmul.f32 %v1260, %v1406
        %v1465 = vmul.f32 %v1262, %v1407
        %v1466 = vmul.f32 %v1264, %v1407
        %v1467 = vmul.f32 %v1266, %v1408
        %v1468 = vmul.f32 %v1268, %v1408
        %v1469 = vmul.f32 %v1270, %v1409
        %v1470 = vmul.f32 %v1272, %v1409
        %v1471 = vmul.f32 %v1274, %v1410
        %v1472 = vmul.f32 %v1276, %v1410
        %v1473 = vmul.f32 %v1278, %v1411
        %v1474 = vmul.f32 %v1280, %v1411
        %v1475 = vmul.f32 %v1282, %v1412
        %v1476 = vmul.f32 %v1284, %v1412
        %1477 = vmatprep.subr.mxu0 %v1444
        %1478 = vmatpush1.xpose.msra.mxu0 %v1443
        %1479 = vmatprep.subr.mxu0 %v1442
        %1480 = vmatpush1.xpose.msra.mxu0 %v1441
        %1481 = vmatprep.subr.mxu0 %v1440
        %1482 = vmatpush1.xpose.msra.mxu0 %v1439
        %1483 = vmatprep.subr.mxu0 %v1438
        %1484 = vmatpush1.xpose.msra.mxu0 %v1437
        %1485 = vmatprep.subr.mxu0 %v1436
        %1486 = vmatpush1.xpose.msra.mxu0 %v1435
        %1487 = vmatprep.subr.mxu0 %v1434
        %1488 = vmatpush1.xpose.msra.mxu0 %v1433
        %1489 = vmatprep.subr.mxu0 %v1432
        %1490 = vmatpush1.xpose.msra.mxu0 %v1431
        %1491 = vmatprep.subr.mxu0 %v1430
        %1492 = vmatpush1.xpose.msra.mxu0 %v1429
        %1493 = vmatprep.subr.mxu0 %v1428
        %1494 = vmatpush1.xpose.msra.mxu0 %v1427
        %1495 = vmatprep.subr.mxu0 %v1426
        %1496 = vmatpush1.xpose.msra.mxu0 %v1425
        %1497 = vmatprep.subr.mxu0 %v1424
        %1498 = vmatpush1.xpose.msra.mxu0 %v1423
        %1499 = vmatprep.subr.mxu0 %v1422
        %1500 = vmatpush1.xpose.msra.mxu0 %v1421
        %1501 = vmatprep.subr.mxu0 %v1420
        %1502 = vmatpush1.xpose.msra.mxu0 %v1419
        %1503 = vmatprep.subr.mxu0 %v1418
        %1504 = vmatpush1.xpose.msra.mxu0 %v1417
        %1505 = vmatprep.subr.mxu0 %v1416
        %1506 = vmatpush1.xpose.msra.mxu0 %v1415
        %1507 = vmatprep.subr.mxu0 %v1414
        %1508 = vmatpush1.xpose.msra.mxu0 %v1413
        %1509 = vmatprep.subr.mxu0 %v1476
        %1510 = vmatpush2.xpose.msra.mxu0 %v1475
        %1511 = vmatprep.subr.mxu0 %v1474
        %1512 = vmatpush2.xpose.msra.mxu0 %v1473
        %1513 = vmatprep.subr.mxu0 %v1472
        %1514 = vmatpush2.xpose.msra.mxu0 %v1471
        %1515 = vmatprep.subr.mxu0 %v1470
        %1516 = vmatpush2.xpose.msra.mxu0 %v1469
        %1517 = vmatprep.subr.mxu0 %v1468
        %1518 = vmatpush2.xpose.msra.mxu0 %v1467
        %1519 = vmatprep.subr.mxu0 %v1466
        %1520 = vmatpush2.xpose.msra.mxu0 %v1465
        %1521 = vmatprep.subr.mxu0 %v1464
        %1522 = vmatpush2.xpose.msra.mxu0 %v1463
        %1523 = vmatprep.subr.mxu0 %v1462
        %1524 = vmatpush2.xpose.msra.mxu0 %v1461
        %1525 = vmatprep.subr.mxu0 %v1460
        %1526 = vmatpush2.xpose.msra.mxu0 %v1459
        %1527 = vmatprep.subr.mxu0 %v1458
        %1528 = vmatpush2.xpose.msra.mxu0 %v1457
        %1529 = vmatprep.subr.mxu0 %v1456
        %1530 = vmatpush2.xpose.msra.mxu0 %v1455
        %1531 = vmatprep.subr.mxu0 %v1454
        %1532 = vmatpush2.xpose.msra.mxu0 %v1453
        %1533 = vmatprep.subr.mxu0 %v1452
        %1534 = vmatpush2.xpose.msra.mxu0 %v1451
        %1535 = vmatprep.subr.mxu0 %v1450
        %1536 = vmatpush2.xpose.msra.mxu0 %v1449
        %1537 = vmatprep.subr.mxu0 %v1448
        %1538 = vmatpush2.xpose.msra.mxu0 %v1447
        %1539 = vmatprep.subr.mxu0 %v1446
        %1540 = vmatpush2.xpose.msra.mxu0 %v1445
        %1541 = vmatprep.mubr.f32.mxu0 %v557
        %1542 = vmatmul.mubr.f32.gmra.mxu0 %v555
        %v1543 = vpop.f32.mrf.mxu0
        %v1544 = vadd.f32 0.0, %v1543
        %v1545 = vpop.f32.mrf.mxu0
        %v1546 = vadd.f32 0.0, %v1545
        %1547 = vdwg.mxu0
        %v1548 = vmul.f32 %v513, 0.35355338
        %v1549 = vmul.f32 %v515, 0.35355338
        %1550 = vxpose.xlu0.b32.start [1/16] %v1548, 128
        %1551 = vxpose.xlu0.b32.cont [2/16] 0.0, 128
        %1552 = vxpose.xlu0.b32.cont [3/16] 0.0, 128
        %1553 = vxpose.xlu0.b32.cont [4/16] 0.0, 128
        %1554 = vxpose.xlu0.b32.cont [5/16] 0.0, 128
        %1555 = vxpose.xlu0.b32.cont [6/16] 0.0, 128
        %1556 = vxpose.xlu0.b32.cont [7/16] 0.0, 128
        %1557 = vxpose.xlu0.b32.cont [8/16] 0.0, 128
        %1558 = vxpose.xlu0.b32.cont [9/16] 0.0, 128
        %1559 = vxpose.xlu0.b32.cont [10/16] 0.0, 128
        %1560 = vxpose.xlu0.b32.cont [11/16] 0.0, 128
        %1561 = vxpose.xlu0.b32.cont [12/16] 0.0, 128
        %1562 = vxpose.xlu0.b32.cont [13/16] 0.0, 128
        %1563 = vxpose.xlu0.b32.cont [14/16] 0.0, 128
        %1564 = vxpose.xlu0.b32.cont [15/16] 0.0, 128
        %1565 = vxpose.xlu0.b32.end [16/16] 0.0, 128
        %v1566 = vpop.trf.xlu0
        %v1567 = vpop.trf.xlu0
        %v1568 = vpop.trf.xlu0
        %v1569 = vpop.trf.xlu0
        %v1570 = vpop.trf.xlu0
        %v1571 = vpop.trf.xlu0
        %v1572 = vpop.trf.xlu0
        %v1573 = vpop.trf.xlu0
        %v1574 = vpop.trf.xlu0
        %v1575 = vpop.trf.xlu0
        %v1576 = vpop.trf.xlu0
        %v1577 = vpop.trf.xlu0
        %v1578 = vpop.trf.xlu0
        %v1579 = vpop.trf.xlu0
        %v1580 = vpop.trf.xlu0
        %v1581 = vpop.trf.xlu0
        %1582 = vxpose.xlu0.b32.start [1/16] %v1549, 128
        %1583 = vxpose.xlu0.b32.cont [2/16] 0.0, 128
        %1584 = vxpose.xlu0.b32.cont [3/16] 0.0, 128
        %1585 = vxpose.xlu0.b32.cont [4/16] 0.0, 128
        %1586 = vxpose.xlu0.b32.cont [5/16] 0.0, 128
        %1587 = vxpose.xlu0.b32.cont [6/16] 0.0, 128
        %1588 = vxpose.xlu0.b32.cont [7/16] 0.0, 128
        %1589 = vxpose.xlu0.b32.cont [8/16] 0.0, 128
        %1590 = vxpose.xlu0.b32.cont [9/16] 0.0, 128
        %1591 = vxpose.xlu0.b32.cont [10/16] 0.0, 128
        %1592 = vxpose.xlu0.b32.cont [11/16] 0.0, 128
        %1593 = vxpose.xlu0.b32.cont [12/16] 0.0, 128
        %1594 = vxpose.xlu0.b32.cont [13/16] 0.0, 128
        %1595 = vxpose.xlu0.b32.cont [14/16] 0.0, 128
        %1596 = vxpose.xlu0.b32.cont [15/16] 0.0, 128
        %1597 = vxpose.xlu0.b32.end [16/16] 0.0, 128
        %v1598 = vpop.trf.xlu0
        %v1599 = vpop.trf.xlu0
        %v1600 = vpop.trf.xlu0
        %v1601 = vpop.trf.xlu0
        %v1602 = vpop.trf.xlu0
        %v1603 = vpop.trf.xlu0
        %v1604 = vpop.trf.xlu0
        %v1605 = vpop.trf.xlu0
        %v1606 = vpop.trf.xlu0
        %v1607 = vpop.trf.xlu0
        %v1608 = vpop.trf.xlu0
        %v1609 = vpop.trf.xlu0
        %v1610 = vpop.trf.xlu0
        %v1611 = vpop.trf.xlu0
        %v1612 = vpop.trf.xlu0
        %v1613 = vpop.trf.xlu0
        %v1615 = vsel %vm643, %v1566, 0
        %v1618 = vsel %vm643, %v1567, 0
        %v1621 = vsel %vm643, %v1568, 0
        %v1624 = vsel %vm643, %v1569, 0
        %v1627 = vsel %vm643, %v1570, 0
        %v1630 = vsel %vm643, %v1571, 0
        %v1633 = vsel %vm643, %v1572, 0
        %v1636 = vsel %vm643, %v1573, 0
        %v1639 = vsel %vm643, %v1574, 0
        %v1642 = vsel %vm643, %v1575, 0
        %v1645 = vsel %vm643, %v1576, 0
        %v1648 = vsel %vm643, %v1577, 0
        %v1651 = vsel %vm643, %v1578, 0
        %v1654 = vsel %vm643, %v1579, 0
        %v1657 = vsel %vm643, %v1580, 0
        %v1660 = vsel %vm643, %v1581, 0
        %v1663 = vsel %vm643, %v1598, 0
        %v1666 = vsel %vm643, %v1599, 0
        %v1669 = vsel %vm643, %v1600, 0
        %v1672 = vsel %vm643, %v1601, 0
        %v1675 = vsel %vm643, %v1602, 0
        %v1678 = vsel %vm643, %v1603, 0
        %v1681 = vsel %vm643, %v1604, 0
        %v1684 = vsel %vm643, %v1605, 0
        %v1687 = vsel %vm643, %v1606, 0
        %v1690 = vsel %vm643, %v1607, 0
        %v1693 = vsel %vm643, %v1608, 0
        %v1696 = vsel %vm643, %v1609, 0
        %v1699 = vsel %vm643, %v1610, 0
        %v1702 = vsel %vm643, %v1611, 0
        %v1705 = vsel %vm643, %v1612, 0
        %v1708 = vsel %vm643, %v1613, 0
        %1710 = vmatprep.subr.mxu0 0.0
        %1711 = vmatpush1.msra.mxu0 0.0
        %1712 = vmatprep.subr.mxu0 0.0
        %1713 = vmatpush1.msra.mxu0 0.0
        %1714 = vmatprep.subr.mxu0 0.0
        %1715 = vmatpush1.msra.mxu0 0.0
        %1716 = vmatprep.subr.mxu0 0.0
        %1717 = vmatpush1.msra.mxu0 0.0
        %1718 = vmatprep.subr.mxu0 0.0
        %1719 = vmatpush1.msra.mxu0 0.0
        %1720 = vmatprep.subr.mxu0 0.0
        %1721 = vmatpush1.msra.mxu0 0.0
        %1722 = vmatprep.subr.mxu0 0.0
        %1723 = vmatpush1.msra.mxu0 0.0
        %1724 = vmatprep.subr.mxu0 0.0
        %1725 = vmatpush1.msra.mxu0 0.0
        %1726 = vmatprep.subr.mxu0 0.0
        %1727 = vmatpush1.msra.mxu0 0.0
        %1728 = vmatprep.subr.mxu0 0.0
        %1729 = vmatpush1.msra.mxu0 0.0
        %1730 = vmatprep.subr.mxu0 0.0
        %1731 = vmatpush1.msra.mxu0 0.0
        %1732 = vmatprep.subr.mxu0 0.0
        %1733 = vmatpush1.msra.mxu0 0.0
        %1734 = vmatprep.subr.mxu0 0.0
        %1735 = vmatpush1.msra.mxu0 0.0
        %1736 = vmatprep.subr.mxu0 0.0
        %1737 = vmatpush1.msra.mxu0 0.0
        %1738 = vmatprep.subr.mxu0 0.0
        %1739 = vmatpush1.msra.mxu0 0.0
        %1740 = vmatprep.subr.mxu0 %v539
        %1741 = vmatpush1.msra.mxu0 %v537
        %1742 = vmatprep.subr.mxu0 0.0
        %1743 = vmatpush2.msra.mxu0 0.0
        %1744 = vmatprep.subr.mxu0 0.0
        %1745 = vmatpush2.msra.mxu0 0.0
        %1746 = vmatprep.subr.mxu0 0.0
        %1747 = vmatpush2.msra.mxu0 0.0
        %1748 = vmatprep.subr.mxu0 0.0
        %1749 = vmatpush2.msra.mxu0 0.0
        %1750 = vmatprep.subr.mxu0 0.0
        %1751 = vmatpush2.msra.mxu0 0.0
        %1752 = vmatprep.subr.mxu0 0.0
        %1753 = vmatpush2.msra.mxu0 0.0
        %1754 = vmatprep.subr.mxu0 0.0
        %1755 = vmatpush2.msra.mxu0 0.0
        %1756 = vmatprep.subr.mxu0 0.0
        %1757 = vmatpush2.msra.mxu0 0.0
        %1758 = vmatprep.subr.mxu0 0.0
        %1759 = vmatpush2.msra.mxu0 0.0
        %1760 = vmatprep.subr.mxu0 0.0
        %1761 = vmatpush2.msra.mxu0 0.0
        %1762 = vmatprep.subr.mxu0 0.0
        %1763 = vmatpush2.msra.mxu0 0.0
        %1764 = vmatprep.subr.mxu0 0.0
        %1765 = vmatpush2.msra.mxu0 0.0
        %1766 = vmatprep.subr.mxu0 0.0
        %1767 = vmatpush2.msra.mxu0 0.0
        %1768 = vmatprep.subr.mxu0 0.0
        %1769 = vmatpush2.msra.mxu0 0.0
        %1770 = vmatprep.subr.mxu0 0.0
        %1771 = vmatpush2.msra.mxu0 0.0
        %1772 = vmatprep.subr.mxu0 0.0
        %1773 = vmatpush2.msra.mxu0 0.0
        %1774 = vmatprep.mubr.f32.mxu0 0.0
        %1775 = vmatmul.mubr.f32.gmra.mxu0 %v1615
        %v1776 = vpop.f32.mrf.mxu0
        %v1777 = vadd.f32 0.0, %v1776
        %v1778 = vpop.f32.mrf.mxu0
        %v1779 = vadd.f32 0.0, %v1778
        %1780 = vmatprep.mubr.f32.mxu0 0.0
        %1781 = vmatmul.mubr.f32.gmra.mxu0 %v1618
        %v1782 = vpop.f32.mrf.mxu0
        %v1783 = vadd.f32 0.0, %v1782
        %v1784 = vpop.f32.mrf.mxu0
        %v1785 = vadd.f32 0.0, %v1784
        %1786 = vmatprep.mubr.f32.mxu0 0.0
        %1787 = vmatmul.mubr.f32.gmra.mxu0 %v1621
        %v1788 = vpop.f32.mrf.mxu0
        %v1789 = vadd.f32 0.0, %v1788
        %v1790 = vpop.f32.mrf.mxu0
        %v1791 = vadd.f32 0.0, %v1790
        %1792 = vmatprep.mubr.f32.mxu0 0.0
        %1793 = vmatmul.mubr.f32.gmra.mxu0 %v1624
        %v1794 = vpop.f32.mrf.mxu0
        %v1795 = vadd.f32 0.0, %v1794
        %v1796 = vpop.f32.mrf.mxu0
        %v1797 = vadd.f32 0.0, %v1796
        %1798 = vmatprep.mubr.f32.mxu0 0.0
        %1799 = vmatmul.mubr.f32.gmra.mxu0 %v1627
        %v1800 = vpop.f32.mrf.mxu0
        %v1801 = vadd.f32 0.0, %v1800
        %v1802 = vpop.f32.mrf.mxu0
        %v1803 = vadd.f32 0.0, %v1802
        %1804 = vmatprep.mubr.f32.mxu0 0.0
        %1805 = vmatmul.mubr.f32.gmra.mxu0 %v1630
        %v1806 = vpop.f32.mrf.mxu0
        %v1807 = vadd.f32 0.0, %v1806
        %v1808 = vpop.f32.mrf.mxu0
        %v1809 = vadd.f32 0.0, %v1808
        %1810 = vmatprep.mubr.f32.mxu0 0.0
        %1811 = vmatmul.mubr.f32.gmra.mxu0 %v1633
        %v1812 = vpop.f32.mrf.mxu0
        %v1813 = vadd.f32 0.0, %v1812
        %v1814 = vpop.f32.mrf.mxu0
        %v1815 = vadd.f32 0.0, %v1814
        %1816 = vmatprep.mubr.f32.mxu0 0.0
        %1817 = vmatmul.mubr.f32.gmra.mxu0 %v1636
        %v1818 = vpop.f32.mrf.mxu0
        %v1819 = vadd.f32 0.0, %v1818
        %v1820 = vpop.f32.mrf.mxu0
        %v1821 = vadd.f32 0.0, %v1820
        %1822 = vmatprep.mubr.f32.mxu0 0.0
        %1823 = vmatmul.mubr.f32.gmra.mxu0 %v1639
        %v1824 = vpop.f32.mrf.mxu0
        %v1825 = vadd.f32 0.0, %v1824
        %v1826 = vpop.f32.mrf.mxu0
        %v1827 = vadd.f32 0.0, %v1826
        %1828 = vmatprep.mubr.f32.mxu0 0.0
        %1829 = vmatmul.mubr.f32.gmra.mxu0 %v1642
        %v1830 = vpop.f32.mrf.mxu0
        %v1831 = vadd.f32 0.0, %v1830
        %v1832 = vpop.f32.mrf.mxu0
        %v1833 = vadd.f32 0.0, %v1832
        %1834 = vmatprep.mubr.f32.mxu0 0.0
        %1835 = vmatmul.mubr.f32.gmra.mxu0 %v1645
        %v1836 = vpop.f32.mrf.mxu0
        %v1837 = vadd.f32 0.0, %v1836
        %v1838 = vpop.f32.mrf.mxu0
        %v1839 = vadd.f32 0.0, %v1838
        %1840 = vmatprep.mubr.f32.mxu0 0.0
        %1841 = vmatmul.mubr.f32.gmra.mxu0 %v1648
        %v1842 = vpop.f32.mrf.mxu0
        %v1843 = vadd.f32 0.0, %v1842
        %v1844 = vpop.f32.mrf.mxu0
        %v1845 = vadd.f32 0.0, %v1844
        %1846 = vmatprep.mubr.f32.mxu0 0.0
        %1847 = vmatmul.mubr.f32.gmra.mxu0 %v1651
        %v1848 = vpop.f32.mrf.mxu0
        %v1849 = vadd.f32 0.0, %v1848
        %v1850 = vpop.f32.mrf.mxu0
        %v1851 = vadd.f32 0.0, %v1850
        %1852 = vmatprep.mubr.f32.mxu0 0.0
        %1853 = vmatmul.mubr.f32.gmra.mxu0 %v1654
        %v1854 = vpop.f32.mrf.mxu0
        %v1855 = vadd.f32 0.0, %v1854
        %v1856 = vpop.f32.mrf.mxu0
        %v1857 = vadd.f32 0.0, %v1856
        %1858 = vmatprep.mubr.f32.mxu0 0.0
        %1859 = vmatmul.mubr.f32.gmra.mxu0 %v1657
        %v1860 = vpop.f32.mrf.mxu0
        %v1861 = vadd.f32 0.0, %v1860
        %v1862 = vpop.f32.mrf.mxu0
        %v1863 = vadd.f32 0.0, %v1862
        %1864 = vmatprep.mubr.f32.mxu0 0.0
        %1865 = vmatmul.mubr.f32.gmra.mxu0 %v1660
        %v1866 = vpop.f32.mrf.mxu0
        %v1867 = vadd.f32 0.0, %v1866
        %v1868 = vpop.f32.mrf.mxu0
        %v1869 = vadd.f32 0.0, %v1868
        %1870 = vmatprep.mubr.f32.mxu0 0.0
        %1871 = vmatmul.mubr.f32.gmra.mxu0 %v1663
        %v1872 = vpop.f32.mrf.mxu0
        %v1873 = vadd.f32 0.0, %v1872
        %v1874 = vpop.f32.mrf.mxu0
        %v1875 = vadd.f32 0.0, %v1874
        %1876 = vmatprep.mubr.f32.mxu0 0.0
        %1877 = vmatmul.mubr.f32.gmra.mxu0 %v1666
        %v1878 = vpop.f32.mrf.mxu0
        %v1879 = vadd.f32 0.0, %v1878
        %v1880 = vpop.f32.mrf.mxu0
        %v1881 = vadd.f32 0.0, %v1880
        %1882 = vmatprep.mubr.f32.mxu0 0.0
        %1883 = vmatmul.mubr.f32.gmra.mxu0 %v1669
        %v1884 = vpop.f32.mrf.mxu0
        %v1885 = vadd.f32 0.0, %v1884
        %v1886 = vpop.f32.mrf.mxu0
        %v1887 = vadd.f32 0.0, %v1886
        %1888 = vmatprep.mubr.f32.mxu0 0.0
        %1889 = vmatmul.mubr.f32.gmra.mxu0 %v1672
        %v1890 = vpop.f32.mrf.mxu0
        %v1891 = vadd.f32 0.0, %v1890
        %v1892 = vpop.f32.mrf.mxu0
        %v1893 = vadd.f32 0.0, %v1892
        %1894 = vmatprep.mubr.f32.mxu0 0.0
        %1895 = vmatmul.mubr.f32.gmra.mxu0 %v1675
        %v1896 = vpop.f32.mrf.mxu0
        %v1897 = vadd.f32 0.0, %v1896
        %v1898 = vpop.f32.mrf.mxu0
        %v1899 = vadd.f32 0.0, %v1898
        %1900 = vmatprep.mubr.f32.mxu0 0.0
        %1901 = vmatmul.mubr.f32.gmra.mxu0 %v1678
        %v1902 = vpop.f32.mrf.mxu0
        %v1903 = vadd.f32 0.0, %v1902
        %v1904 = vpop.f32.mrf.mxu0
        %v1905 = vadd.f32 0.0, %v1904
        %1906 = vmatprep.mubr.f32.mxu0 0.0
        %1907 = vmatmul.mubr.f32.gmra.mxu0 %v1681
        %v1908 = vpop.f32.mrf.mxu0
        %v1909 = vadd.f32 0.0, %v1908
        %v1910 = vpop.f32.mrf.mxu0
        %v1911 = vadd.f32 0.0, %v1910
        %1912 = vmatprep.mubr.f32.mxu0 0.0
        %1913 = vmatmul.mubr.f32.gmra.mxu0 %v1684
        %v1914 = vpop.f32.mrf.mxu0
        %v1915 = vadd.f32 0.0, %v1914
        %v1916 = vpop.f32.mrf.mxu0
        %v1917 = vadd.f32 0.0, %v1916
        %1918 = vmatprep.mubr.f32.mxu0 0.0
        %1919 = vmatmul.mubr.f32.gmra.mxu0 %v1687
        %v1920 = vpop.f32.mrf.mxu0
        %v1921 = vadd.f32 0.0, %v1920
        %v1922 = vpop.f32.mrf.mxu0
        %v1923 = vadd.f32 0.0, %v1922
        %1924 = vmatprep.mubr.f32.mxu0 0.0
        %1925 = vmatmul.mubr.f32.gmra.mxu0 %v1690
        %v1926 = vpop.f32.mrf.mxu0
        %v1927 = vadd.f32 0.0, %v1926
        %v1928 = vpop.f32.mrf.mxu0
        %v1929 = vadd.f32 0.0, %v1928
        %1930 = vmatprep.mubr.f32.mxu0 0.0
        %1931 = vmatmul.mubr.f32.gmra.mxu0 %v1693
        %v1932 = vpop.f32.mrf.mxu0
        %v1933 = vadd.f32 0.0, %v1932
        %v1934 = vpop.f32.mrf.mxu0
        %v1935 = vadd.f32 0.0, %v1934
        %1936 = vmatprep.mubr.f32.mxu0 0.0
        %1937 = vmatmul.mubr.f32.gmra.mxu0 %v1696
        %v1938 = vpop.f32.mrf.mxu0
        %v1939 = vadd.f32 0.0, %v1938
        %v1940 = vpop.f32.mrf.mxu0
        %v1941 = vadd.f32 0.0, %v1940
        %1942 = vmatprep.mubr.f32.mxu0 0.0
        %1943 = vmatmul.mubr.f32.gmra.mxu0 %v1699
        %v1944 = vpop.f32.mrf.mxu0
        %v1945 = vadd.f32 0.0, %v1944
        %v1946 = vpop.f32.mrf.mxu0
        %v1947 = vadd.f32 0.0, %v1946
        %1948 = vmatprep.mubr.f32.mxu0 0.0
        %1949 = vmatmul.mubr.f32.gmra.mxu0 %v1702
        %v1950 = vpop.f32.mrf.mxu0
        %v1951 = vadd.f32 0.0, %v1950
        %v1952 = vpop.f32.mrf.mxu0
        %v1953 = vadd.f32 0.0, %v1952
        %1954 = vmatprep.mubr.f32.mxu0 0.0
        %1955 = vmatmul.mubr.f32.gmra.mxu0 %v1705
        %v1956 = vpop.f32.mrf.mxu0
        %v1957 = vadd.f32 0.0, %v1956
        %v1958 = vpop.f32.mrf.mxu0
        %v1959 = vadd.f32 0.0, %v1958
        %1960 = vmatprep.mubr.f32.mxu0 0.0
        %1961 = vmatmul.mubr.f32.gmra.mxu0 %v1708
        %v1962 = vpop.f32.mrf.mxu0
        %v1963 = vadd.f32 0.0, %v1962
        %v1964 = vpop.f32.mrf.mxu0
        %v1965 = vadd.f32 0.0, %v1964
        %1966 = vdwg.mxu0
        %v1967 = vmax.f32 %v1777, %v1779
        %1968 = vmax.xlane.f32.xlu0 %v1967
        %v1969 = vpop.xlane.xlu0 %1968
        %v1970 = vmax.f32 %v1783, %v1785
        %1971 = vmax.xlane.f32.xlu0 %v1970
        %v1972 = vpop.xlane.xlu0 %1971
        %v1973 = vmax.f32 %v1789, %v1791
        %1974 = vmax.xlane.f32.xlu0 %v1973
        %v1975 = vpop.xlane.xlu0 %1974
        %v1976 = vmax.f32 %v1795, %v1797
        %1977 = vmax.xlane.f32.xlu0 %v1976
        %v1978 = vpop.xlane.xlu0 %1977
        %v1979 = vmax.f32 %v1801, %v1803
        %1980 = vmax.xlane.f32.xlu0 %v1979
        %v1981 = vpop.xlane.xlu0 %1980
        %v1982 = vmax.f32 %v1807, %v1809
        %1983 = vmax.xlane.f32.xlu0 %v1982
        %v1984 = vpop.xlane.xlu0 %1983
        %v1985 = vmax.f32 %v1813, %v1815
        %1986 = vmax.xlane.f32.xlu0 %v1985
        %v1987 = vpop.xlane.xlu0 %1986
        %v1988 = vmax.f32 %v1819, %v1821
        %1989 = vmax.xlane.f32.xlu0 %v1988
        %v1990 = vpop.xlane.xlu0 %1989
        %v1991 = vmax.f32 %v1825, %v1827
        %1992 = vmax.xlane.f32.xlu0 %v1991
        %v1993 = vpop.xlane.xlu0 %1992
        %v1994 = vmax.f32 %v1831, %v1833
        %1995 = vmax.xlane.f32.xlu0 %v1994
        %v1996 = vpop.xlane.xlu0 %1995
        %v1997 = vmax.f32 %v1837, %v1839
        %1998 = vmax.xlane.f32.xlu0 %v1997
        %v1999 = vpop.xlane.xlu0 %1998
        %v2000 = vmax.f32 %v1843, %v1845
        %2001 = vmax.xlane.f32.xlu0 %v2000
        %v2002 = vpop.xlane.xlu0 %2001
        %v2003 = vmax.f32 %v1849, %v1851
        %2004 = vmax.xlane.f32.xlu0 %v2003
        %v2005 = vpop.xlane.xlu0 %2004
        %v2006 = vmax.f32 %v1855, %v1857
        %2007 = vmax.xlane.f32.xlu0 %v2006
        %v2008 = vpop.xlane.xlu0 %2007
        %v2009 = vmax.f32 %v1861, %v1863
        %2010 = vmax.xlane.f32.xlu0 %v2009
        %v2011 = vpop.xlane.xlu0 %2010
        %v2012 = vmax.f32 %v1867, %v1869
        %2013 = vmax.xlane.f32.xlu0 %v2012
        %v2014 = vpop.xlane.xlu0 %2013
        %v2015 = vmax.f32 %v1873, %v1875
        %2016 = vmax.xlane.f32.xlu0 %v2015
        %v2017 = vpop.xlane.xlu0 %2016
        %v2018 = vmax.f32 %v1879, %v1881
        %2019 = vmax.xlane.f32.xlu0 %v2018
        %v2020 = vpop.xlane.xlu0 %2019
        %v2021 = vmax.f32 %v1885, %v1887
        %2022 = vmax.xlane.f32.xlu0 %v2021
        %v2023 = vpop.xlane.xlu0 %2022
        %v2024 = vmax.f32 %v1891, %v1893
        %2025 = vmax.xlane.f32.xlu0 %v2024
        %v2026 = vpop.xlane.xlu0 %2025
        %v2027 = vmax.f32 %v1897, %v1899
        %2028 = vmax.xlane.f32.xlu0 %v2027
        %v2029 = vpop.xlane.xlu0 %2028
        %v2030 = vmax.f32 %v1903, %v1905
        %2031 = vmax.xlane.f32.xlu0 %v2030
        %v2032 = vpop.xlane.xlu0 %2031
        %v2033 = vmax.f32 %v1909, %v1911
        %2034 = vmax.xlane.f32.xlu0 %v2033
        %v2035 = vpop.xlane.xlu0 %2034
        %v2036 = vmax.f32 %v1915, %v1917
        %2037 = vmax.xlane.f32.xlu0 %v2036
        %v2038 = vpop.xlane.xlu0 %2037
        %v2039 = vmax.f32 %v1921, %v1923
        %2040 = vmax.xlane.f32.xlu0 %v2039
        %v2041 = vpop.xlane.xlu0 %2040
        %v2042 = vmax.f32 %v1927, %v1929
        %2043 = vmax.xlane.f32.xlu0 %v2042
        %v2044 = vpop.xlane.xlu0 %2043
        %v2045 = vmax.f32 %v1933, %v1935
        %2046 = vmax.xlane.f32.xlu0 %v2045
        %v2047 = vpop.xlane.xlu0 %2046
        %v2048 = vmax.f32 %v1939, %v1941
        %2049 = vmax.xlane.f32.xlu0 %v2048
        %v2050 = vpop.xlane.xlu0 %2049
        %v2051 = vmax.f32 %v1945, %v1947
        %2052 = vmax.xlane.f32.xlu0 %v2051
        %v2053 = vpop.xlane.xlu0 %2052
        %v2054 = vmax.f32 %v1951, %v1953
        %2055 = vmax.xlane.f32.xlu0 %v2054
        %v2056 = vpop.xlane.xlu0 %2055
        %v2057 = vmax.f32 %v1957, %v1959
        %2058 = vmax.xlane.f32.xlu0 %v2057
        %v2059 = vpop.xlane.xlu0 %2058
        %v2060 = vmax.f32 %v1963, %v1965
        %2061 = vmax.xlane.f32.xlu0 %v2060
        %v2062 = vpop.xlane.xlu0 %2061
        %v2063 = vsub.f32 %v1777, %v1969
        %v2064 = vsub.f32 %v1779, %v1969
        %v2065 = vsub.f32 %v1783, %v1972
        %v2066 = vsub.f32 %v1785, %v1972
        %v2067 = vsub.f32 %v1789, %v1975
        %v2068 = vsub.f32 %v1791, %v1975
        %v2069 = vsub.f32 %v1795, %v1978
        %v2070 = vsub.f32 %v1797, %v1978
        %v2071 = vsub.f32 %v1801, %v1981
        %v2072 = vsub.f32 %v1803, %v1981
        %v2073 = vsub.f32 %v1807, %v1984
        %v2074 = vsub.f32 %v1809, %v1984
        %v2075 = vsub.f32 %v1813, %v1987
        %v2076 = vsub.f32 %v1815, %v1987
        %v2077 = vsub.f32 %v1819, %v1990
        %v2078 = vsub.f32 %v1821, %v1990
        %v2079 = vsub.f32 %v1825, %v1993
        %v2080 = vsub.f32 %v1827, %v1993
        %v2081 = vsub.f32 %v1831, %v1996
        %v2082 = vsub.f32 %v1833, %v1996
        %v2083 = vsub.f32 %v1837, %v1999
        %v2084 = vsub.f32 %v1839, %v1999
        %v2085 = vsub.f32 %v1843, %v2002
        %v2086 = vsub.f32 %v1845, %v2002
        %v2087 = vsub.f32 %v1849, %v2005
        %v2088 = vsub.f32 %v1851, %v2005
        %v2089 = vsub.f32 %v1855, %v2008
        %v2090 = vsub.f32 %v1857, %v2008
        %v2091 = vsub.f32 %v1861, %v2011
        %v2092 = vsub.f32 %v1863, %v2011
        %v2093 = vsub.f32 %v1867, %v2014
        %v2094 = vsub.f32 %v1869, %v2014
        %v2095 = vsub.f32 %v1873, %v2017
        %v2096 = vsub.f32 %v1875, %v2017
        %v2097 = vsub.f32 %v1879, %v2020
        %v2098 = vsub.f32 %v1881, %v2020
        %v2099 = vsub.f32 %v1885, %v2023
        %v2100 = vsub.f32 %v1887, %v2023
        %v2101 = vsub.f32 %v1891, %v2026
        %v2102 = vsub.f32 %v1893, %v2026
        %v2103 = vsub.f32 %v1897, %v2029
        %v2104 = vsub.f32 %v1899, %v2029
        %v2105 = vsub.f32 %v1903, %v2032
        %v2106 = vsub.f32 %v1905, %v2032
        %v2107 = vsub.f32 %v1909, %v2035
        %v2108 = vsub.f32 %v1911, %v2035
        %v2109 = vsub.f32 %v1915, %v2038
        %v2110 = vsub.f32 %v1917, %v2038
        %v2111 = vsub.f32 %v1921, %v2041
        %v2112 = vsub.f32 %v1923, %v2041
        %v2113 = vsub.f32 %v1927, %v2044
        %v2114 = vsub.f32 %v1929, %v2044
        %v2115 = vsub.f32 %v1933, %v2047
        %v2116 = vsub.f32 %v1935, %v2047
        %v2117 = vsub.f32 %v1939, %v2050
        %v2118 = vsub.f32 %v1941, %v2050
        %v2119 = vsub.f32 %v1945, %v2053
        %v2120 = vsub.f32 %v1947, %v2053
        %v2121 = vsub.f32 %v1951, %v2056
        %v2122 = vsub.f32 %v1953, %v2056
        %v2123 = vsub.f32 %v1957, %v2059
        %v2124 = vsub.f32 %v1959, %v2059
        %v2125 = vsub.f32 %v1963, %v2062
        %v2126 = vsub.f32 %v1965, %v2062
        %v2127 = vmul.f32 %v2063, 1.442695
        %v2128 = vpow.pop %v2127
        %v2129 = vmul.f32 %v2064, 1.442695
        %v2130 = vpow.pop %v2129
        %v2131 = vmul.f32 %v2065, 1.442695
        %v2132 = vpow.pop %v2131
        %v2133 = vmul.f32 %v2066, 1.442695
        %v2134 = vpow.pop %v2133
        %v2135 = vmul.f32 %v2067, 1.442695
        %v2136 = vpow.pop %v2135
        %v2137 = vmul.f32 %v2068, 1.442695
        %v2138 = vpow.pop %v2137
        %v2139 = vmul.f32 %v2069, 1.442695
        %v2140 = vpow.pop %v2139
        %v2141 = vmul.f32 %v2070, 1.442695
        %v2142 = vpow.pop %v2141
        %v2143 = vmul.f32 %v2071, 1.442695
        %v2144 = vpow.pop %v2143
        %v2145 = vmul.f32 %v2072, 1.442695
        %v2146 = vpow.pop %v2145
        %v2147 = vmul.f32 %v2073, 1.442695
        %v2148 = vpow.pop %v2147
        %v2149 = vmul.f32 %v2074, 1.442695
        %v2150 = vpow.pop %v2149
        %v2151 = vmul.f32 %v2075, 1.442695
        %v2152 = vpow.pop %v2151
        %v2153 = vmul.f32 %v2076, 1.442695
        %v2154 = vpow.pop %v2153
        %v2155 = vmul.f32 %v2077, 1.442695
        %v2156 = vpow.pop %v2155
        %v2157 = vmul.f32 %v2078, 1.442695
        %v2158 = vpow.pop %v2157
        %v2159 = vmul.f32 %v2079, 1.442695
        %v2160 = vpow.pop %v2159
        %v2161 = vmul.f32 %v2080, 1.442695
        %v2162 = vpow.pop %v2161
        %v2163 = vmul.f32 %v2081, 1.442695
        %v2164 = vpow.pop %v2163
        %v2165 = vmul.f32 %v2082, 1.442695
        %v2166 = vpow.pop %v2165
        %v2167 = vmul.f32 %v2083, 1.442695
        %v2168 = vpow.pop %v2167
        %v2169 = vmul.f32 %v2084, 1.442695
        %v2170 = vpow.pop %v2169
        %v2171 = vmul.f32 %v2085, 1.442695
        %v2172 = vpow.pop %v2171
        %v2173 = vmul.f32 %v2086, 1.442695
        %v2174 = vpow.pop %v2173
        %v2175 = vmul.f32 %v2087, 1.442695
        %v2176 = vpow.pop %v2175
        %v2177 = vmul.f32 %v2088, 1.442695
        %v2178 = vpow.pop %v2177
        %v2179 = vmul.f32 %v2089, 1.442695
        %v2180 = vpow.pop %v2179
        %v2181 = vmul.f32 %v2090, 1.442695
        %v2182 = vpow.pop %v2181
        %v2183 = vmul.f32 %v2091, 1.442695
        %v2184 = vpow.pop %v2183
        %v2185 = vmul.f32 %v2092, 1.442695
        %v2186 = vpow.pop %v2185
        %v2187 = vmul.f32 %v2093, 1.442695
        %v2188 = vpow.pop %v2187
        %v2189 = vmul.f32 %v2094, 1.442695
        %v2190 = vpow.pop %v2189
        %v2191 = vmul.f32 %v2095, 1.442695
        %v2192 = vpow.pop %v2191
        %v2193 = vmul.f32 %v2096, 1.442695
        %v2194 = vpow.pop %v2193
        %v2195 = vmul.f32 %v2097, 1.442695
        %v2196 = vpow.pop %v2195
        %v2197 = vmul.f32 %v2098, 1.442695
        %v2198 = vpow.pop %v2197
        %v2199 = vmul.f32 %v2099, 1.442695
        %v2200 = vpow.pop %v2199
        %v2201 = vmul.f32 %v2100, 1.442695
        %v2202 = vpow.pop %v2201
        %v2203 = vmul.f32 %v2101, 1.442695
        %v2204 = vpow.pop %v2203
        %v2205 = vmul.f32 %v2102, 1.442695
        %v2206 = vpow.pop %v2205
        %v2207 = vmul.f32 %v2103, 1.442695
        %v2208 = vpow.pop %v2207
        %v2209 = vmul.f32 %v2104, 1.442695
        %v2210 = vpow.pop %v2209
        %v2211 = vmul.f32 %v2105, 1.442695
        %v2212 = vpow.pop %v2211
        %v2213 = vmul.f32 %v2106, 1.442695
        %v2214 = vpow.pop %v2213
        %v2215 = vmul.f32 %v2107, 1.442695
        %v2216 = vpow.pop %v2215
        %v2217 = vmul.f32 %v2108, 1.442695
        %v2218 = vpow.pop %v2217
        %v2219 = vmul.f32 %v2109, 1.442695
        %v2220 = vpow.pop %v2219
        %v2221 = vmul.f32 %v2110, 1.442695
        %v2222 = vpow.pop %v2221
        %v2223 = vmul.f32 %v2111, 1.442695
        %v2224 = vpow.pop %v2223
        %v2225 = vmul.f32 %v2112, 1.442695
        %v2226 = vpow.pop %v2225
        %v2227 = vmul.f32 %v2113, 1.442695
        %v2228 = vpow.pop %v2227
        %v2229 = vmul.f32 %v2114, 1.442695
        %v2230 = vpow.pop %v2229
        %v2231 = vmul.f32 %v2115, 1.442695
        %v2232 = vpow.pop %v2231
        %v2233 = vmul.f32 %v2116, 1.442695
        %v2234 = vpow.pop %v2233
        %v2235 = vmul.f32 %v2117, 1.442695
        %v2236 = vpow.pop %v2235
        %v2237 = vmul.f32 %v2118, 1.442695
        %v2238 = vpow.pop %v2237
        %v2239 = vmul.f32 %v2119, 1.442695
        %v2240 = vpow.pop %v2239
        %v2241 = vmul.f32 %v2120, 1.442695
        %v2242 = vpow.pop %v2241
        %v2243 = vmul.f32 %v2121, 1.442695
        %v2244 = vpow.pop %v2243
        %v2245 = vmul.f32 %v2122, 1.442695
        %v2246 = vpow.pop %v2245
        %v2247 = vmul.f32 %v2123, 1.442695
        %v2248 = vpow.pop %v2247
        %v2249 = vmul.f32 %v2124, 1.442695
        %v2250 = vpow.pop %v2249
        %v2251 = vmul.f32 %v2125, 1.442695
        %v2252 = vpow.pop %v2251
        %v2253 = vmul.f32 %v2126, 1.442695
        %v2254 = vpow.pop %v2253
        %v2255 = vadd.f32 %v2128, %v2130
        %2256 = vadd.xlane.f32.xlu0 %v2255
        %v2257 = vpop.xlane.xlu0 %2256
        %v2258 = vadd.f32 %v2132, %v2134
        %2259 = vadd.xlane.f32.xlu0 %v2258
        %v2260 = vpop.xlane.xlu0 %2259
        %v2261 = vadd.f32 %v2136, %v2138
        %2262 = vadd.xlane.f32.xlu0 %v2261
        %v2263 = vpop.xlane.xlu0 %2262
        %v2264 = vadd.f32 %v2140, %v2142
        %2265 = vadd.xlane.f32.xlu0 %v2264
        %v2266 = vpop.xlane.xlu0 %2265
        %v2267 = vadd.f32 %v2144, %v2146
        %2268 = vadd.xlane.f32.xlu0 %v2267
        %v2269 = vpop.xlane.xlu0 %2268
        %v2270 = vadd.f32 %v2148, %v2150
        %2271 = vadd.xlane.f32.xlu0 %v2270
        %v2272 = vpop.xlane.xlu0 %2271
        %v2273 = vadd.f32 %v2152, %v2154
        %2274 = vadd.xlane.f32.xlu0 %v2273
        %v2275 = vpop.xlane.xlu0 %2274
        %v2276 = vadd.f32 %v2156, %v2158
        %2277 = vadd.xlane.f32.xlu0 %v2276
        %v2278 = vpop.xlane.xlu0 %2277
        %v2279 = vadd.f32 %v2160, %v2162
        %2280 = vadd.xlane.f32.xlu0 %v2279
        %v2281 = vpop.xlane.xlu0 %2280
        %v2282 = vadd.f32 %v2164, %v2166
        %2283 = vadd.xlane.f32.xlu0 %v2282
        %v2284 = vpop.xlane.xlu0 %2283
        %v2285 = vadd.f32 %v2168, %v2170
        %2286 = vadd.xlane.f32.xlu0 %v2285
        %v2287 = vpop.xlane.xlu0 %2286
        %v2288 = vadd.f32 %v2172, %v2174
        %2289 = vadd.xlane.f32.xlu0 %v2288
        %v2290 = vpop.xlane.xlu0 %2289
        %v2291 = vadd.f32 %v2176, %v2178
        %2292 = vadd.xlane.f32.xlu0 %v2291
        %v2293 = vpop.xlane.xlu0 %2292
        %v2294 = vadd.f32 %v2180, %v2182
        %2295 = vadd.xlane.f32.xlu0 %v2294
        %v2296 = vpop.xlane.xlu0 %2295
        %v2297 = vadd.f32 %v2184, %v2186
        %2298 = vadd.xlane.f32.xlu0 %v2297
        %v2299 = vpop.xlane.xlu0 %2298
        %v2300 = vadd.f32 %v2188, %v2190
        %2301 = vadd.xlane.f32.xlu0 %v2300
        %v2302 = vpop.xlane.xlu0 %2301
        %v2303 = vadd.f32 %v2192, %v2194
        %2304 = vadd.xlane.f32.xlu0 %v2303
        %v2305 = vpop.xlane.xlu0 %2304
        %v2306 = vadd.f32 %v2196, %v2198
        %2307 = vadd.xlane.f32.xlu0 %v2306
        %v2308 = vpop.xlane.xlu0 %2307
        %v2309 = vadd.f32 %v2200, %v2202
        %2310 = vadd.xlane.f32.xlu0 %v2309
        %v2311 = vpop.xlane.xlu0 %2310
        %v2312 = vadd.f32 %v2204, %v2206
        %2313 = vadd.xlane.f32.xlu0 %v2312
        %v2314 = vpop.xlane.xlu0 %2313
        %v2315 = vadd.f32 %v2208, %v2210
        %2316 = vadd.xlane.f32.xlu0 %v2315
        %v2317 = vpop.xlane.xlu0 %2316
        %v2318 = vadd.f32 %v2212, %v2214
        %2319 = vadd.xlane.f32.xlu0 %v2318
        %v2320 = vpop.xlane.xlu0 %2319
        %v2321 = vadd.f32 %v2216, %v2218
        %2322 = vadd.xlane.f32.xlu0 %v2321
        %v2323 = vpop.xlane.xlu0 %2322
        %v2324 = vadd.f32 %v2220, %v2222
        %2325 = vadd.xlane.f32.xlu0 %v2324
        %v2326 = vpop.xlane.xlu0 %2325
        %v2327 = vadd.f32 %v2224, %v2226
        %2328 = vadd.xlane.f32.xlu0 %v2327
        %v2329 = vpop.xlane.xlu0 %2328
        %v2330 = vadd.f32 %v2228, %v2230
        %2331 = vadd.xlane.f32.xlu0 %v2330
        %v2332 = vpop.xlane.xlu0 %2331
        %v2333 = vadd.f32 %v2232, %v2234
        %2334 = vadd.xlane.f32.xlu0 %v2333
        %v2335 = vpop.xlane.xlu0 %2334
        %v2336 = vadd.f32 %v2236, %v2238
        %2337 = vadd.xlane.f32.xlu0 %v2336
        %v2338 = vpop.xlane.xlu0 %2337
        %v2339 = vadd.f32 %v2240, %v2242
        %2340 = vadd.xlane.f32.xlu0 %v2339
        %v2341 = vpop.xlane.xlu0 %2340
        %v2342 = vadd.f32 %v2244, %v2246
        %2343 = vadd.xlane.f32.xlu0 %v2342
        %v2344 = vpop.xlane.xlu0 %2343
        %v2345 = vadd.f32 %v2248, %v2250
        %2346 = vadd.xlane.f32.xlu0 %v2345
        %v2347 = vpop.xlane.xlu0 %2346
        %v2348 = vadd.f32 %v2252, %v2254
        %2349 = vadd.xlane.f32.xlu0 %v2348
        %v2350 = vpop.xlane.xlu0 %2349
        %v2351 = vrcp.pop %v2257
        %v2352 = vrcp.pop %v2260
        %v2353 = vrcp.pop %v2263
        %v2354 = vrcp.pop %v2266
        %v2355 = vrcp.pop %v2269
        %v2356 = vrcp.pop %v2272
        %v2357 = vrcp.pop %v2275
        %v2358 = vrcp.pop %v2278
        %v2359 = vrcp.pop %v2281
        %v2360 = vrcp.pop %v2284
        %v2361 = vrcp.pop %v2287
        %v2362 = vrcp.pop %v2290
        %v2363 = vrcp.pop %v2293
        %v2364 = vrcp.pop %v2296
        %v2365 = vrcp.pop %v2299
        %v2366 = vrcp.pop %v2302
        %v2367 = vrcp.pop %v2305
        %v2368 = vrcp.pop %v2308
        %v2369 = vrcp.pop %v2311
        %v2370 = vrcp.pop %v2314
        %v2371 = vrcp.pop %v2317
        %v2372 = vrcp.pop %v2320
        %v2373 = vrcp.pop %v2323
        %v2374 = vrcp.pop %v2326
        %v2375 = vrcp.pop %v2329
        %v2376 = vrcp.pop %v2332
        %v2377 = vrcp.pop %v2335
        %v2378 = vrcp.pop %v2338
        %v2379 = vrcp.pop %v2341
        %v2380 = vrcp.pop %v2344
        %v2381 = vrcp.pop %v2347
        %v2382 = vrcp.pop %v2350
        %v2383 = vmul.f32 %v2128, %v2351
        %v2384 = vmul.f32 %v2130, %v2351
        %v2385 = vmul.f32 %v2132, %v2352
        %v2386 = vmul.f32 %v2134, %v2352
        %v2387 = vmul.f32 %v2136, %v2353
        %v2388 = vmul.f32 %v2138, %v2353
        %v2389 = vmul.f32 %v2140, %v2354
        %v2390 = vmul.f32 %v2142, %v2354
        %v2391 = vmul.f32 %v2144, %v2355
        %v2392 = vmul.f32 %v2146, %v2355
        %v2393 = vmul.f32 %v2148, %v2356
        %v2394 = vmul.f32 %v2150, %v2356
        %v2395 = vmul.f32 %v2152, %v2357
        %v2396 = vmul.f32 %v2154, %v2357
        %v2397 = vmul.f32 %v2156, %v2358
        %v2398 = vmul.f32 %v2158, %v2358
        %v2399 = vmul.f32 %v2160, %v2359
        %v2400 = vmul.f32 %v2162, %v2359
        %v2401 = vmul.f32 %v2164, %v2360
        %v2402 = vmul.f32 %v2166, %v2360
        %v2403 = vmul.f32 %v2168, %v2361
        %v2404 = vmul.f32 %v2170, %v2361
        %v2405 = vmul.f32 %v2172, %v2362
        %v2406 = vmul.f32 %v2174, %v2362
        %v2407 = vmul.f32 %v2176, %v2363
        %v2408 = vmul.f32 %v2178, %v2363
        %v2409 = vmul.f32 %v2180, %v2364
        %v2410 = vmul.f32 %v2182, %v2364
        %v2411 = vmul.f32 %v2184, %v2365
        %v2412 = vmul.f32 %v2186, %v2365
        %v2413 = vmul.f32 %v2188, %v2366
        %v2414 = vmul.f32 %v2190, %v2366
        %v2415 = vmul.f32 %v2192, %v2367
        %v2416 = vmul.f32 %v2194, %v2367
        %v2417 = vmul.f32 %v2196, %v2368
        %v2418 = vmul.f32 %v2198, %v2368
        %v2419 = vmul.f32 %v2200, %v2369
        %v2420 = vmul.f32 %v2202, %v2369
        %v2421 = vmul.f32 %v2204, %v2370
        %v2422 = vmul.f32 %v2206, %v2370
        %v2423 = vmul.f32 %v2208, %v2371
        %v2424 = vmul.f32 %v2210, %v2371
        %v2425 = vmul.f32 %v2212, %v2372
        %v2426 = vmul.f32 %v2214, %v2372
        %v2427 = vmul.f32 %v2216, %v2373
        %v2428 = vmul.f32 %v2218, %v2373
        %v2429 = vmul.f32 %v2220, %v2374
        %v2430 = vmul.f32 %v2222, %v2374
        %v2431 = vmul.f32 %v2224, %v2375
        %v2432 = vmul.f32 %v2226, %v2375
        %v2433 = vmul.f32 %v2228, %v2376
        %v2434 = vmul.f32 %v2230, %v2376
        %v2435 = vmul.f32 %v2232, %v2377
        %v2436 = vmul.f32 %v2234, %v2377
        %v2437 = vmul.f32 %v2236, %v2378
        %v2438 = vmul.f32 %v2238, %v2378
        %v2439 = vmul.f32 %v2240, %v2379
        %v2440 = vmul.f32 %v2242, %v2379
        %v2441 = vmul.f32 %v2244, %v2380
        %v2442 = vmul.f32 %v2246, %v2380
        %v2443 = vmul.f32 %v2248, %v2381
        %v2444 = vmul.f32 %v2250, %v2381
        %v2445 = vmul.f32 %v2252, %v2382
        %v2446 = vmul.f32 %v2254, %v2382
        %2447 = vmatprep.subr.mxu0 %v2414
        %2448 = vmatpush1.xpose.msra.mxu0 %v2413
        %2449 = vmatprep.subr.mxu0 %v2412
        %2450 = vmatpush1.xpose.msra.mxu0 %v2411
        %2451 = vmatprep.subr.mxu0 %v2410
        %2452 = vmatpush1.xpose.msra.mxu0 %v2409
        %2453 = vmatprep.subr.mxu0 %v2408
        %2454 = vmatpush1.xpose.msra.mxu0 %v2407
        %2455 = vmatprep.subr.mxu0 %v2406
        %2456 = vmatpush1.xpose.msra.mxu0 %v2405
        %2457 = vmatprep.subr.mxu0 %v2404
        %2458 = vmatpush1.xpose.msra.mxu0 %v2403
        %2459 = vmatprep.subr.mxu0 %v2402
        %2460 = vmatpush1.xpose.msra.mxu0 %v2401
        %2461 = vmatprep.subr.mxu0 %v2400
        %2462 = vmatpush1.xpose.msra.mxu0 %v2399
        %2463 = vmatprep.subr.mxu0 %v2398
        %2464 = vmatpush1.xpose.msra.mxu0 %v2397
        %2465 = vmatprep.subr.mxu0 %v2396
        %2466 = vmatpush1.xpose.msra.mxu0 %v2395
        %2467 = vmatprep.subr.mxu0 %v2394
        %2468 = vmatpush1.xpose.msra.mxu0 %v2393
        %2469 = vmatprep.subr.mxu0 %v2392
        %2470 = vmatpush1.xpose.msra.mxu0 %v2391
        %2471 = vmatprep.subr.mxu0 %v2390
        %2472 = vmatpush1.xpose.msra.mxu0 %v2389
        %2473 = vmatprep.subr.mxu0 %v2388
        %2474 = vmatpush1.xpose.msra.mxu0 %v2387
        %2475 = vmatprep.subr.mxu0 %v2386
        %2476 = vmatpush1.xpose.msra.mxu0 %v2385
        %2477 = vmatprep.subr.mxu0 %v2384
        %2478 = vmatpush1.xpose.msra.mxu0 %v2383
        %2479 = vmatprep.subr.mxu0 %v2446
        %2480 = vmatpush2.xpose.msra.mxu0 %v2445
        %2481 = vmatprep.subr.mxu0 %v2444
        %2482 = vmatpush2.xpose.msra.mxu0 %v2443
        %2483 = vmatprep.subr.mxu0 %v2442
        %2484 = vmatpush2.xpose.msra.mxu0 %v2441
        %2485 = vmatprep.subr.mxu0 %v2440
        %2486 = vmatpush2.xpose.msra.mxu0 %v2439
        %2487 = vmatprep.subr.mxu0 %v2438
        %2488 = vmatpush2.xpose.msra.mxu0 %v2437
        %2489 = vmatprep.subr.mxu0 %v2436
        %2490 = vmatpush2.xpose.msra.mxu0 %v2435
        %2491 = vmatprep.subr.mxu0 %v2434
        %2492 = vmatpush2.xpose.msra.mxu0 %v2433
        %2493 = vmatprep.subr.mxu0 %v2432
        %2494 = vmatpush2.xpose.msra.mxu0 %v2431
        %2495 = vmatprep.subr.mxu0 %v2430
        %2496 = vmatpush2.xpose.msra.mxu0 %v2429
        %2497 = vmatprep.subr.mxu0 %v2428
        %2498 = vmatpush2.xpose.msra.mxu0 %v2427
        %2499 = vmatprep.subr.mxu0 %v2426
        %2500 = vmatpush2.xpose.msra.mxu0 %v2425
        %2501 = vmatprep.subr.mxu0 %v2424
        %2502 = vmatpush2.xpose.msra.mxu0 %v2423
        %2503 = vmatprep.subr.mxu0 %v2422
        %2504 = vmatpush2.xpose.msra.mxu0 %v2421
        %2505 = vmatprep.subr.mxu0 %v2420
        %2506 = vmatpush2.xpose.msra.mxu0 %v2419
        %2507 = vmatprep.subr.mxu0 %v2418
        %2508 = vmatpush2.xpose.msra.mxu0 %v2417
        %2509 = vmatprep.subr.mxu0 %v2416
        %2510 = vmatpush2.xpose.msra.mxu0 %v2415
        %2511 = vmatprep.mubr.f32.mxu0 %v563
        %2512 = vmatmul.mubr.f32.gmra.mxu0 %v561
        %v2513 = vpop.f32.mrf.mxu0
        %v2514 = vadd.f32 0.0, %v2513
        %v2515 = vpop.f32.mrf.mxu0
        %v2516 = vadd.f32 0.0, %v2515
        %2517 = vdwg.mxu0
        %v2518 = vmul.f32 %v519, 0.35355338
        %v2519 = vmul.f32 %v521, 0.35355338
        %2520 = vxpose.xlu0.b32.start [1/16] %v2518, 128
        %2521 = vxpose.xlu0.b32.cont [2/16] 0.0, 128
        %2522 = vxpose.xlu0.b32.cont [3/16] 0.0, 128
        %2523 = vxpose.xlu0.b32.cont [4/16] 0.0, 128
        %2524 = vxpose.xlu0.b32.cont [5/16] 0.0, 128
        %2525 = vxpose.xlu0.b32.cont [6/16] 0.0, 128
        %2526 = vxpose.xlu0.b32.cont [7/16] 0.0, 128
        %2527 = vxpose.xlu0.b32.cont [8/16] 0.0, 128
        %2528 = vxpose.xlu0.b32.cont [9/16] 0.0, 128
        %2529 = vxpose.xlu0.b32.cont [10/16] 0.0, 128
        %2530 = vxpose.xlu0.b32.cont [11/16] 0.0, 128
        %2531 = vxpose.xlu0.b32.cont [12/16] 0.0, 128
        %2532 = vxpose.xlu0.b32.cont [13/16] 0.0, 128
        %2533 = vxpose.xlu0.b32.cont [14/16] 0.0, 128
        %2534 = vxpose.xlu0.b32.cont [15/16] 0.0, 128
        %2535 = vxpose.xlu0.b32.end [16/16] 0.0, 128
        %v2536 = vpop.trf.xlu0
        %v2537 = vpop.trf.xlu0
        %v2538 = vpop.trf.xlu0
        %v2539 = vpop.trf.xlu0
        %v2540 = vpop.trf.xlu0
        %v2541 = vpop.trf.xlu0
        %v2542 = vpop.trf.xlu0
        %v2543 = vpop.trf.xlu0
        %v2544 = vpop.trf.xlu0
        %v2545 = vpop.trf.xlu0
        %v2546 = vpop.trf.xlu0
        %v2547 = vpop.trf.xlu0
        %v2548 = vpop.trf.xlu0
        %v2549 = vpop.trf.xlu0
        %v2550 = vpop.trf.xlu0
        %v2551 = vpop.trf.xlu0
        %2552 = vxpose.xlu0.b32.start [1/16] %v2519, 128
        %2553 = vxpose.xlu0.b32.cont [2/16] 0.0, 128
        %2554 = vxpose.xlu0.b32.cont [3/16] 0.0, 128
        %2555 = vxpose.xlu0.b32.cont [4/16] 0.0, 128
        %2556 = vxpose.xlu0.b32.cont [5/16] 0.0, 128
        %2557 = vxpose.xlu0.b32.cont [6/16] 0.0, 128
        %2558 = vxpose.xlu0.b32.cont [7/16] 0.0, 128
        %2559 = vxpose.xlu0.b32.cont [8/16] 0.0, 128
        %2560 = vxpose.xlu0.b32.cont [9/16] 0.0, 128
        %2561 = vxpose.xlu0.b32.cont [10/16] 0.0, 128
        %2562 = vxpose.xlu0.b32.cont [11/16] 0.0, 128
        %2563 = vxpose.xlu0.b32.cont [12/16] 0.0, 128
        %2564 = vxpose.xlu0.b32.cont [13/16] 0.0, 128
        %2565 = vxpose.xlu0.b32.cont [14/16] 0.0, 128
        %2566 = vxpose.xlu0.b32.cont [15/16] 0.0, 128
        %2567 = vxpose.xlu0.b32.end [16/16] 0.0, 128
        %v2568 = vpop.trf.xlu0
        %v2569 = vpop.trf.xlu0
        %v2570 = vpop.trf.xlu0
        %v2571 = vpop.trf.xlu0
        %v2572 = vpop.trf.xlu0
        %v2573 = vpop.trf.xlu0
        %v2574 = vpop.trf.xlu0
        %v2575 = vpop.trf.xlu0
        %v2576 = vpop.trf.xlu0
        %v2577 = vpop.trf.xlu0
        %v2578 = vpop.trf.xlu0
        %v2579 = vpop.trf.xlu0
        %v2580 = vpop.trf.xlu0
        %v2581 = vpop.trf.xlu0
        %v2582 = vpop.trf.xlu0
        %v2583 = vpop.trf.xlu0
        %v2585 = vsel %vm643, %v2536, 0
        %v2588 = vsel %vm643, %v2537, 0
        %v2591 = vsel %vm643, %v2538, 0
        %v2594 = vsel %vm643, %v2539, 0
        %v2597 = vsel %vm643, %v2540, 0
        %v2600 = vsel %vm643, %v2541, 0
        %v2603 = vsel %vm643, %v2542, 0
        %v2606 = vsel %vm643, %v2543, 0
        %v2609 = vsel %vm643, %v2544, 0
        %v2612 = vsel %vm643, %v2545, 0
        %v2615 = vsel %vm643, %v2546, 0
        %v2618 = vsel %vm643, %v2547, 0
        %v2621 = vsel %vm643, %v2548, 0
        %v2624 = vsel %vm643, %v2549, 0
        %v2627 = vsel %vm643, %v2550, 0
        %v2630 = vsel %vm643, %v2551, 0
        %v2633 = vsel %vm643, %v2568, 0
        %v2636 = vsel %vm643, %v2569, 0
        %v2639 = vsel %vm643, %v2570, 0
        %v2642 = vsel %vm643, %v2571, 0
        %v2645 = vsel %vm643, %v2572, 0
        %v2648 = vsel %vm643, %v2573, 0
        %v2651 = vsel %vm643, %v2574, 0
        %v2654 = vsel %vm643, %v2575, 0
        %v2657 = vsel %vm643, %v2576, 0
        %v2660 = vsel %vm643, %v2577, 0
        %v2663 = vsel %vm643, %v2578, 0
        %v2666 = vsel %vm643, %v2579, 0
        %v2669 = vsel %vm643, %v2580, 0
        %v2672 = vsel %vm643, %v2581, 0
        %v2675 = vsel %vm643, %v2582, 0
        %v2678 = vsel %vm643, %v2583, 0
        %2680 = vmatprep.subr.mxu0 0.0
        %2681 = vmatpush1.msra.mxu0 0.0
        %2682 = vmatprep.subr.mxu0 0.0
        %2683 = vmatpush1.msra.mxu0 0.0
        %2684 = vmatprep.subr.mxu0 0.0
        %2685 = vmatpush1.msra.mxu0 0.0
        %2686 = vmatprep.subr.mxu0 0.0
        %2687 = vmatpush1.msra.mxu0 0.0
        %2688 = vmatprep.subr.mxu0 0.0
        %2689 = vmatpush1.msra.mxu0 0.0
        %2690 = vmatprep.subr.mxu0 0.0
        %2691 = vmatpush1.msra.mxu0 0.0
        %2692 = vmatprep.subr.mxu0 0.0
        %2693 = vmatpush1.msra.mxu0 0.0
        %2694 = vmatprep.subr.mxu0 0.0
        %2695 = vmatpush1.msra.mxu0 0.0
        %2696 = vmatprep.subr.mxu0 0.0
        %2697 = vmatpush1.msra.mxu0 0.0
        %2698 = vmatprep.subr.mxu0 0.0
        %2699 = vmatpush1.msra.mxu0 0.0
        %2700 = vmatprep.subr.mxu0 0.0
        %2701 = vmatpush1.msra.mxu0 0.0
        %2702 = vmatprep.subr.mxu0 0.0
        %2703 = vmatpush1.msra.mxu0 0.0
        %2704 = vmatprep.subr.mxu0 0.0
        %2705 = vmatpush1.msra.mxu0 0.0
        %2706 = vmatprep.subr.mxu0 0.0
        %2707 = vmatpush1.msra.mxu0 0.0
        %2708 = vmatprep.subr.mxu0 0.0
        %2709 = vmatpush1.msra.mxu0 0.0
        %2710 = vmatprep.subr.mxu0 %v545
        %2711 = vmatpush1.msra.mxu0 %v543
        %2712 = vmatprep.subr.mxu0 0.0
        %2713 = vmatpush2.msra.mxu0 0.0
        %2714 = vmatprep.subr.mxu0 0.0
        %2715 = vmatpush2.msra.mxu0 0.0
        %2716 = vmatprep.subr.mxu0 0.0
        %2717 = vmatpush2.msra.mxu0 0.0
        %2718 = vmatprep.subr.mxu0 0.0
        %2719 = vmatpush2.msra.mxu0 0.0
        %2720 = vmatprep.subr.mxu0 0.0
        %2721 = vmatpush2.msra.mxu0 0.0
        %2722 = vmatprep.subr.mxu0 0.0
        %2723 = vmatpush2.msra.mxu0 0.0
        %2724 = vmatprep.subr.mxu0 0.0
        %2725 = vmatpush2.msra.mxu0 0.0
        %2726 = vmatprep.subr.mxu0 0.0
        %2727 = vmatpush2.msra.mxu0 0.0
        %2728 = vmatprep.subr.mxu0 0.0
        %2729 = vmatpush2.msra.mxu0 0.0
        %2730 = vmatprep.subr.mxu0 0.0
        %2731 = vmatpush2.msra.mxu0 0.0
        %2732 = vmatprep.subr.mxu0 0.0
        %2733 = vmatpush2.msra.mxu0 0.0
        %2734 = vmatprep.subr.mxu0 0.0
        %2735 = vmatpush2.msra.mxu0 0.0
        %2736 = vmatprep.subr.mxu0 0.0
        %2737 = vmatpush2.msra.mxu0 0.0
        %2738 = vmatprep.subr.mxu0 0.0
        %2739 = vmatpush2.msra.mxu0 0.0
        %2740 = vmatprep.subr.mxu0 0.0
        %2741 = vmatpush2.msra.mxu0 0.0
        %2742 = vmatprep.subr.mxu0 0.0
        %2743 = vmatpush2.msra.mxu0 0.0
        %2744 = vmatprep.mubr.f32.mxu0 0.0
        %2745 = vmatmul.mubr.f32.gmra.mxu0 %v2585
        %v2746 = vpop.f32.mrf.mxu0
        %v2747 = vadd.f32 0.0, %v2746
        %v2748 = vpop.f32.mrf.mxu0
        %v2749 = vadd.f32 0.0, %v2748
        %2750 = vmatprep.mubr.f32.mxu0 0.0
        %2751 = vmatmul.mubr.f32.gmra.mxu0 %v2588
        %v2752 = vpop.f32.mrf.mxu0
        %v2753 = vadd.f32 0.0, %v2752
        %v2754 = vpop.f32.mrf.mxu0
        %v2755 = vadd.f32 0.0, %v2754
        %2756 = vmatprep.mubr.f32.mxu0 0.0
        %2757 = vmatmul.mubr.f32.gmra.mxu0 %v2591
        %v2758 = vpop.f32.mrf.mxu0
        %v2759 = vadd.f32 0.0, %v2758
        %v2760 = vpop.f32.mrf.mxu0
        %v2761 = vadd.f32 0.0, %v2760
        %2762 = vmatprep.mubr.f32.mxu0 0.0
        %2763 = vmatmul.mubr.f32.gmra.mxu0 %v2594
        %v2764 = vpop.f32.mrf.mxu0
        %v2765 = vadd.f32 0.0, %v2764
        %v2766 = vpop.f32.mrf.mxu0
        %v2767 = vadd.f32 0.0, %v2766
        %2768 = vmatprep.mubr.f32.mxu0 0.0
        %2769 = vmatmul.mubr.f32.gmra.mxu0 %v2597
        %v2770 = vpop.f32.mrf.mxu0
        %v2771 = vadd.f32 0.0, %v2770
        %v2772 = vpop.f32.mrf.mxu0
        %v2773 = vadd.f32 0.0, %v2772
        %2774 = vmatprep.mubr.f32.mxu0 0.0
        %2775 = vmatmul.mubr.f32.gmra.mxu0 %v2600
        %v2776 = vpop.f32.mrf.mxu0
        %v2777 = vadd.f32 0.0, %v2776
        %v2778 = vpop.f32.mrf.mxu0
        %v2779 = vadd.f32 0.0, %v2778
        %2780 = vmatprep.mubr.f32.mxu0 0.0
        %2781 = vmatmul.mubr.f32.gmra.mxu0 %v2603
        %v2782 = vpop.f32.mrf.mxu0
        %v2783 = vadd.f32 0.0, %v2782
        %v2784 = vpop.f32.mrf.mxu0
        %v2785 = vadd.f32 0.0, %v2784
        %2786 = vmatprep.mubr.f32.mxu0 0.0
        %2787 = vmatmul.mubr.f32.gmra.mxu0 %v2606
        %v2788 = vpop.f32.mrf.mxu0
        %v2789 = vadd.f32 0.0, %v2788
        %v2790 = vpop.f32.mrf.mxu0
        %v2791 = vadd.f32 0.0, %v2790
        %2792 = vmatprep.mubr.f32.mxu0 0.0
        %2793 = vmatmul.mubr.f32.gmra.mxu0 %v2609
        %v2794 = vpop.f32.mrf.mxu0
        %v2795 = vadd.f32 0.0, %v2794
        %v2796 = vpop.f32.mrf.mxu0
        %v2797 = vadd.f32 0.0, %v2796
        %2798 = vmatprep.mubr.f32.mxu0 0.0
        %2799 = vmatmul.mubr.f32.gmra.mxu0 %v2612
        %v2800 = vpop.f32.mrf.mxu0
        %v2801 = vadd.f32 0.0, %v2800
        %v2802 = vpop.f32.mrf.mxu0
        %v2803 = vadd.f32 0.0, %v2802
        %2804 = vmatprep.mubr.f32.mxu0 0.0
        %2805 = vmatmul.mubr.f32.gmra.mxu0 %v2615
        %v2806 = vpop.f32.mrf.mxu0
        %v2807 = vadd.f32 0.0, %v2806
        %v2808 = vpop.f32.mrf.mxu0
        %v2809 = vadd.f32 0.0, %v2808
        %2810 = vmatprep.mubr.f32.mxu0 0.0
        %2811 = vmatmul.mubr.f32.gmra.mxu0 %v2618
        %v2812 = vpop.f32.mrf.mxu0
        %v2813 = vadd.f32 0.0, %v2812
        %v2814 = vpop.f32.mrf.mxu0
        %v2815 = vadd.f32 0.0, %v2814
        %2816 = vmatprep.mubr.f32.mxu0 0.0
        %2817 = vmatmul.mubr.f32.gmra.mxu0 %v2621
        %v2818 = vpop.f32.mrf.mxu0
        %v2819 = vadd.f32 0.0, %v2818
        %v2820 = vpop.f32.mrf.mxu0
        %v2821 = vadd.f32 0.0, %v2820
        %2822 = vmatprep.mubr.f32.mxu0 0.0
        %2823 = vmatmul.mubr.f32.gmra.mxu0 %v2624
        %v2824 = vpop.f32.mrf.mxu0
        %v2825 = vadd.f32 0.0, %v2824
        %v2826 = vpop.f32.mrf.mxu0
        %v2827 = vadd.f32 0.0, %v2826
        %2828 = vmatprep.mubr.f32.mxu0 0.0
        %2829 = vmatmul.mubr.f32.gmra.mxu0 %v2627
        %v2830 = vpop.f32.mrf.mxu0
        %v2831 = vadd.f32 0.0, %v2830
        %v2832 = vpop.f32.mrf.mxu0
        %v2833 = vadd.f32 0.0, %v2832
        %2834 = vmatprep.mubr.f32.mxu0 0.0
        %2835 = vmatmul.mubr.f32.gmra.mxu0 %v2630
        %v2836 = vpop.f32.mrf.mxu0
        %v2837 = vadd.f32 0.0, %v2836
        %v2838 = vpop.f32.mrf.mxu0
        %v2839 = vadd.f32 0.0, %v2838
        %2840 = vmatprep.mubr.f32.mxu0 0.0
        %2841 = vmatmul.mubr.f32.gmra.mxu0 %v2633
        %v2842 = vpop.f32.mrf.mxu0
        %v2843 = vadd.f32 0.0, %v2842
        %v2844 = vpop.f32.mrf.mxu0
        %v2845 = vadd.f32 0.0, %v2844
        %2846 = vmatprep.mubr.f32.mxu0 0.0
        %2847 = vmatmul.mubr.f32.gmra.mxu0 %v2636
        %v2848 = vpop.f32.mrf.mxu0
        %v2849 = vadd.f32 0.0, %v2848
        %v2850 = vpop.f32.mrf.mxu0
        %v2851 = vadd.f32 0.0, %v2850
        %2852 = vmatprep.mubr.f32.mxu0 0.0
        %2853 = vmatmul.mubr.f32.gmra.mxu0 %v2639
        %v2854 = vpop.f32.mrf.mxu0
        %v2855 = vadd.f32 0.0, %v2854
        %v2856 = vpop.f32.mrf.mxu0
        %v2857 = vadd.f32 0.0, %v2856
        %2858 = vmatprep.mubr.f32.mxu0 0.0
        %2859 = vmatmul.mubr.f32.gmra.mxu0 %v2642
        %v2860 = vpop.f32.mrf.mxu0
        %v2861 = vadd.f32 0.0, %v2860
        %v2862 = vpop.f32.mrf.mxu0
        %v2863 = vadd.f32 0.0, %v2862
        %2864 = vmatprep.mubr.f32.mxu0 0.0
        %2865 = vmatmul.mubr.f32.gmra.mxu0 %v2645
        %v2866 = vpop.f32.mrf.mxu0
        %v2867 = vadd.f32 0.0, %v2866
        %v2868 = vpop.f32.mrf.mxu0
        %v2869 = vadd.f32 0.0, %v2868
        %2870 = vmatprep.mubr.f32.mxu0 0.0
        %2871 = vmatmul.mubr.f32.gmra.mxu0 %v2648
        %v2872 = vpop.f32.mrf.mxu0
        %v2873 = vadd.f32 0.0, %v2872
        %v2874 = vpop.f32.mrf.mxu0
        %v2875 = vadd.f32 0.0, %v2874
        %2876 = vmatprep.mubr.f32.mxu0 0.0
        %2877 = vmatmul.mubr.f32.gmra.mxu0 %v2651
        %v2878 = vpop.f32.mrf.mxu0
        %v2879 = vadd.f32 0.0, %v2878
        %v2880 = vpop.f32.mrf.mxu0
        %v2881 = vadd.f32 0.0, %v2880
        %2882 = vmatprep.mubr.f32.mxu0 0.0
        %2883 = vmatmul.mubr.f32.gmra.mxu0 %v2654
        %v2884 = vpop.f32.mrf.mxu0
        %v2885 = vadd.f32 0.0, %v2884
        %v2886 = vpop.f32.mrf.mxu0
        %v2887 = vadd.f32 0.0, %v2886
        %2888 = vmatprep.mubr.f32.mxu0 0.0
        %2889 = vmatmul.mubr.f32.gmra.mxu0 %v2657
        %v2890 = vpop.f32.mrf.mxu0
        %v2891 = vadd.f32 0.0, %v2890
        %v2892 = vpop.f32.mrf.mxu0
        %v2893 = vadd.f32 0.0, %v2892
        %2894 = vmatprep.mubr.f32.mxu0 0.0
        %2895 = vmatmul.mubr.f32.gmra.mxu0 %v2660
        %v2896 = vpop.f32.mrf.mxu0
        %v2897 = vadd.f32 0.0, %v2896
        %v2898 = vpop.f32.mrf.mxu0
        %v2899 = vadd.f32 0.0, %v2898
        %2900 = vmatprep.mubr.f32.mxu0 0.0
        %2901 = vmatmul.mubr.f32.gmra.mxu0 %v2663
        %v2902 = vpop.f32.mrf.mxu0
        %v2903 = vadd.f32 0.0, %v2902
        %v2904 = vpop.f32.mrf.mxu0
        %v2905 = vadd.f32 0.0, %v2904
        %2906 = vmatprep.mubr.f32.mxu0 0.0
        %2907 = vmatmul.mubr.f32.gmra.mxu0 %v2666
        %v2908 = vpop.f32.mrf.mxu0
        %v2909 = vadd.f32 0.0, %v2908
        %v2910 = vpop.f32.mrf.mxu0
        %v2911 = vadd.f32 0.0, %v2910
        %2912 = vmatprep.mubr.f32.mxu0 0.0
        %2913 = vmatmul.mubr.f32.gmra.mxu0 %v2669
        %v2914 = vpop.f32.mrf.mxu0
        %v2915 = vadd.f32 0.0, %v2914
        %v2916 = vpop.f32.mrf.mxu0
        %v2917 = vadd.f32 0.0, %v2916
        %2918 = vmatprep.mubr.f32.mxu0 0.0
        %2919 = vmatmul.mubr.f32.gmra.mxu0 %v2672
        %v2920 = vpop.f32.mrf.mxu0
        %v2921 = vadd.f32 0.0, %v2920
        %v2922 = vpop.f32.mrf.mxu0
        %v2923 = vadd.f32 0.0, %v2922
        %2924 = vmatprep.mubr.f32.mxu0 0.0
        %2925 = vmatmul.mubr.f32.gmra.mxu0 %v2675
        %v2926 = vpop.f32.mrf.mxu0
        %v2927 = vadd.f32 0.0, %v2926
        %v2928 = vpop.f32.mrf.mxu0
        %v2929 = vadd.f32 0.0, %v2928
        %2930 = vmatprep.mubr.f32.mxu0 0.0
        %2931 = vmatmul.mubr.f32.gmra.mxu0 %v2678
        %v2932 = vpop.f32.mrf.mxu0
        %v2933 = vadd.f32 0.0, %v2932
        %v2934 = vpop.f32.mrf.mxu0
        %v2935 = vadd.f32 0.0, %v2934
        %2936 = vdwg.mxu0
        %v2937 = vmax.f32 %v2747, %v2749
        %2938 = vmax.xlane.f32.xlu0 %v2937
        %v2939 = vpop.xlane.xlu0 %2938
        %v2940 = vmax.f32 %v2753, %v2755
        %2941 = vmax.xlane.f32.xlu0 %v2940
        %v2942 = vpop.xlane.xlu0 %2941
        %v2943 = vmax.f32 %v2759, %v2761
        %2944 = vmax.xlane.f32.xlu0 %v2943
        %v2945 = vpop.xlane.xlu0 %2944
        %v2946 = vmax.f32 %v2765, %v2767
        %2947 = vmax.xlane.f32.xlu0 %v2946
        %v2948 = vpop.xlane.xlu0 %2947
        %v2949 = vmax.f32 %v2771, %v2773
        %2950 = vmax.xlane.f32.xlu0 %v2949
        %v2951 = vpop.xlane.xlu0 %2950
        %v2952 = vmax.f32 %v2777, %v2779
        %2953 = vmax.xlane.f32.xlu0 %v2952
        %v2954 = vpop.xlane.xlu0 %2953
        %v2955 = vmax.f32 %v2783, %v2785
        %2956 = vmax.xlane.f32.xlu0 %v2955
        %v2957 = vpop.xlane.xlu0 %2956
        %v2958 = vmax.f32 %v2789, %v2791
        %2959 = vmax.xlane.f32.xlu0 %v2958
        %v2960 = vpop.xlane.xlu0 %2959
        %v2961 = vmax.f32 %v2795, %v2797
        %2962 = vmax.xlane.f32.xlu0 %v2961
        %v2963 = vpop.xlane.xlu0 %2962
        %v2964 = vmax.f32 %v2801, %v2803
        %2965 = vmax.xlane.f32.xlu0 %v2964
        %v2966 = vpop.xlane.xlu0 %2965
        %v2967 = vmax.f32 %v2807, %v2809
        %2968 = vmax.xlane.f32.xlu0 %v2967
        %v2969 = vpop.xlane.xlu0 %2968
        %v2970 = vmax.f32 %v2813, %v2815
        %2971 = vmax.xlane.f32.xlu0 %v2970
        %v2972 = vpop.xlane.xlu0 %2971
        %v2973 = vmax.f32 %v2819, %v2821
        %2974 = vmax.xlane.f32.xlu0 %v2973
        %v2975 = vpop.xlane.xlu0 %2974
        %v2976 = vmax.f32 %v2825, %v2827
        %2977 = vmax.xlane.f32.xlu0 %v2976
        %v2978 = vpop.xlane.xlu0 %2977
        %v2979 = vmax.f32 %v2831, %v2833
        %2980 = vmax.xlane.f32.xlu0 %v2979
        %v2981 = vpop.xlane.xlu0 %2980
        %v2982 = vmax.f32 %v2837, %v2839
        %2983 = vmax.xlane.f32.xlu0 %v2982
        %v2984 = vpop.xlane.xlu0 %2983
        %v2985 = vmax.f32 %v2843, %v2845
        %2986 = vmax.xlane.f32.xlu0 %v2985
        %v2987 = vpop.xlane.xlu0 %2986
        %v2988 = vmax.f32 %v2849, %v2851
        %2989 = vmax.xlane.f32.xlu0 %v2988
        %v2990 = vpop.xlane.xlu0 %2989
        %v2991 = vmax.f32 %v2855, %v2857
        %2992 = vmax.xlane.f32.xlu0 %v2991
        %v2993 = vpop.xlane.xlu0 %2992
        %v2994 = vmax.f32 %v2861, %v2863
        %2995 = vmax.xlane.f32.xlu0 %v2994
        %v2996 = vpop.xlane.xlu0 %2995
        %v2997 = vmax.f32 %v2867, %v2869
        %2998 = vmax.xlane.f32.xlu0 %v2997
        %v2999 = vpop.xlane.xlu0 %2998
        %v3000 = vmax.f32 %v2873, %v2875
        %3001 = vmax.xlane.f32.xlu0 %v3000
        %v3002 = vpop.xlane.xlu0 %3001
        %v3003 = vmax.f32 %v2879, %v2881
        %3004 = vmax.xlane.f32.xlu0 %v3003
        %v3005 = vpop.xlane.xlu0 %3004
        %v3006 = vmax.f32 %v2885, %v2887
        %3007 = vmax.xlane.f32.xlu0 %v3006
        %v3008 = vpop.xlane.xlu0 %3007
        %v3009 = vmax.f32 %v2891, %v2893
        %3010 = vmax.xlane.f32.xlu0 %v3009
        %v3011 = vpop.xlane.xlu0 %3010
        %v3012 = vmax.f32 %v2897, %v2899
        %3013 = vmax.xlane.f32.xlu0 %v3012
        %v3014 = vpop.xlane.xlu0 %3013
        %v3015 = vmax.f32 %v2903, %v2905
        %3016 = vmax.xlane.f32.xlu0 %v3015
        %v3017 = vpop.xlane.xlu0 %3016
        %v3018 = vmax.f32 %v2909, %v2911
        %3019 = vmax.xlane.f32.xlu0 %v3018
        %v3020 = vpop.xlane.xlu0 %3019
        %v3021 = vmax.f32 %v2915, %v2917
        %3022 = vmax.xlane.f32.xlu0 %v3021
        %v3023 = vpop.xlane.xlu0 %3022
        %v3024 = vmax.f32 %v2921, %v2923
        %3025 = vmax.xlane.f32.xlu0 %v3024
        %v3026 = vpop.xlane.xlu0 %3025
        %v3027 = vmax.f32 %v2927, %v2929
        %3028 = vmax.xlane.f32.xlu0 %v3027
        %v3029 = vpop.xlane.xlu0 %3028
        %v3030 = vmax.f32 %v2933, %v2935
        %3031 = vmax.xlane.f32.xlu0 %v3030
        %v3032 = vpop.xlane.xlu0 %3031
        %v3033 = vsub.f32 %v2747, %v2939
        %v3034 = vsub.f32 %v2749, %v2939
        %v3035 = vsub.f32 %v2753, %v2942
        %v3036 = vsub.f32 %v2755, %v2942
        %v3037 = vsub.f32 %v2759, %v2945
        %v3038 = vsub.f32 %v2761, %v2945
        %v3039 = vsub.f32 %v2765, %v2948
        %v3040 = vsub.f32 %v2767, %v2948
        %v3041 = vsub.f32 %v2771, %v2951
        %v3042 = vsub.f32 %v2773, %v2951
        %v3043 = vsub.f32 %v2777, %v2954
        %v3044 = vsub.f32 %v2779, %v2954
        %v3045 = vsub.f32 %v2783, %v2957
        %v3046 = vsub.f32 %v2785, %v2957
        %v3047 = vsub.f32 %v2789, %v2960
        %v3048 = vsub.f32 %v2791, %v2960
        %v3049 = vsub.f32 %v2795, %v2963
        %v3050 = vsub.f32 %v2797, %v2963
        %v3051 = vsub.f32 %v2801, %v2966
        %v3052 = vsub.f32 %v2803, %v2966
        %v3053 = vsub.f32 %v2807, %v2969
        %v3054 = vsub.f32 %v2809, %v2969
        %v3055 = vsub.f32 %v2813, %v2972
        %v3056 = vsub.f32 %v2815, %v2972
        %v3057 = vsub.f32 %v2819, %v2975
        %v3058 = vsub.f32 %v2821, %v2975
        %v3059 = vsub.f32 %v2825, %v2978
        %v3060 = vsub.f32 %v2827, %v2978
        %v3061 = vsub.f32 %v2831, %v2981
        %v3062 = vsub.f32 %v2833, %v2981
        %v3063 = vsub.f32 %v2837, %v2984
        %v3064 = vsub.f32 %v2839, %v2984
        %v3065 = vsub.f32 %v2843, %v2987
        %v3066 = vsub.f32 %v2845, %v2987
        %v3067 = vsub.f32 %v2849, %v2990
        %v3068 = vsub.f32 %v2851, %v2990
        %v3069 = vsub.f32 %v2855, %v2993
        %v3070 = vsub.f32 %v2857, %v2993
        %v3071 = vsub.f32 %v2861, %v2996
        %v3072 = vsub.f32 %v2863, %v2996
        %v3073 = vsub.f32 %v2867, %v2999
        %v3074 = vsub.f32 %v2869, %v2999
        %v3075 = vsub.f32 %v2873, %v3002
        %v3076 = vsub.f32 %v2875, %v3002
        %v3077 = vsub.f32 %v2879, %v3005
        %v3078 = vsub.f32 %v2881, %v3005
        %v3079 = vsub.f32 %v2885, %v3008
        %v3080 = vsub.f32 %v2887, %v3008
        %v3081 = vsub.f32 %v2891, %v3011
        %v3082 = vsub.f32 %v2893, %v3011
        %v3083 = vsub.f32 %v2897, %v3014
        %v3084 = vsub.f32 %v2899, %v3014
        %v3085 = vsub.f32 %v2903, %v3017
        %v3086 = vsub.f32 %v2905, %v3017
        %v3087 = vsub.f32 %v2909, %v3020
        %v3088 = vsub.f32 %v2911, %v3020
        %v3089 = vsub.f32 %v2915, %v3023
        %v3090 = vsub.f32 %v2917, %v3023
        %v3091 = vsub.f32 %v2921, %v3026
        %v3092 = vsub.f32 %v2923, %v3026
        %v3093 = vsub.f32 %v2927, %v3029
        %v3094 = vsub.f32 %v2929, %v3029
        %v3095 = vsub.f32 %v2933, %v3032
        %v3096 = vsub.f32 %v2935, %v3032
        %v3097 = vmul.f32 %v3033, 1.442695
        %v3098 = vpow.pop %v3097
        %v3099 = vmul.f32 %v3034, 1.442695
        %v3100 = vpow.pop %v3099
        %v3101 = vmul.f32 %v3035, 1.442695
        %v3102 = vpow.pop %v3101
        %v3103 = vmul.f32 %v3036, 1.442695
        %v3104 = vpow.pop %v3103
        %v3105 = vmul.f32 %v3037, 1.442695
        %v3106 = vpow.pop %v3105
        %v3107 = vmul.f32 %v3038, 1.442695
        %v3108 = vpow.pop %v3107
        %v3109 = vmul.f32 %v3039, 1.442695
        %v3110 = vpow.pop %v3109
        %v3111 = vmul.f32 %v3040, 1.442695
        %v3112 = vpow.pop %v3111
        %v3113 = vmul.f32 %v3041, 1.442695
        %v3114 = vpow.pop %v3113
        %v3115 = vmul.f32 %v3042, 1.442695
        %v3116 = vpow.pop %v3115
        %v3117 = vmul.f32 %v3043, 1.442695
        %v3118 = vpow.pop %v3117
        %v3119 = vmul.f32 %v3044, 1.442695
        %v3120 = vpow.pop %v3119
        %v3121 = vmul.f32 %v3045, 1.442695
        %v3122 = vpow.pop %v3121
        %v3123 = vmul.f32 %v3046, 1.442695
        %v3124 = vpow.pop %v3123
        %v3125 = vmul.f32 %v3047, 1.442695
        %v3126 = vpow.pop %v3125
        %v3127 = vmul.f32 %v3048, 1.442695
        %v3128 = vpow.pop %v3127
        %v3129 = vmul.f32 %v3049, 1.442695
        %v3130 = vpow.pop %v3129
        %v3131 = vmul.f32 %v3050, 1.442695
        %v3132 = vpow.pop %v3131
        %v3133 = vmul.f32 %v3051, 1.442695
        %v3134 = vpow.pop %v3133
        %v3135 = vmul.f32 %v3052, 1.442695
        %v3136 = vpow.pop %v3135
        %v3137 = vmul.f32 %v3053, 1.442695
        %v3138 = vpow.pop %v3137
        %v3139 = vmul.f32 %v3054, 1.442695
        %v3140 = vpow.pop %v3139
        %v3141 = vmul.f32 %v3055, 1.442695
        %v3142 = vpow.pop %v3141
        %v3143 = vmul.f32 %v3056, 1.442695
        %v3144 = vpow.pop %v3143
        %v3145 = vmul.f32 %v3057, 1.442695
        %v3146 = vpow.pop %v3145
        %v3147 = vmul.f32 %v3058, 1.442695
        %v3148 = vpow.pop %v3147
        %v3149 = vmul.f32 %v3059, 1.442695
        %v3150 = vpow.pop %v3149
        %v3151 = vmul.f32 %v3060, 1.442695
        %v3152 = vpow.pop %v3151
        %v3153 = vmul.f32 %v3061, 1.442695
        %v3154 = vpow.pop %v3153
        %v3155 = vmul.f32 %v3062, 1.442695
        %v3156 = vpow.pop %v3155
        %v3157 = vmul.f32 %v3063, 1.442695
        %v3158 = vpow.pop %v3157
        %v3159 = vmul.f32 %v3064, 1.442695
        %v3160 = vpow.pop %v3159
        %v3161 = vmul.f32 %v3065, 1.442695
        %v3162 = vpow.pop %v3161
        %v3163 = vmul.f32 %v3066, 1.442695
        %v3164 = vpow.pop %v3163
        %v3165 = vmul.f32 %v3067, 1.442695
        %v3166 = vpow.pop %v3165
        %v3167 = vmul.f32 %v3068, 1.442695
        %v3168 = vpow.pop %v3167
        %v3169 = vmul.f32 %v3069, 1.442695
        %v3170 = vpow.pop %v3169
        %v3171 = vmul.f32 %v3070, 1.442695
        %v3172 = vpow.pop %v3171
        %v3173 = vmul.f32 %v3071, 1.442695
        %v3174 = vpow.pop %v3173
        %v3175 = vmul.f32 %v3072, 1.442695
        %v3176 = vpow.pop %v3175
        %v3177 = vmul.f32 %v3073, 1.442695
        %v3178 = vpow.pop %v3177
        %v3179 = vmul.f32 %v3074, 1.442695
        %v3180 = vpow.pop %v3179
        %v3181 = vmul.f32 %v3075, 1.442695
        %v3182 = vpow.pop %v3181
        %v3183 = vmul.f32 %v3076, 1.442695
        %v3184 = vpow.pop %v3183
        %v3185 = vmul.f32 %v3077, 1.442695
        %v3186 = vpow.pop %v3185
        %v3187 = vmul.f32 %v3078, 1.442695
        %v3188 = vpow.pop %v3187
        %v3189 = vmul.f32 %v3079, 1.442695
        %v3190 = vpow.pop %v3189
        %v3191 = vmul.f32 %v3080, 1.442695
        %v3192 = vpow.pop %v3191
        %v3193 = vmul.f32 %v3081, 1.442695
        %v3194 = vpow.pop %v3193
        %v3195 = vmul.f32 %v3082, 1.442695
        %v3196 = vpow.pop %v3195
        %v3197 = vmul.f32 %v3083, 1.442695
        %v3198 = vpow.pop %v3197
        %v3199 = vmul.f32 %v3084, 1.442695
        %v3200 = vpow.pop %v3199
        %v3201 = vmul.f32 %v3085, 1.442695
        %v3202 = vpow.pop %v3201
        %v3203 = vmul.f32 %v3086, 1.442695
        %v3204 = vpow.pop %v3203
        %v3205 = vmul.f32 %v3087, 1.442695
        %v3206 = vpow.pop %v3205
        %v3207 = vmul.f32 %v3088, 1.442695
        %v3208 = vpow.pop %v3207
        %v3209 = vmul.f32 %v3089, 1.442695
        %v3210 = vpow.pop %v3209
        %v3211 = vmul.f32 %v3090, 1.442695
        %v3212 = vpow.pop %v3211
        %v3213 = vmul.f32 %v3091, 1.442695
        %v3214 = vpow.pop %v3213
        %v3215 = vmul.f32 %v3092, 1.442695
        %v3216 = vpow.pop %v3215
        %v3217 = vmul.f32 %v3093, 1.442695
        %v3218 = vpow.pop %v3217
        %v3219 = vmul.f32 %v3094, 1.442695
        %v3220 = vpow.pop %v3219
        %v3221 = vmul.f32 %v3095, 1.442695
        %v3222 = vpow.pop %v3221
        %v3223 = vmul.f32 %v3096, 1.442695
        %v3224 = vpow.pop %v3223
        %v3225 = vadd.f32 %v3098, %v3100
        %3226 = vadd.xlane.f32.xlu0 %v3225
        %v3227 = vpop.xlane.xlu0 %3226
        %v3228 = vadd.f32 %v3102, %v3104
        %3229 = vadd.xlane.f32.xlu0 %v3228
        %v3230 = vpop.xlane.xlu0 %3229
        %v3231 = vadd.f32 %v3106, %v3108
        %3232 = vadd.xlane.f32.xlu0 %v3231
        %v3233 = vpop.xlane.xlu0 %3232
        %v3234 = vadd.f32 %v3110, %v3112
        %3235 = vadd.xlane.f32.xlu0 %v3234
        %v3236 = vpop.xlane.xlu0 %3235
        %v3237 = vadd.f32 %v3114, %v3116
        %3238 = vadd.xlane.f32.xlu0 %v3237
        %v3239 = vpop.xlane.xlu0 %3238
        %v3240 = vadd.f32 %v3118, %v3120
        %3241 = vadd.xlane.f32.xlu0 %v3240
        %v3242 = vpop.xlane.xlu0 %3241
        %v3243 = vadd.f32 %v3122, %v3124
        %3244 = vadd.xlane.f32.xlu0 %v3243
        %v3245 = vpop.xlane.xlu0 %3244
        %v3246 = vadd.f32 %v3126, %v3128
        %3247 = vadd.xlane.f32.xlu0 %v3246
        %v3248 = vpop.xlane.xlu0 %3247
        %v3249 = vadd.f32 %v3130, %v3132
        %3250 = vadd.xlane.f32.xlu0 %v3249
        %v3251 = vpop.xlane.xlu0 %3250
        %v3252 = vadd.f32 %v3134, %v3136
        %3253 = vadd.xlane.f32.xlu0 %v3252
        %v3254 = vpop.xlane.xlu0 %3253
        %v3255 = vadd.f32 %v3138, %v3140
        %3256 = vadd.xlane.f32.xlu0 %v3255
        %v3257 = vpop.xlane.xlu0 %3256
        %v3258 = vadd.f32 %v3142, %v3144
        %3259 = vadd.xlane.f32.xlu0 %v3258
        %v3260 = vpop.xlane.xlu0 %3259
        %v3261 = vadd.f32 %v3146, %v3148
        %3262 = vadd.xlane.f32.xlu0 %v3261
        %v3263 = vpop.xlane.xlu0 %3262
        %v3264 = vadd.f32 %v3150, %v3152
        %3265 = vadd.xlane.f32.xlu0 %v3264
        %v3266 = vpop.xlane.xlu0 %3265
        %v3267 = vadd.f32 %v3154, %v3156
        %3268 = vadd.xlane.f32.xlu0 %v3267
        %v3269 = vpop.xlane.xlu0 %3268
        %v3270 = vadd.f32 %v3158, %v3160
        %3271 = vadd.xlane.f32.xlu0 %v3270
        %v3272 = vpop.xlane.xlu0 %3271
        %v3273 = vadd.f32 %v3162, %v3164
        %3274 = vadd.xlane.f32.xlu0 %v3273
        %v3275 = vpop.xlane.xlu0 %3274
        %v3276 = vadd.f32 %v3166, %v3168
        %3277 = vadd.xlane.f32.xlu0 %v3276
        %v3278 = vpop.xlane.xlu0 %3277
        %v3279 = vadd.f32 %v3170, %v3172
        %3280 = vadd.xlane.f32.xlu0 %v3279
        %v3281 = vpop.xlane.xlu0 %3280
        %v3282 = vadd.f32 %v3174, %v3176
        %3283 = vadd.xlane.f32.xlu0 %v3282
        %v3284 = vpop.xlane.xlu0 %3283
        %v3285 = vadd.f32 %v3178, %v3180
        %3286 = vadd.xlane.f32.xlu0 %v3285
        %v3287 = vpop.xlane.xlu0 %3286
        %v3288 = vadd.f32 %v3182, %v3184
        %3289 = vadd.xlane.f32.xlu0 %v3288
        %v3290 = vpop.xlane.xlu0 %3289
        %v3291 = vadd.f32 %v3186, %v3188
        %3292 = vadd.xlane.f32.xlu0 %v3291
        %v3293 = vpop.xlane.xlu0 %3292
        %v3294 = vadd.f32 %v3190, %v3192
        %3295 = vadd.xlane.f32.xlu0 %v3294
        %v3296 = vpop.xlane.xlu0 %3295
        %v3297 = vadd.f32 %v3194, %v3196
        %3298 = vadd.xlane.f32.xlu0 %v3297
        %v3299 = vpop.xlane.xlu0 %3298
        %v3300 = vadd.f32 %v3198, %v3200
        %3301 = vadd.xlane.f32.xlu0 %v3300
        %v3302 = vpop.xlane.xlu0 %3301
        %v3303 = vadd.f32 %v3202, %v3204
        %3304 = vadd.xlane.f32.xlu0 %v3303
        %v3305 = vpop.xlane.xlu0 %3304
        %v3306 = vadd.f32 %v3206, %v3208
        %3307 = vadd.xlane.f32.xlu0 %v3306
        %v3308 = vpop.xlane.xlu0 %3307
        %v3309 = vadd.f32 %v3210, %v3212
        %3310 = vadd.xlane.f32.xlu0 %v3309
        %v3311 = vpop.xlane.xlu0 %3310
        %v3312 = vadd.f32 %v3214, %v3216
        %3313 = vadd.xlane.f32.xlu0 %v3312
        %v3314 = vpop.xlane.xlu0 %3313
        %v3315 = vadd.f32 %v3218, %v3220
        %3316 = vadd.xlane.f32.xlu0 %v3315
        %v3317 = vpop.xlane.xlu0 %3316
        %v3318 = vadd.f32 %v3222, %v3224
        %3319 = vadd.xlane.f32.xlu0 %v3318
        %v3320 = vpop.xlane.xlu0 %3319
        %v3321 = vrcp.pop %v3227
        %v3322 = vrcp.pop %v3230
        %v3323 = vrcp.pop %v3233
        %v3324 = vrcp.pop %v3236
        %v3325 = vrcp.pop %v3239
        %v3326 = vrcp.pop %v3242
        %v3327 = vrcp.pop %v3245
        %v3328 = vrcp.pop %v3248
        %v3329 = vrcp.pop %v3251
        %v3330 = vrcp.pop %v3254
        %v3331 = vrcp.pop %v3257
        %v3332 = vrcp.pop %v3260
        %v3333 = vrcp.pop %v3263
        %v3334 = vrcp.pop %v3266
        %v3335 = vrcp.pop %v3269
        %v3336 = vrcp.pop %v3272
        %v3337 = vrcp.pop %v3275
        %v3338 = vrcp.pop %v3278
        %v3339 = vrcp.pop %v3281
        %v3340 = vrcp.pop %v3284
        %v3341 = vrcp.pop %v3287
        %v3342 = vrcp.pop %v3290
        %v3343 = vrcp.pop %v3293
        %v3344 = vrcp.pop %v3296
        %v3345 = vrcp.pop %v3299
        %v3346 = vrcp.pop %v3302
        %v3347 = vrcp.pop %v3305
        %v3348 = vrcp.pop %v3308
        %v3349 = vrcp.pop %v3311
        %v3350 = vrcp.pop %v3314
        %v3351 = vrcp.pop %v3317
        %v3352 = vrcp.pop %v3320
        %v3353 = vmul.f32 %v3098, %v3321
        %v3354 = vmul.f32 %v3100, %v3321
        %v3355 = vmul.f32 %v3102, %v3322
        %v3356 = vmul.f32 %v3104, %v3322
        %v3357 = vmul.f32 %v3106, %v3323
        %v3358 = vmul.f32 %v3108, %v3323
        %v3359 = vmul.f32 %v3110, %v3324
        %v3360 = vmul.f32 %v3112, %v3324
        %v3361 = vmul.f32 %v3114, %v3325
        %v3362 = vmul.f32 %v3116, %v3325
        %v3363 = vmul.f32 %v3118, %v3326
        %v3364 = vmul.f32 %v3120, %v3326
        %v3365 = vmul.f32 %v3122, %v3327
        %v3366 = vmul.f32 %v3124, %v3327
        %v3367 = vmul.f32 %v3126, %v3328
        %v3368 = vmul.f32 %v3128, %v3328
        %v3369 = vmul.f32 %v3130, %v3329
        %v3370 = vmul.f32 %v3132, %v3329
        %v3371 = vmul.f32 %v3134, %v3330
        %v3372 = vmul.f32 %v3136, %v3330
        %v3373 = vmul.f32 %v3138, %v3331
        %v3374 = vmul.f32 %v3140, %v3331
        %v3375 = vmul.f32 %v3142, %v3332
        %v3376 = vmul.f32 %v3144, %v3332
        %v3377 = vmul.f32 %v3146, %v3333
        %v3378 = vmul.f32 %v3148, %v3333
        %v3379 = vmul.f32 %v3150, %v3334
        %v3380 = vmul.f32 %v3152, %v3334
        %v3381 = vmul.f32 %v3154, %v3335
        %v3382 = vmul.f32 %v3156, %v3335
        %v3383 = vmul.f32 %v3158, %v3336
        %v3384 = vmul.f32 %v3160, %v3336
        %v3385 = vmul.f32 %v3162, %v3337
        %v3386 = vmul.f32 %v3164, %v3337
        %v3387 = vmul.f32 %v3166, %v3338
        %v3388 = vmul.f32 %v3168, %v3338
        %v3389 = vmul.f32 %v3170, %v3339
        %v3390 = vmul.f32 %v3172, %v3339
        %v3391 = vmul.f32 %v3174, %v3340
        %v3392 = vmul.f32 %v3176, %v3340
        %v3393 = vmul.f32 %v3178, %v3341
        %v3394 = vmul.f32 %v3180, %v3341
        %v3395 = vmul.f32 %v3182, %v3342
        %v3396 = vmul.f32 %v3184, %v3342
        %v3397 = vmul.f32 %v3186, %v3343
        %v3398 = vmul.f32 %v3188, %v3343
        %v3399 = vmul.f32 %v3190, %v3344
        %v3400 = vmul.f32 %v3192, %v3344
        %v3401 = vmul.f32 %v3194, %v3345
        %v3402 = vmul.f32 %v3196, %v3345
        %v3403 = vmul.f32 %v3198, %v3346
        %v3404 = vmul.f32 %v3200, %v3346
        %v3405 = vmul.f32 %v3202, %v3347
        %v3406 = vmul.f32 %v3204, %v3347
        %v3407 = vmul.f32 %v3206, %v3348
        %v3408 = vmul.f32 %v3208, %v3348
        %v3409 = vmul.f32 %v3210, %v3349
        %v3410 = vmul.f32 %v3212, %v3349
        %v3411 = vmul.f32 %v3214, %v3350
        %v3412 = vmul.f32 %v3216, %v3350
        %v3413 = vmul.f32 %v3218, %v3351
        %v3414 = vmul.f32 %v3220, %v3351
        %v3415 = vmul.f32 %v3222, %v3352
        %v3416 = vmul.f32 %v3224, %v3352
        %3417 = vmatprep.subr.mxu0 %v3384
        %3418 = vmatpush1.xpose.msra.mxu0 %v3383
        %3419 = vmatprep.subr.mxu0 %v3382
        %3420 = vmatpush1.xpose.msra.mxu0 %v3381
        %3421 = vmatprep.subr.mxu0 %v3380
        %3422 = vmatpush1.xpose.msra.mxu0 %v3379
        %3423 = vmatprep.subr.mxu0 %v3378
        %3424 = vmatpush1.xpose.msra.mxu0 %v3377
        %3425 = vmatprep.subr.mxu0 %v3376
        %3426 = vmatpush1.xpose.msra.mxu0 %v3375
        %3427 = vmatprep.subr.mxu0 %v3374
        %3428 = vmatpush1.xpose.msra.mxu0 %v3373
        %3429 = vmatprep.subr.mxu0 %v3372
        %3430 = vmatpush1.xpose.msra.mxu0 %v3371
        %3431 = vmatprep.subr.mxu0 %v3370
        %3432 = vmatpush1.xpose.msra.mxu0 %v3369
        %3433 = vmatprep.subr.mxu0 %v3368
        %3434 = vmatpush1.xpose.msra.mxu0 %v3367
        %3435 = vmatprep.subr.mxu0 %v3366
        %3436 = vmatpush1.xpose.msra.mxu0 %v3365
        %3437 = vmatprep.subr.mxu0 %v3364
        %3438 = vmatpush1.xpose.msra.mxu0 %v3363
        %3439 = vmatprep.subr.mxu0 %v3362
        %3440 = vmatpush1.xpose.msra.mxu0 %v3361
        %3441 = vmatprep.subr.mxu0 %v3360
        %3442 = vmatpush1.xpose.msra.mxu0 %v3359
        %3443 = vmatprep.subr.mxu0 %v3358
        %3444 = vmatpush1.xpose.msra.mxu0 %v3357
        %3445 = vmatprep.subr.mxu0 %v3356
        %3446 = vmatpush1.xpose.msra.mxu0 %v3355
        %3447 = vmatprep.subr.mxu0 %v3354
        %3448 = vmatpush1.xpose.msra.mxu0 %v3353
        %3449 = vmatprep.subr.mxu0 %v3416
        %3450 = vmatpush2.xpose.msra.mxu0 %v3415
        %3451 = vmatprep.subr.mxu0 %v3414
        %3452 = vmatpush2.xpose.msra.mxu0 %v3413
        %3453 = vmatprep.subr.mxu0 %v3412
        %3454 = vmatpush2.xpose.msra.mxu0 %v3411
        %3455 = vmatprep.subr.mxu0 %v3410
        %3456 = vmatpush2.xpose.msra.mxu0 %v3409
        %3457 = vmatprep.subr.mxu0 %v3408
        %3458 = vmatpush2.xpose.msra.mxu0 %v3407
        %3459 = vmatprep.subr.mxu0 %v3406
        %3460 = vmatpush2.xpose.msra.mxu0 %v3405
        %3461 = vmatprep.subr.mxu0 %v3404
        %3462 = vmatpush2.xpose.msra.mxu0 %v3403
        %3463 = vmatprep.subr.mxu0 %v3402
        %3464 = vmatpush2.xpose.msra.mxu0 %v3401
        %3465 = vmatprep.subr.mxu0 %v3400
        %3466 = vmatpush2.xpose.msra.mxu0 %v3399
        %3467 = vmatprep.subr.mxu0 %v3398
        %3468 = vmatpush2.xpose.msra.mxu0 %v3397
        %3469 = vmatprep.subr.mxu0 %v3396
        %3470 = vmatpush2.xpose.msra.mxu0 %v3395
        %3471 = vmatprep.subr.mxu0 %v3394
        %3472 = vmatpush2.xpose.msra.mxu0 %v3393
        %3473 = vmatprep.subr.mxu0 %v3392
        %3474 = vmatpush2.xpose.msra.mxu0 %v3391
        %3475 = vmatprep.subr.mxu0 %v3390
        %3476 = vmatpush2.xpose.msra.mxu0 %v3389
        %3477 = vmatprep.subr.mxu0 %v3388
        %3478 = vmatpush2.xpose.msra.mxu0 %v3387
        %3479 = vmatprep.subr.mxu0 %v3386
        %3480 = vmatpush2.xpose.msra.mxu0 %v3385
        %3481 = vmatprep.mubr.f32.mxu0 %v569
        %3482 = vmatmul.mubr.f32.gmra.mxu0 %v567
        %v3483 = vpop.f32.mrf.mxu0
        %v3484 = vadd.f32 0.0, %v3483
        %v3485 = vpop.f32.mrf.mxu0
        %v3486 = vadd.f32 0.0, %v3485
        %3487 = vdwg.mxu0
        %v3488 = vmul.f32 %v525, 0.35355338
        %v3489 = vmul.f32 %v527, 0.35355338
        %3490 = vxpose.xlu0.b32.start [1/16] %v3488, 128
        %3491 = vxpose.xlu0.b32.cont [2/16] 0.0, 128
        %3492 = vxpose.xlu0.b32.cont [3/16] 0.0, 128
        %3493 = vxpose.xlu0.b32.cont [4/16] 0.0, 128
        %3494 = vxpose.xlu0.b32.cont [5/16] 0.0, 128
        %3495 = vxpose.xlu0.b32.cont [6/16] 0.0, 128
        %3496 = vxpose.xlu0.b32.cont [7/16] 0.0, 128
        %3497 = vxpose.xlu0.b32.cont [8/16] 0.0, 128
        %3498 = vxpose.xlu0.b32.cont [9/16] 0.0, 128
        %3499 = vxpose.xlu0.b32.cont [10/16] 0.0, 128
        %3500 = vxpose.xlu0.b32.cont [11/16] 0.0, 128
        %3501 = vxpose.xlu0.b32.cont [12/16] 0.0, 128
        %3502 = vxpose.xlu0.b32.cont [13/16] 0.0, 128
        %3503 = vxpose.xlu0.b32.cont [14/16] 0.0, 128
        %3504 = vxpose.xlu0.b32.cont [15/16] 0.0, 128
        %3505 = vxpose.xlu0.b32.end [16/16] 0.0, 128
        %v3506 = vpop.trf.xlu0
        %v3507 = vpop.trf.xlu0
        %v3508 = vpop.trf.xlu0
        %v3509 = vpop.trf.xlu0
        %v3510 = vpop.trf.xlu0
        %v3511 = vpop.trf.xlu0
        %v3512 = vpop.trf.xlu0
        %v3513 = vpop.trf.xlu0
        %v3514 = vpop.trf.xlu0
        %v3515 = vpop.trf.xlu0
        %v3516 = vpop.trf.xlu0
        %v3517 = vpop.trf.xlu0
        %v3518 = vpop.trf.xlu0
        %v3519 = vpop.trf.xlu0
        %v3520 = vpop.trf.xlu0
        %v3521 = vpop.trf.xlu0
        %3522 = vxpose.xlu0.b32.start [1/16] %v3489, 128
        %3523 = vxpose.xlu0.b32.cont [2/16] 0.0, 128
        %3524 = vxpose.xlu0.b32.cont [3/16] 0.0, 128
        %3525 = vxpose.xlu0.b32.cont [4/16] 0.0, 128
        %3526 = vxpose.xlu0.b32.cont [5/16] 0.0, 128
        %3527 = vxpose.xlu0.b32.cont [6/16] 0.0, 128
        %3528 = vxpose.xlu0.b32.cont [7/16] 0.0, 128
        %3529 = vxpose.xlu0.b32.cont [8/16] 0.0, 128
        %3530 = vxpose.xlu0.b32.cont [9/16] 0.0, 128
        %3531 = vxpose.xlu0.b32.cont [10/16] 0.0, 128
        %3532 = vxpose.xlu0.b32.cont [11/16] 0.0, 128
        %3533 = vxpose.xlu0.b32.cont [12/16] 0.0, 128
        %3534 = vxpose.xlu0.b32.cont [13/16] 0.0, 128
        %3535 = vxpose.xlu0.b32.cont [14/16] 0.0, 128
        %3536 = vxpose.xlu0.b32.cont [15/16] 0.0, 128
        %3537 = vxpose.xlu0.b32.end [16/16] 0.0, 128
        %v3538 = vpop.trf.xlu0
        %v3539 = vpop.trf.xlu0
        %v3540 = vpop.trf.xlu0
        %v3541 = vpop.trf.xlu0
        %v3542 = vpop.trf.xlu0
        %v3543 = vpop.trf.xlu0
        %v3544 = vpop.trf.xlu0
        %v3545 = vpop.trf.xlu0
        %v3546 = vpop.trf.xlu0
        %v3547 = vpop.trf.xlu0
        %v3548 = vpop.trf.xlu0
        %v3549 = vpop.trf.xlu0
        %v3550 = vpop.trf.xlu0
        %v3551 = vpop.trf.xlu0
        %v3552 = vpop.trf.xlu0
        %v3553 = vpop.trf.xlu0
        %v3555 = vsel %vm643, %v3506, 0
        %v3558 = vsel %vm643, %v3507, 0
        %v3561 = vsel %vm643, %v3508, 0
        %v3564 = vsel %vm643, %v3509, 0
        %v3567 = vsel %vm643, %v3510, 0
        %v3570 = vsel %vm643, %v3511, 0
        %v3573 = vsel %vm643, %v3512, 0
        %v3576 = vsel %vm643, %v3513, 0
        %v3579 = vsel %vm643, %v3514, 0
        %v3582 = vsel %vm643, %v3515, 0
        %v3585 = vsel %vm643, %v3516, 0
        %v3588 = vsel %vm643, %v3517, 0
        %v3591 = vsel %vm643, %v3518, 0
        %v3594 = vsel %vm643, %v3519, 0
        %v3597 = vsel %vm643, %v3520, 0
        %v3600 = vsel %vm643, %v3521, 0
        %v3603 = vsel %vm643, %v3538, 0
        %v3606 = vsel %vm643, %v3539, 0
        %v3609 = vsel %vm643, %v3540, 0
        %v3612 = vsel %vm643, %v3541, 0
        %v3615 = vsel %vm643, %v3542, 0
        %v3618 = vsel %vm643, %v3543, 0
        %v3621 = vsel %vm643, %v3544, 0
        %v3624 = vsel %vm643, %v3545, 0
        %v3627 = vsel %vm643, %v3546, 0
        %v3630 = vsel %vm643, %v3547, 0
        %v3633 = vsel %vm643, %v3548, 0
        %v3636 = vsel %vm643, %v3549, 0
        %v3639 = vsel %vm643, %v3550, 0
        %v3642 = vsel %vm643, %v3551, 0
        %v3645 = vsel %vm643, %v3552, 0
        %v3648 = vsel %vm643, %v3553, 0
        %3650 = vmatprep.subr.mxu0 0.0
        %3651 = vmatpush1.msra.mxu0 0.0
        %3652 = vmatprep.subr.mxu0 0.0
        %3653 = vmatpush1.msra.mxu0 0.0
        %3654 = vmatprep.subr.mxu0 0.0
        %3655 = vmatpush1.msra.mxu0 0.0
        %3656 = vmatprep.subr.mxu0 0.0
        %3657 = vmatpush1.msra.mxu0 0.0
        %3658 = vmatprep.subr.mxu0 0.0
        %3659 = vmatpush1.msra.mxu0 0.0
        %3660 = vmatprep.subr.mxu0 0.0
        %3661 = vmatpush1.msra.mxu0 0.0
        %3662 = vmatprep.subr.mxu0 0.0
        %3663 = vmatpush1.msra.mxu0 0.0
        %3664 = vmatprep.subr.mxu0 0.0
        %3665 = vmatpush1.msra.mxu0 0.0
        %3666 = vmatprep.subr.mxu0 0.0
        %3667 = vmatpush1.msra.mxu0 0.0
        %3668 = vmatprep.subr.mxu0 0.0
        %3669 = vmatpush1.msra.mxu0 0.0
        %3670 = vmatprep.subr.mxu0 0.0
        %3671 = vmatpush1.msra.mxu0 0.0
        %3672 = vmatprep.subr.mxu0 0.0
        %3673 = vmatpush1.msra.mxu0 0.0
        %3674 = vmatprep.subr.mxu0 0.0
        %3675 = vmatpush1.msra.mxu0 0.0
        %3676 = vmatprep.subr.mxu0 0.0
        %3677 = vmatpush1.msra.mxu0 0.0
        %3678 = vmatprep.subr.mxu0 0.0
        %3679 = vmatpush1.msra.mxu0 0.0
        %3680 = vmatprep.subr.mxu0 %v551
        %3681 = vmatpush1.msra.mxu0 %v549
        %3682 = vmatprep.subr.mxu0 0.0
        %3683 = vmatpush2.msra.mxu0 0.0
        %3684 = vmatprep.subr.mxu0 0.0
        %3685 = vmatpush2.msra.mxu0 0.0
        %3686 = vmatprep.subr.mxu0 0.0
        %3687 = vmatpush2.msra.mxu0 0.0
        %3688 = vmatprep.subr.mxu0 0.0
        %3689 = vmatpush2.msra.mxu0 0.0
        %3690 = vmatprep.subr.mxu0 0.0
        %3691 = vmatpush2.msra.mxu0 0.0
        %3692 = vmatprep.subr.mxu0 0.0
        %3693 = vmatpush2.msra.mxu0 0.0
        %3694 = vmatprep.subr.mxu0 0.0
        %3695 = vmatpush2.msra.mxu0 0.0
        %3696 = vmatprep.subr.mxu0 0.0
        %3697 = vmatpush2.msra.mxu0 0.0
        %3698 = vmatprep.subr.mxu0 0.0
        %3699 = vmatpush2.msra.mxu0 0.0
        %3700 = vmatprep.subr.mxu0 0.0
        %3701 = vmatpush2.msra.mxu0 0.0
        %3702 = vmatprep.subr.mxu0 0.0
        %3703 = vmatpush2.msra.mxu0 0.0
        %3704 = vmatprep.subr.mxu0 0.0
        %3705 = vmatpush2.msra.mxu0 0.0
        %3706 = vmatprep.subr.mxu0 0.0
        %3707 = vmatpush2.msra.mxu0 0.0
        %3708 = vmatprep.subr.mxu0 0.0
        %3709 = vmatpush2.msra.mxu0 0.0
        %3710 = vmatprep.subr.mxu0 0.0
        %3711 = vmatpush2.msra.mxu0 0.0
        %3712 = vmatprep.subr.mxu0 0.0
        %3713 = vmatpush2.msra.mxu0 0.0
        %3714 = vmatprep.mubr.f32.mxu0 0.0
        %3715 = vmatmul.mubr.f32.gmra.mxu0 %v3555
        %v3716 = vpop.f32.mrf.mxu0
        %v3717 = vadd.f32 0.0, %v3716
        %v3718 = vpop.f32.mrf.mxu0
        %v3719 = vadd.f32 0.0, %v3718
        %3720 = vmatprep.mubr.f32.mxu0 0.0
        %3721 = vmatmul.mubr.f32.gmra.mxu0 %v3558
        %v3722 = vpop.f32.mrf.mxu0
        %v3723 = vadd.f32 0.0, %v3722
        %v3724 = vpop.f32.mrf.mxu0
        %v3725 = vadd.f32 0.0, %v3724
        %3726 = vmatprep.mubr.f32.mxu0 0.0
        %3727 = vmatmul.mubr.f32.gmra.mxu0 %v3561
        %v3728 = vpop.f32.mrf.mxu0
        %v3729 = vadd.f32 0.0, %v3728
        %v3730 = vpop.f32.mrf.mxu0
        %v3731 = vadd.f32 0.0, %v3730
        %3732 = vmatprep.mubr.f32.mxu0 0.0
        %3733 = vmatmul.mubr.f32.gmra.mxu0 %v3564
        %v3734 = vpop.f32.mrf.mxu0
        %v3735 = vadd.f32 0.0, %v3734
        %v3736 = vpop.f32.mrf.mxu0
        %v3737 = vadd.f32 0.0, %v3736
        %3738 = vmatprep.mubr.f32.mxu0 0.0
        %3739 = vmatmul.mubr.f32.gmra.mxu0 %v3567
        %v3740 = vpop.f32.mrf.mxu0
        %v3741 = vadd.f32 0.0, %v3740
        %v3742 = vpop.f32.mrf.mxu0
        %v3743 = vadd.f32 0.0, %v3742
        %3744 = vmatprep.mubr.f32.mxu0 0.0
        %3745 = vmatmul.mubr.f32.gmra.mxu0 %v3570
        %v3746 = vpop.f32.mrf.mxu0
        %v3747 = vadd.f32 0.0, %v3746
        %v3748 = vpop.f32.mrf.mxu0
        %v3749 = vadd.f32 0.0, %v3748
        %3750 = vmatprep.mubr.f32.mxu0 0.0
        %3751 = vmatmul.mubr.f32.gmra.mxu0 %v3573
        %v3752 = vpop.f32.mrf.mxu0
        %v3753 = vadd.f32 0.0, %v3752
        %v3754 = vpop.f32.mrf.mxu0
        %v3755 = vadd.f32 0.0, %v3754
        %3756 = vmatprep.mubr.f32.mxu0 0.0
        %3757 = vmatmul.mubr.f32.gmra.mxu0 %v3576
        %v3758 = vpop.f32.mrf.mxu0
        %v3759 = vadd.f32 0.0, %v3758
        %v3760 = vpop.f32.mrf.mxu0
        %v3761 = vadd.f32 0.0, %v3760
        %3762 = vmatprep.mubr.f32.mxu0 0.0
        %3763 = vmatmul.mubr.f32.gmra.mxu0 %v3579
        %v3764 = vpop.f32.mrf.mxu0
        %v3765 = vadd.f32 0.0, %v3764
        %v3766 = vpop.f32.mrf.mxu0
        %v3767 = vadd.f32 0.0, %v3766
        %3768 = vmatprep.mubr.f32.mxu0 0.0
        %3769 = vmatmul.mubr.f32.gmra.mxu0 %v3582
        %v3770 = vpop.f32.mrf.mxu0
        %v3771 = vadd.f32 0.0, %v3770
        %v3772 = vpop.f32.mrf.mxu0
        %v3773 = vadd.f32 0.0, %v3772
        %3774 = vmatprep.mubr.f32.mxu0 0.0
        %3775 = vmatmul.mubr.f32.gmra.mxu0 %v3585
        %v3776 = vpop.f32.mrf.mxu0
        %v3777 = vadd.f32 0.0, %v3776
        %v3778 = vpop.f32.mrf.mxu0
        %v3779 = vadd.f32 0.0, %v3778
        %3780 = vmatprep.mubr.f32.mxu0 0.0
        %3781 = vmatmul.mubr.f32.gmra.mxu0 %v3588
        %v3782 = vpop.f32.mrf.mxu0
        %v3783 = vadd.f32 0.0, %v3782
        %v3784 = vpop.f32.mrf.mxu0
        %v3785 = vadd.f32 0.0, %v3784
        %3786 = vmatprep.mubr.f32.mxu0 0.0
        %3787 = vmatmul.mubr.f32.gmra.mxu0 %v3591
        %v3788 = vpop.f32.mrf.mxu0
        %v3789 = vadd.f32 0.0, %v3788
        %v3790 = vpop.f32.mrf.mxu0
        %v3791 = vadd.f32 0.0, %v3790
        %3792 = vmatprep.mubr.f32.mxu0 0.0
        %3793 = vmatmul.mubr.f32.gmra.mxu0 %v3594
        %v3794 = vpop.f32.mrf.mxu0
        %v3795 = vadd.f32 0.0, %v3794
        %v3796 = vpop.f32.mrf.mxu0
        %v3797 = vadd.f32 0.0, %v3796
        %3798 = vmatprep.mubr.f32.mxu0 0.0
        %3799 = vmatmul.mubr.f32.gmra.mxu0 %v3597
        %v3800 = vpop.f32.mrf.mxu0
        %v3801 = vadd.f32 0.0, %v3800
        %v3802 = vpop.f32.mrf.mxu0
        %v3803 = vadd.f32 0.0, %v3802
        %3804 = vmatprep.mubr.f32.mxu0 0.0
        %3805 = vmatmul.mubr.f32.gmra.mxu0 %v3600
        %v3806 = vpop.f32.mrf.mxu0
        %v3807 = vadd.f32 0.0, %v3806
        %v3808 = vpop.f32.mrf.mxu0
        %v3809 = vadd.f32 0.0, %v3808
        %3810 = vmatprep.mubr.f32.mxu0 0.0
        %3811 = vmatmul.mubr.f32.gmra.mxu0 %v3603
        %v3812 = vpop.f32.mrf.mxu0
        %v3813 = vadd.f32 0.0, %v3812
        %v3814 = vpop.f32.mrf.mxu0
        %v3815 = vadd.f32 0.0, %v3814
        %3816 = vmatprep.mubr.f32.mxu0 0.0
        %3817 = vmatmul.mubr.f32.gmra.mxu0 %v3606
        %v3818 = vpop.f32.mrf.mxu0
        %v3819 = vadd.f32 0.0, %v3818
        %v3820 = vpop.f32.mrf.mxu0
        %v3821 = vadd.f32 0.0, %v3820
        %3822 = vmatprep.mubr.f32.mxu0 0.0
        %3823 = vmatmul.mubr.f32.gmra.mxu0 %v3609
        %v3824 = vpop.f32.mrf.mxu0
        %v3825 = vadd.f32 0.0, %v3824
        %v3826 = vpop.f32.mrf.mxu0
        %v3827 = vadd.f32 0.0, %v3826
        %3828 = vmatprep.mubr.f32.mxu0 0.0
        %3829 = vmatmul.mubr.f32.gmra.mxu0 %v3612
        %v3830 = vpop.f32.mrf.mxu0
        %v3831 = vadd.f32 0.0, %v3830
        %v3832 = vpop.f32.mrf.mxu0
        %v3833 = vadd.f32 0.0, %v3832
        %3834 = vmatprep.mubr.f32.mxu0 0.0
        %3835 = vmatmul.mubr.f32.gmra.mxu0 %v3615
        %v3836 = vpop.f32.mrf.mxu0
        %v3837 = vadd.f32 0.0, %v3836
        %v3838 = vpop.f32.mrf.mxu0
        %v3839 = vadd.f32 0.0, %v3838
        %3840 = vmatprep.mubr.f32.mxu0 0.0
        %3841 = vmatmul.mubr.f32.gmra.mxu0 %v3618
        %v3842 = vpop.f32.mrf.mxu0
        %v3843 = vadd.f32 0.0, %v3842
        %v3844 = vpop.f32.mrf.mxu0
        %v3845 = vadd.f32 0.0, %v3844
        %3846 = vmatprep.mubr.f32.mxu0 0.0
        %3847 = vmatmul.mubr.f32.gmra.mxu0 %v3621
        %v3848 = vpop.f32.mrf.mxu0
        %v3849 = vadd.f32 0.0, %v3848
        %v3850 = vpop.f32.mrf.mxu0
        %v3851 = vadd.f32 0.0, %v3850
        %3852 = vmatprep.mubr.f32.mxu0 0.0
        %3853 = vmatmul.mubr.f32.gmra.mxu0 %v3624
        %v3854 = vpop.f32.mrf.mxu0
        %v3855 = vadd.f32 0.0, %v3854
        %v3856 = vpop.f32.mrf.mxu0
        %v3857 = vadd.f32 0.0, %v3856
        %3858 = vmatprep.mubr.f32.mxu0 0.0
        %3859 = vmatmul.mubr.f32.gmra.mxu0 %v3627
        %v3860 = vpop.f32.mrf.mxu0
        %v3861 = vadd.f32 0.0, %v3860
        %v3862 = vpop.f32.mrf.mxu0
        %v3863 = vadd.f32 0.0, %v3862
        %3864 = vmatprep.mubr.f32.mxu0 0.0
        %3865 = vmatmul.mubr.f32.gmra.mxu0 %v3630
        %v3866 = vpop.f32.mrf.mxu0
        %v3867 = vadd.f32 0.0, %v3866
        %v3868 = vpop.f32.mrf.mxu0
        %v3869 = vadd.f32 0.0, %v3868
        %3870 = vmatprep.mubr.f32.mxu0 0.0
        %3871 = vmatmul.mubr.f32.gmra.mxu0 %v3633
        %v3872 = vpop.f32.mrf.mxu0
        %v3873 = vadd.f32 0.0, %v3872
        %v3874 = vpop.f32.mrf.mxu0
        %v3875 = vadd.f32 0.0, %v3874
        %3876 = vmatprep.mubr.f32.mxu0 0.0
        %3877 = vmatmul.mubr.f32.gmra.mxu0 %v3636
        %v3878 = vpop.f32.mrf.mxu0
        %v3879 = vadd.f32 0.0, %v3878
        %v3880 = vpop.f32.mrf.mxu0
        %v3881 = vadd.f32 0.0, %v3880
        %3882 = vmatprep.mubr.f32.mxu0 0.0
        %3883 = vmatmul.mubr.f32.gmra.mxu0 %v3639
        %v3884 = vpop.f32.mrf.mxu0
        %v3885 = vadd.f32 0.0, %v3884
        %v3886 = vpop.f32.mrf.mxu0
        %v3887 = vadd.f32 0.0, %v3886
        %3888 = vmatprep.mubr.f32.mxu0 0.0
        %3889 = vmatmul.mubr.f32.gmra.mxu0 %v3642
        %v3890 = vpop.f32.mrf.mxu0
        %v3891 = vadd.f32 0.0, %v3890
        %v3892 = vpop.f32.mrf.mxu0
        %v3893 = vadd.f32 0.0, %v3892
        %3894 = vmatprep.mubr.f32.mxu0 0.0
        %3895 = vmatmul.mubr.f32.gmra.mxu0 %v3645
        %v3896 = vpop.f32.mrf.mxu0
        %v3897 = vadd.f32 0.0, %v3896
        %v3898 = vpop.f32.mrf.mxu0
        %v3899 = vadd.f32 0.0, %v3898
        %3900 = vmatprep.mubr.f32.mxu0 0.0
        %3901 = vmatmul.mubr.f32.gmra.mxu0 %v3648
        %v3902 = vpop.f32.mrf.mxu0
        %v3903 = vadd.f32 0.0, %v3902
        %v3904 = vpop.f32.mrf.mxu0
        %v3905 = vadd.f32 0.0, %v3904
        %3906 = vdwg.mxu0
        %v3907 = vmax.f32 %v3717, %v3719
        %3908 = vmax.xlane.f32.xlu0 %v3907
        %v3909 = vpop.xlane.xlu0 %3908
        %v3910 = vmax.f32 %v3723, %v3725
        %3911 = vmax.xlane.f32.xlu0 %v3910
        %v3912 = vpop.xlane.xlu0 %3911
        %v3913 = vmax.f32 %v3729, %v3731
        %3914 = vmax.xlane.f32.xlu0 %v3913
        %v3915 = vpop.xlane.xlu0 %3914
        %v3916 = vmax.f32 %v3735, %v3737
        %3917 = vmax.xlane.f32.xlu0 %v3916
        %v3918 = vpop.xlane.xlu0 %3917
        %v3919 = vmax.f32 %v3741, %v3743
        %3920 = vmax.xlane.f32.xlu0 %v3919
        %v3921 = vpop.xlane.xlu0 %3920
        %v3922 = vmax.f32 %v3747, %v3749
        %3923 = vmax.xlane.f32.xlu0 %v3922
        %v3924 = vpop.xlane.xlu0 %3923
        %v3925 = vmax.f32 %v3753, %v3755
        %3926 = vmax.xlane.f32.xlu0 %v3925
        %v3927 = vpop.xlane.xlu0 %3926
        %v3928 = vmax.f32 %v3759, %v3761
        %3929 = vmax.xlane.f32.xlu0 %v3928
        %v3930 = vpop.xlane.xlu0 %3929
        %v3931 = vmax.f32 %v3765, %v3767
        %3932 = vmax.xlane.f32.xlu0 %v3931
        %v3933 = vpop.xlane.xlu0 %3932
        %v3934 = vmax.f32 %v3771, %v3773
        %3935 = vmax.xlane.f32.xlu0 %v3934
        %v3936 = vpop.xlane.xlu0 %3935
        %v3937 = vmax.f32 %v3777, %v3779
        %3938 = vmax.xlane.f32.xlu0 %v3937
        %v3939 = vpop.xlane.xlu0 %3938
        %v3940 = vmax.f32 %v3783, %v3785
        %3941 = vmax.xlane.f32.xlu0 %v3940
        %v3942 = vpop.xlane.xlu0 %3941
        %v3943 = vmax.f32 %v3789, %v3791
        %3944 = vmax.xlane.f32.xlu0 %v3943
        %v3945 = vpop.xlane.xlu0 %3944
        %v3946 = vmax.f32 %v3795, %v3797
        %3947 = vmax.xlane.f32.xlu0 %v3946
        %v3948 = vpop.xlane.xlu0 %3947
        %v3949 = vmax.f32 %v3801, %v3803
        %3950 = vmax.xlane.f32.xlu0 %v3949
        %v3951 = vpop.xlane.xlu0 %3950
        %v3952 = vmax.f32 %v3807, %v3809
        %3953 = vmax.xlane.f32.xlu0 %v3952
        %v3954 = vpop.xlane.xlu0 %3953
        %v3955 = vmax.f32 %v3813, %v3815
        %3956 = vmax.xlane.f32.xlu0 %v3955
        %v3957 = vpop.xlane.xlu0 %3956
        %v3958 = vmax.f32 %v3819, %v3821
        %3959 = vmax.xlane.f32.xlu0 %v3958
        %v3960 = vpop.xlane.xlu0 %3959
        %v3961 = vmax.f32 %v3825, %v3827
        %3962 = vmax.xlane.f32.xlu0 %v3961
        %v3963 = vpop.xlane.xlu0 %3962
        %v3964 = vmax.f32 %v3831, %v3833
        %3965 = vmax.xlane.f32.xlu0 %v3964
        %v3966 = vpop.xlane.xlu0 %3965
        %v3967 = vmax.f32 %v3837, %v3839
        %3968 = vmax.xlane.f32.xlu0 %v3967
        %v3969 = vpop.xlane.xlu0 %3968
        %v3970 = vmax.f32 %v3843, %v3845
        %3971 = vmax.xlane.f32.xlu0 %v3970
        %v3972 = vpop.xlane.xlu0 %3971
        %v3973 = vmax.f32 %v3849, %v3851
        %3974 = vmax.xlane.f32.xlu0 %v3973
        %v3975 = vpop.xlane.xlu0 %3974
        %v3976 = vmax.f32 %v3855, %v3857
        %3977 = vmax.xlane.f32.xlu0 %v3976
        %v3978 = vpop.xlane.xlu0 %3977
        %v3979 = vmax.f32 %v3861, %v3863
        %3980 = vmax.xlane.f32.xlu0 %v3979
        %v3981 = vpop.xlane.xlu0 %3980
        %v3982 = vmax.f32 %v3867, %v3869
        %3983 = vmax.xlane.f32.xlu0 %v3982
        %v3984 = vpop.xlane.xlu0 %3983
        %v3985 = vmax.f32 %v3873, %v3875
        %3986 = vmax.xlane.f32.xlu0 %v3985
        %v3987 = vpop.xlane.xlu0 %3986
        %v3988 = vmax.f32 %v3879, %v3881
        %3989 = vmax.xlane.f32.xlu0 %v3988
        %v3990 = vpop.xlane.xlu0 %3989
        %v3991 = vmax.f32 %v3885, %v3887
        %3992 = vmax.xlane.f32.xlu0 %v3991
        %v3993 = vpop.xlane.xlu0 %3992
        %v3994 = vmax.f32 %v3891, %v3893
        %3995 = vmax.xlane.f32.xlu0 %v3994
        %v3996 = vpop.xlane.xlu0 %3995
        %v3997 = vmax.f32 %v3897, %v3899
        %3998 = vmax.xlane.f32.xlu0 %v3997
        %v3999 = vpop.xlane.xlu0 %3998
        %v4000 = vmax.f32 %v3903, %v3905
        %4001 = vmax.xlane.f32.xlu0 %v4000
        %v4002 = vpop.xlane.xlu0 %4001
        %v4003 = vsub.f32 %v3717, %v3909
        %v4004 = vsub.f32 %v3719, %v3909
        %v4005 = vsub.f32 %v3723, %v3912
        %v4006 = vsub.f32 %v3725, %v3912
        %v4007 = vsub.f32 %v3729, %v3915
        %v4008 = vsub.f32 %v3731, %v3915
        %v4009 = vsub.f32 %v3735, %v3918
        %v4010 = vsub.f32 %v3737, %v3918
        %v4011 = vsub.f32 %v3741, %v3921
        %v4012 = vsub.f32 %v3743, %v3921
        %v4013 = vsub.f32 %v3747, %v3924
        %v4014 = vsub.f32 %v3749, %v3924
        %v4015 = vsub.f32 %v3753, %v3927
        %v4016 = vsub.f32 %v3755, %v3927
        %v4017 = vsub.f32 %v3759, %v3930
        %v4018 = vsub.f32 %v3761, %v3930
        %v4019 = vsub.f32 %v3765, %v3933
        %v4020 = vsub.f32 %v3767, %v3933
        %v4021 = vsub.f32 %v3771, %v3936
        %v4022 = vsub.f32 %v3773, %v3936
        %v4023 = vsub.f32 %v3777, %v3939
        %v4024 = vsub.f32 %v3779, %v3939
        %v4025 = vsub.f32 %v3783, %v3942
        %v4026 = vsub.f32 %v3785, %v3942
        %v4027 = vsub.f32 %v3789, %v3945
        %v4028 = vsub.f32 %v3791, %v3945
        %v4029 = vsub.f32 %v3795, %v3948
        %v4030 = vsub.f32 %v3797, %v3948
        %v4031 = vsub.f32 %v3801, %v3951
        %v4032 = vsub.f32 %v3803, %v3951
        %v4033 = vsub.f32 %v3807, %v3954
        %v4034 = vsub.f32 %v3809, %v3954
        %v4035 = vsub.f32 %v3813, %v3957
        %v4036 = vsub.f32 %v3815, %v3957
        %v4037 = vsub.f32 %v3819, %v3960
        %v4038 = vsub.f32 %v3821, %v3960
        %v4039 = vsub.f32 %v3825, %v3963
        %v4040 = vsub.f32 %v3827, %v3963
        %v4041 = vsub.f32 %v3831, %v3966
        %v4042 = vsub.f32 %v3833, %v3966
        %v4043 = vsub.f32 %v3837, %v3969
        %v4044 = vsub.f32 %v3839, %v3969
        %v4045 = vsub.f32 %v3843, %v3972
        %v4046 = vsub.f32 %v3845, %v3972
        %v4047 = vsub.f32 %v3849, %v3975
        %v4048 = vsub.f32 %v3851, %v3975
        %v4049 = vsub.f32 %v3855, %v3978
        %v4050 = vsub.f32 %v3857, %v3978
        %v4051 = vsub.f32 %v3861, %v3981
        %v4052 = vsub.f32 %v3863, %v3981
        %v4053 = vsub.f32 %v3867, %v3984
        %v4054 = vsub.f32 %v3869, %v3984
        %v4055 = vsub.f32 %v3873, %v3987
        %v4056 = vsub.f32 %v3875, %v3987
        %v4057 = vsub.f32 %v3879, %v3990
        %v4058 = vsub.f32 %v3881, %v3990
        %v4059 = vsub.f32 %v3885, %v3993
        %v4060 = vsub.f32 %v3887, %v3993
        %v4061 = vsub.f32 %v3891, %v3996
        %v4062 = vsub.f32 %v3893, %v3996
        %v4063 = vsub.f32 %v3897, %v3999
        %v4064 = vsub.f32 %v3899, %v3999
        %v4065 = vsub.f32 %v3903, %v4002
        %v4066 = vsub.f32 %v3905, %v4002
        %v4067 = vmul.f32 %v4003, 1.442695
        %v4068 = vpow.pop %v4067
        %v4069 = vmul.f32 %v4004, 1.442695
        %v4070 = vpow.pop %v4069
        %v4071 = vmul.f32 %v4005, 1.442695
        %v4072 = vpow.pop %v4071
        %v4073 = vmul.f32 %v4006, 1.442695
        %v4074 = vpow.pop %v4073
        %v4075 = vmul.f32 %v4007, 1.442695
        %v4076 = vpow.pop %v4075
        %v4077 = vmul.f32 %v4008, 1.442695
        %v4078 = vpow.pop %v4077
        %v4079 = vmul.f32 %v4009, 1.442695
        %v4080 = vpow.pop %v4079
        %v4081 = vmul.f32 %v4010, 1.442695
        %v4082 = vpow.pop %v4081
        %v4083 = vmul.f32 %v4011, 1.442695
        %v4084 = vpow.pop %v4083
        %v4085 = vmul.f32 %v4012, 1.442695
        %v4086 = vpow.pop %v4085
        %v4087 = vmul.f32 %v4013, 1.442695
        %v4088 = vpow.pop %v4087
        %v4089 = vmul.f32 %v4014, 1.442695
        %v4090 = vpow.pop %v4089
        %v4091 = vmul.f32 %v4015, 1.442695
        %v4092 = vpow.pop %v4091
        %v4093 = vmul.f32 %v4016, 1.442695
        %v4094 = vpow.pop %v4093
        %v4095 = vmul.f32 %v4017, 1.442695
        %v4096 = vpow.pop %v4095
        %v4097 = vmul.f32 %v4018, 1.442695
        %v4098 = vpow.pop %v4097
        %v4099 = vmul.f32 %v4019, 1.442695
        %v4100 = vpow.pop %v4099
        %v4101 = vmul.f32 %v4020, 1.442695
        %v4102 = vpow.pop %v4101
        %v4103 = vmul.f32 %v4021, 1.442695
        %v4104 = vpow.pop %v4103
        %v4105 = vmul.f32 %v4022, 1.442695
        %v4106 = vpow.pop %v4105
        %v4107 = vmul.f32 %v4023, 1.442695
        %v4108 = vpow.pop %v4107
        %v4109 = vmul.f32 %v4024, 1.442695
        %v4110 = vpow.pop %v4109
        %v4111 = vmul.f32 %v4025, 1.442695
        %v4112 = vpow.pop %v4111
        %v4113 = vmul.f32 %v4026, 1.442695
        %v4114 = vpow.pop %v4113
        %v4115 = vmul.f32 %v4027, 1.442695
        %v4116 = vpow.pop %v4115
        %v4117 = vmul.f32 %v4028, 1.442695
        %v4118 = vpow.pop %v4117
        %v4119 = vmul.f32 %v4029, 1.442695
        %v4120 = vpow.pop %v4119
        %v4121 = vmul.f32 %v4030, 1.442695
        %v4122 = vpow.pop %v4121
        %v4123 = vmul.f32 %v4031, 1.442695
        %v4124 = vpow.pop %v4123
        %v4125 = vmul.f32 %v4032, 1.442695
        %v4126 = vpow.pop %v4125
        %v4127 = vmul.f32 %v4033, 1.442695
        %v4128 = vpow.pop %v4127
        %v4129 = vmul.f32 %v4034, 1.442695
        %v4130 = vpow.pop %v4129
        %v4131 = vmul.f32 %v4035, 1.442695
        %v4132 = vpow.pop %v4131
        %v4133 = vmul.f32 %v4036, 1.442695
        %v4134 = vpow.pop %v4133
        %v4135 = vmul.f32 %v4037, 1.442695
        %v4136 = vpow.pop %v4135
        %v4137 = vmul.f32 %v4038, 1.442695
        %v4138 = vpow.pop %v4137
        %v4139 = vmul.f32 %v4039, 1.442695
        %v4140 = vpow.pop %v4139
        %v4141 = vmul.f32 %v4040, 1.442695
        %v4142 = vpow.pop %v4141
        %v4143 = vmul.f32 %v4041, 1.442695
        %v4144 = vpow.pop %v4143
        %v4145 = vmul.f32 %v4042, 1.442695
        %v4146 = vpow.pop %v4145
        %v4147 = vmul.f32 %v4043, 1.442695
        %v4148 = vpow.pop %v4147
        %v4149 = vmul.f32 %v4044, 1.442695
        %v4150 = vpow.pop %v4149
        %v4151 = vmul.f32 %v4045, 1.442695
        %v4152 = vpow.pop %v4151
        %v4153 = vmul.f32 %v4046, 1.442695
        %v4154 = vpow.pop %v4153
        %v4155 = vmul.f32 %v4047, 1.442695
        %v4156 = vpow.pop %v4155
        %v4157 = vmul.f32 %v4048, 1.442695
        %v4158 = vpow.pop %v4157
        %v4159 = vmul.f32 %v4049, 1.442695
        %v4160 = vpow.pop %v4159
        %v4161 = vmul.f32 %v4050, 1.442695
        %v4162 = vpow.pop %v4161
        %v4163 = vmul.f32 %v4051, 1.442695
        %v4164 = vpow.pop %v4163
        %v4165 = vmul.f32 %v4052, 1.442695
        %v4166 = vpow.pop %v4165
        %v4167 = vmul.f32 %v4053, 1.442695
        %v4168 = vpow.pop %v4167
        %v4169 = vmul.f32 %v4054, 1.442695
        %v4170 = vpow.pop %v4169
        %v4171 = vmul.f32 %v4055, 1.442695
        %v4172 = vpow.pop %v4171
        %v4173 = vmul.f32 %v4056, 1.442695
        %v4174 = vpow.pop %v4173
        %v4175 = vmul.f32 %v4057, 1.442695
        %v4176 = vpow.pop %v4175
        %v4177 = vmul.f32 %v4058, 1.442695
        %v4178 = vpow.pop %v4177
        %v4179 = vmul.f32 %v4059, 1.442695
        %v4180 = vpow.pop %v4179
        %v4181 = vmul.f32 %v4060, 1.442695
        %v4182 = vpow.pop %v4181
        %v4183 = vmul.f32 %v4061, 1.442695
        %v4184 = vpow.pop %v4183
        %v4185 = vmul.f32 %v4062, 1.442695
        %v4186 = vpow.pop %v4185
        %v4187 = vmul.f32 %v4063, 1.442695
        %v4188 = vpow.pop %v4187
        %v4189 = vmul.f32 %v4064, 1.442695
        %v4190 = vpow.pop %v4189
        %v4191 = vmul.f32 %v4065, 1.442695
        %v4192 = vpow.pop %v4191
        %v4193 = vmul.f32 %v4066, 1.442695
        %v4194 = vpow.pop %v4193
        %v4195 = vadd.f32 %v4068, %v4070
        %4196 = vadd.xlane.f32.xlu0 %v4195
        %v4197 = vpop.xlane.xlu0 %4196
        %v4198 = vadd.f32 %v4072, %v4074
        %4199 = vadd.xlane.f32.xlu0 %v4198
        %v4200 = vpop.xlane.xlu0 %4199
        %v4201 = vadd.f32 %v4076, %v4078
        %4202 = vadd.xlane.f32.xlu0 %v4201
        %v4203 = vpop.xlane.xlu0 %4202
        %v4204 = vadd.f32 %v4080, %v4082
        %4205 = vadd.xlane.f32.xlu0 %v4204
        %v4206 = vpop.xlane.xlu0 %4205
        %v4207 = vadd.f32 %v4084, %v4086
        %4208 = vadd.xlane.f32.xlu0 %v4207
        %v4209 = vpop.xlane.xlu0 %4208
        %v4210 = vadd.f32 %v4088, %v4090
        %4211 = vadd.xlane.f32.xlu0 %v4210
        %v4212 = vpop.xlane.xlu0 %4211
        %v4213 = vadd.f32 %v4092, %v4094
        %4214 = vadd.xlane.f32.xlu0 %v4213
        %v4215 = vpop.xlane.xlu0 %4214
        %v4216 = vadd.f32 %v4096, %v4098
        %4217 = vadd.xlane.f32.xlu0 %v4216
        %v4218 = vpop.xlane.xlu0 %4217
        %v4219 = vadd.f32 %v4100, %v4102
        %4220 = vadd.xlane.f32.xlu0 %v4219
        %v4221 = vpop.xlane.xlu0 %4220
        %v4222 = vadd.f32 %v4104, %v4106
        %4223 = vadd.xlane.f32.xlu0 %v4222
        %v4224 = vpop.xlane.xlu0 %4223
        %v4225 = vadd.f32 %v4108, %v4110
        %4226 = vadd.xlane.f32.xlu0 %v4225
        %v4227 = vpop.xlane.xlu0 %4226
        %v4228 = vadd.f32 %v4112, %v4114
        %4229 = vadd.xlane.f32.xlu0 %v4228
        %v4230 = vpop.xlane.xlu0 %4229
        %v4231 = vadd.f32 %v4116, %v4118
        %4232 = vadd.xlane.f32.xlu0 %v4231
        %v4233 = vpop.xlane.xlu0 %4232
        %v4234 = vadd.f32 %v4120, %v4122
        %4235 = vadd.xlane.f32.xlu0 %v4234
        %v4236 = vpop.xlane.xlu0 %4235
        %v4237 = vadd.f32 %v4124, %v4126
        %4238 = vadd.xlane.f32.xlu0 %v4237
        %v4239 = vpop.xlane.xlu0 %4238
        %v4240 = vadd.f32 %v4128, %v4130
        %4241 = vadd.xlane.f32.xlu0 %v4240
        %v4242 = vpop.xlane.xlu0 %4241
        %v4243 = vadd.f32 %v4132, %v4134
        %4244 = vadd.xlane.f32.xlu0 %v4243
        %v4245 = vpop.xlane.xlu0 %4244
        %v4246 = vadd.f32 %v4136, %v4138
        %4247 = vadd.xlane.f32.xlu0 %v4246
        %v4248 = vpop.xlane.xlu0 %4247
        %v4249 = vadd.f32 %v4140, %v4142
        %4250 = vadd.xlane.f32.xlu0 %v4249
        %v4251 = vpop.xlane.xlu0 %4250
        %v4252 = vadd.f32 %v4144, %v4146
        %4253 = vadd.xlane.f32.xlu0 %v4252
        %v4254 = vpop.xlane.xlu0 %4253
        %v4255 = vadd.f32 %v4148, %v4150
        %4256 = vadd.xlane.f32.xlu0 %v4255
        %v4257 = vpop.xlane.xlu0 %4256
        %v4258 = vadd.f32 %v4152, %v4154
        %4259 = vadd.xlane.f32.xlu0 %v4258
        %v4260 = vpop.xlane.xlu0 %4259
        %v4261 = vadd.f32 %v4156, %v4158
        %4262 = vadd.xlane.f32.xlu0 %v4261
        %v4263 = vpop.xlane.xlu0 %4262
        %v4264 = vadd.f32 %v4160, %v4162
        %4265 = vadd.xlane.f32.xlu0 %v4264
        %v4266 = vpop.xlane.xlu0 %4265
        %v4267 = vadd.f32 %v4164, %v4166
        %4268 = vadd.xlane.f32.xlu0 %v4267
        %v4269 = vpop.xlane.xlu0 %4268
        %v4270 = vadd.f32 %v4168, %v4170
        %4271 = vadd.xlane.f32.xlu0 %v4270
        %v4272 = vpop.xlane.xlu0 %4271
        %v4273 = vadd.f32 %v4172, %v4174
        %4274 = vadd.xlane.f32.xlu0 %v4273
        %v4275 = vpop.xlane.xlu0 %4274
        %v4276 = vadd.f32 %v4176, %v4178
        %4277 = vadd.xlane.f32.xlu0 %v4276
        %v4278 = vpop.xlane.xlu0 %4277
        %v4279 = vadd.f32 %v4180, %v4182
        %4280 = vadd.xlane.f32.xlu0 %v4279
        %v4281 = vpop.xlane.xlu0 %4280
        %v4282 = vadd.f32 %v4184, %v4186
        %4283 = vadd.xlane.f32.xlu0 %v4282
        %v4284 = vpop.xlane.xlu0 %4283
        %v4285 = vadd.f32 %v4188, %v4190
        %4286 = vadd.xlane.f32.xlu0 %v4285
        %v4287 = vpop.xlane.xlu0 %4286
        %v4288 = vadd.f32 %v4192, %v4194
        %4289 = vadd.xlane.f32.xlu0 %v4288
        %v4290 = vpop.xlane.xlu0 %4289
        %v4291 = vrcp.pop %v4197
        %v4292 = vrcp.pop %v4200
        %v4293 = vrcp.pop %v4203
        %v4294 = vrcp.pop %v4206
        %v4295 = vrcp.pop %v4209
        %v4296 = vrcp.pop %v4212
        %v4297 = vrcp.pop %v4215
        %v4298 = vrcp.pop %v4218
        %v4299 = vrcp.pop %v4221
        %v4300 = vrcp.pop %v4224
        %v4301 = vrcp.pop %v4227
        %v4302 = vrcp.pop %v4230
        %v4303 = vrcp.pop %v4233
        %v4304 = vrcp.pop %v4236
        %v4305 = vrcp.pop %v4239
        %v4306 = vrcp.pop %v4242
        %v4307 = vrcp.pop %v4245
        %v4308 = vrcp.pop %v4248
        %v4309 = vrcp.pop %v4251
        %v4310 = vrcp.pop %v4254
        %v4311 = vrcp.pop %v4257
        %v4312 = vrcp.pop %v4260
        %v4313 = vrcp.pop %v4263
        %v4314 = vrcp.pop %v4266
        %v4315 = vrcp.pop %v4269
        %v4316 = vrcp.pop %v4272
        %v4317 = vrcp.pop %v4275
        %v4318 = vrcp.pop %v4278
        %v4319 = vrcp.pop %v4281
        %v4320 = vrcp.pop %v4284
        %v4321 = vrcp.pop %v4287
        %v4322 = vrcp.pop %v4290
        %v4323 = vmul.f32 %v4068, %v4291
        %v4324 = vmul.f32 %v4070, %v4291
        %v4325 = vmul.f32 %v4072, %v4292
        %v4326 = vmul.f32 %v4074, %v4292
        %v4327 = vmul.f32 %v4076, %v4293
        %v4328 = vmul.f32 %v4078, %v4293
        %v4329 = vmul.f32 %v4080, %v4294
        %v4330 = vmul.f32 %v4082, %v4294
        %v4331 = vmul.f32 %v4084, %v4295
        %v4332 = vmul.f32 %v4086, %v4295
        %v4333 = vmul.f32 %v4088, %v4296
        %v4334 = vmul.f32 %v4090, %v4296
        %v4335 = vmul.f32 %v4092, %v4297
        %v4336 = vmul.f32 %v4094, %v4297
        %v4337 = vmul.f32 %v4096, %v4298
        %v4338 = vmul.f32 %v4098, %v4298
        %v4339 = vmul.f32 %v4100, %v4299
        %v4340 = vmul.f32 %v4102, %v4299
        %v4341 = vmul.f32 %v4104, %v4300
        %v4342 = vmul.f32 %v4106, %v4300
        %v4343 = vmul.f32 %v4108, %v4301
        %v4344 = vmul.f32 %v4110, %v4301
        %v4345 = vmul.f32 %v4112, %v4302
        %v4346 = vmul.f32 %v4114, %v4302
        %v4347 = vmul.f32 %v4116, %v4303
        %v4348 = vmul.f32 %v4118, %v4303
        %v4349 = vmul.f32 %v4120, %v4304
        %v4350 = vmul.f32 %v4122, %v4304
        %v4351 = vmul.f32 %v4124, %v4305
        %v4352 = vmul.f32 %v4126, %v4305
        %v4353 = vmul.f32 %v4128, %v4306
        %v4354 = vmul.f32 %v4130, %v4306
        %v4355 = vmul.f32 %v4132, %v4307
        %v4356 = vmul.f32 %v4134, %v4307
        %v4357 = vmul.f32 %v4136, %v4308
        %v4358 = vmul.f32 %v4138, %v4308
        %v4359 = vmul.f32 %v4140, %v4309
        %v4360 = vmul.f32 %v4142, %v4309
        %v4361 = vmul.f32 %v4144, %v4310
        %v4362 = vmul.f32 %v4146, %v4310
        %v4363 = vmul.f32 %v4148, %v4311
        %v4364 = vmul.f32 %v4150, %v4311
        %v4365 = vmul.f32 %v4152, %v4312
        %v4366 = vmul.f32 %v4154, %v4312
        %v4367 = vmul.f32 %v4156, %v4313
        %v4368 = vmul.f32 %v4158, %v4313
        %v4369 = vmul.f32 %v4160, %v4314
        %v4370 = vmul.f32 %v4162, %v4314
        %v4371 = vmul.f32 %v4164, %v4315
        %v4372 = vmul.f32 %v4166, %v4315
        %v4373 = vmul.f32 %v4168, %v4316
        %v4374 = vmul.f32 %v4170, %v4316
        %v4375 = vmul.f32 %v4172, %v4317
        %v4376 = vmul.f32 %v4174, %v4317
        %v4377 = vmul.f32 %v4176, %v4318
        %v4378 = vmul.f32 %v4178, %v4318
        %v4379 = vmul.f32 %v4180, %v4319
        %v4380 = vmul.f32 %v4182, %v4319
        %v4381 = vmul.f32 %v4184, %v4320
        %v4382 = vmul.f32 %v4186, %v4320
        %v4383 = vmul.f32 %v4188, %v4321
        %v4384 = vmul.f32 %v4190, %v4321
        %v4385 = vmul.f32 %v4192, %v4322
        %v4386 = vmul.f32 %v4194, %v4322
        %4387 = vmatprep.subr.mxu0 %v4354
        %4388 = vmatpush1.xpose.msra.mxu0 %v4353
        %4389 = vmatprep.subr.mxu0 %v4352
        %4390 = vmatpush1.xpose.msra.mxu0 %v4351
        %4391 = vmatprep.subr.mxu0 %v4350
        %4392 = vmatpush1.xpose.msra.mxu0 %v4349
        %4393 = vmatprep.subr.mxu0 %v4348
        %4394 = vmatpush1.xpose.msra.mxu0 %v4347
        %4395 = vmatprep.subr.mxu0 %v4346
        %4396 = vmatpush1.xpose.msra.mxu0 %v4345
        %4397 = vmatprep.subr.mxu0 %v4344
        %4398 = vmatpush1.xpose.msra.mxu0 %v4343
        %4399 = vmatprep.subr.mxu0 %v4342
        %4400 = vmatpush1.xpose.msra.mxu0 %v4341
        %4401 = vmatprep.subr.mxu0 %v4340
        %4402 = vmatpush1.xpose.msra.mxu0 %v4339
        %4403 = vmatprep.subr.mxu0 %v4338
        %4404 = vmatpush1.xpose.msra.mxu0 %v4337
        %4405 = vmatprep.subr.mxu0 %v4336
        %4406 = vmatpush1.xpose.msra.mxu0 %v4335
        %4407 = vmatprep.subr.mxu0 %v4334
        %4408 = vmatpush1.xpose.msra.mxu0 %v4333
        %4409 = vmatprep.subr.mxu0 %v4332
        %4410 = vmatpush1.xpose.msra.mxu0 %v4331
        %4411 = vmatprep.subr.mxu0 %v4330
        %4412 = vmatpush1.xpose.msra.mxu0 %v4329
        %4413 = vmatprep.subr.mxu0 %v4328
        %4414 = vmatpush1.xpose.msra.mxu0 %v4327
        %4415 = vmatprep.subr.mxu0 %v4326
        %4416 = vmatpush1.xpose.msra.mxu0 %v4325
        %4417 = vmatprep.subr.mxu0 %v4324
        %4418 = vmatpush1.xpose.msra.mxu0 %v4323
        %4419 = vmatprep.subr.mxu0 %v4386
        %4420 = vmatpush2.xpose.msra.mxu0 %v4385
        %4421 = vmatprep.subr.mxu0 %v4384
        %4422 = vmatpush2.xpose.msra.mxu0 %v4383
        %4423 = vmatprep.subr.mxu0 %v4382
        %4424 = vmatpush2.xpose.msra.mxu0 %v4381
        %4425 = vmatprep.subr.mxu0 %v4380
        %4426 = vmatpush2.xpose.msra.mxu0 %v4379
        %4427 = vmatprep.subr.mxu0 %v4378
        %4428 = vmatpush2.xpose.msra.mxu0 %v4377
        %4429 = vmatprep.subr.mxu0 %v4376
        %4430 = vmatpush2.xpose.msra.mxu0 %v4375
        %4431 = vmatprep.subr.mxu0 %v4374
        %4432 = vmatpush2.xpose.msra.mxu0 %v4373
        %4433 = vmatprep.subr.mxu0 %v4372
        %4434 = vmatpush2.xpose.msra.mxu0 %v4371
        %4435 = vmatprep.subr.mxu0 %v4370
        %4436 = vmatpush2.xpose.msra.mxu0 %v4369
        %4437 = vmatprep.subr.mxu0 %v4368
        %4438 = vmatpush2.xpose.msra.mxu0 %v4367
        %4439 = vmatprep.subr.mxu0 %v4366
        %4440 = vmatpush2.xpose.msra.mxu0 %v4365
        %4441 = vmatprep.subr.mxu0 %v4364
        %4442 = vmatpush2.xpose.msra.mxu0 %v4363
        %4443 = vmatprep.subr.mxu0 %v4362
        %4444 = vmatpush2.xpose.msra.mxu0 %v4361
        %4445 = vmatprep.subr.mxu0 %v4360
        %4446 = vmatpush2.xpose.msra.mxu0 %v4359
        %4447 = vmatprep.subr.mxu0 %v4358
        %4448 = vmatpush2.xpose.msra.mxu0 %v4357
        %4449 = vmatprep.subr.mxu0 %v4356
        %4450 = vmatpush2.xpose.msra.mxu0 %v4355
        %4451 = vmatprep.mubr.f32.mxu0 %v575
        %4452 = vmatmul.mubr.f32.gmra.mxu0 %v573
        %v4453 = vpop.f32.mrf.mxu0
        %v4454 = vadd.f32 0.0, %v4453
        %v4455 = vpop.f32.mrf.mxu0
        %v4456 = vadd.f32 0.0, %v4455
        %4457 = vdwg.mxu0
        %v4458 = vld [vmem:[%s5] sm:$0xff]
        %v4459 = vld [vmem:[%s5 + $0x8] sm:$0xff]
        %v4460 = vld [vmem:[%s5 + $0x10] sm:$0xff]
        %v4461 = vld [vmem:[%s5 + $0x18] sm:$0xff]
        %4463 = vset.pattern.permute.xlu0 0
        %4464 = vperm.xlu0 %4463, %v4458
        %v4465 = vpop.permute.xlu0 %4464
        %4468 = vset.pattern.permute.xlu0 0
        %4469 = vperm.xlu0 %4468, %v4459
        %v4470 = vpop.permute.xlu0 %4469
        %4473 = vset.pattern.permute.xlu0 0
        %4474 = vperm.xlu0 %4473, %v4460
        %v4475 = vpop.permute.xlu0 %4474
        %4478 = vset.pattern.permute.xlu0 0
        %4479 = vperm.xlu0 %4478, %v4461
        %v4480 = vpop.permute.xlu0 %4479
        %v4482 = vadd.f32 %v383, %v4465
        %v4483 = vadd.f32 %v384, %v4465
        %v4484 = vadd.f32 %v385, %v4470
        %v4485 = vadd.f32 %v386, %v4470
        %v4486 = vadd.f32 %v387, %v4475
        %v4487 = vadd.f32 %v388, %v4475
        %v4488 = vadd.f32 %v389, %v4480
        %v4489 = vadd.f32 %v390, %v4480
        %v4490 = vld [vmem:[%s4] sm:$0xff]
        %v4491 = vld [vmem:[%s4 + $0x8] sm:$0xff]
        %v4492 = vld [vmem:[%s4 + $0x10] sm:$0xff]
        %v4493 = vld [vmem:[%s4 + $0x18] sm:$0xff]
        %v4495 = vsel %vm403, %v4490, 0
        %v4498 = vsel %vm403, %v4491, 0
        %v4501 = vsel %vm403, %v4492, 0
        %v4504 = vsel %vm403, %v4493, 0
        %4506 = vmatprep.subr.mxu0 0.0
        %4507 = vmatpush1.msra.mxu0 0.0
        %4508 = vmatprep.subr.mxu0 0.0
        %4509 = vmatpush1.msra.mxu0 0.0
        %4510 = vmatprep.subr.mxu0 0.0
        %4511 = vmatpush1.msra.mxu0 0.0
        %4512 = vmatprep.subr.mxu0 0.0
        %4513 = vmatpush1.msra.mxu0 0.0
        %4514 = vmatprep.subr.mxu0 0.0
        %4515 = vmatpush1.msra.mxu0 0.0
        %4516 = vmatprep.subr.mxu0 0.0
        %4517 = vmatpush1.msra.mxu0 0.0
        %4518 = vmatprep.subr.mxu0 0.0
        %4519 = vmatpush1.msra.mxu0 0.0
        %4520 = vmatprep.subr.mxu0 0.0
        %4521 = vmatpush1.msra.mxu0 0.0
        %4522 = vmatprep.subr.mxu0 0.0
        %4523 = vmatpush1.msra.mxu0 0.0
        %4524 = vmatprep.subr.mxu0 0.0
        %4525 = vmatpush1.msra.mxu0 0.0
        %4526 = vmatprep.subr.mxu0 0.0
        %4527 = vmatpush1.msra.mxu0 0.0
        %4528 = vmatprep.subr.mxu0 0.0
        %4529 = vmatpush1.msra.mxu0 0.0
        %4530 = vmatprep.subr.mxu0 %v4456
        %4531 = vmatpush1.msra.mxu0 %v4454
        %4532 = vmatprep.subr.mxu0 %v3486
        %4533 = vmatpush1.msra.mxu0 %v3484
        %4534 = vmatprep.subr.mxu0 %v2516
        %4535 = vmatpush1.msra.mxu0 %v2514
        %4536 = vmatprep.subr.mxu0 %v1546
        %4537 = vmatpush1.msra.mxu0 %v1544
        %4538 = vmatprep.subr.mxu0 0.0
        %4539 = vmatpush2.msra.mxu0 0.0
        %4540 = vmatprep.subr.mxu0 0.0
        %4541 = vmatpush2.msra.mxu0 0.0
        %4542 = vmatprep.subr.mxu0 0.0
        %4543 = vmatpush2.msra.mxu0 0.0
        %4544 = vmatprep.subr.mxu0 0.0
        %4545 = vmatpush2.msra.mxu0 0.0
        %4546 = vmatprep.subr.mxu0 0.0
        %4547 = vmatpush2.msra.mxu0 0.0
        %4548 = vmatprep.subr.mxu0 0.0
        %4549 = vmatpush2.msra.mxu0 0.0
        %4550 = vmatprep.subr.mxu0 0.0
        %4551 = vmatpush2.msra.mxu0 0.0
        %4552 = vmatprep.subr.mxu0 0.0
        %4553 = vmatpush2.msra.mxu0 0.0
        %4554 = vmatprep.subr.mxu0 0.0
        %4555 = vmatpush2.msra.mxu0 0.0
        %4556 = vmatprep.subr.mxu0 0.0
        %4557 = vmatpush2.msra.mxu0 0.0
        %4558 = vmatprep.subr.mxu0 0.0
        %4559 = vmatpush2.msra.mxu0 0.0
        %4560 = vmatprep.subr.mxu0 0.0
        %4561 = vmatpush2.msra.mxu0 0.0
        %4562 = vmatprep.subr.mxu0 0.0
        %4563 = vmatpush2.msra.mxu0 0.0
        %4564 = vmatprep.subr.mxu0 0.0
        %4565 = vmatpush2.msra.mxu0 0.0
        %4566 = vmatprep.subr.mxu0 0.0
        %4567 = vmatpush2.msra.mxu0 0.0
        %4568 = vmatprep.subr.mxu0 0.0
        %4569 = vmatpush2.msra.mxu0 0.0
        %4570 = vmatprep.mubr.f32.mxu0 0.0
        %4571 = vmatmul.mubr.f32.gmra.mxu0 %v4495
        %v4572 = vpop.f32.mrf.mxu0
        %v4573 = vadd.f32 0.0, %v4572
        %v4574 = vpop.f32.mrf.mxu0
        %v4575 = vadd.f32 0.0, %v4574
        %4576 = vmatprep.mubr.f32.mxu0 0.0
        %4577 = vmatmul.mubr.f32.gmra.mxu0 %v4498
        %v4578 = vpop.f32.mrf.mxu0
        %v4579 = vadd.f32 0.0, %v4578
        %v4580 = vpop.f32.mrf.mxu0
        %v4581 = vadd.f32 0.0, %v4580
        %4582 = vmatprep.mubr.f32.mxu0 0.0
        %4583 = vmatmul.mubr.f32.gmra.mxu0 %v4501
        %v4584 = vpop.f32.mrf.mxu0
        %v4585 = vadd.f32 0.0, %v4584
        %v4586 = vpop.f32.mrf.mxu0
        %v4587 = vadd.f32 0.0, %v4586
        %4588 = vmatprep.mubr.f32.mxu0 0.0
        %4589 = vmatmul.mubr.f32.gmra.mxu0 %v4504
        %v4590 = vpop.f32.mrf.mxu0
        %v4591 = vadd.f32 0.0, %v4590
        %v4592 = vpop.f32.mrf.mxu0
        %v4593 = vadd.f32 0.0, %v4592
        %4594 = vdwg.mxu0
        %v4595 = vadd.f32 %v4482, %v4573
        %v4596 = vadd.f32 %v4483, %v4575
        %v4597 = vadd.f32 %v4484, %v4579
        %v4598 = vadd.f32 %v4485, %v4581
        %v4599 = vadd.f32 %v4486, %v4585
        %v4600 = vadd.f32 %v4487, %v4587
        %v4601 = vadd.f32 %v4488, %v4591
        %v4602 = vadd.f32 %v4489, %v4593
        %4603 = vst [vmem:[%s244] sm:$0xff] %v4595
        %4604 = vst [vmem:[%s244 + $0x8] sm:$0xff] %v4596
        %4605 = vst [vmem:[%s244 + $0x10] sm:$0xff] %v4597
        %4606 = vst [vmem:[%s244 + $0x18] sm:$0xff] %v4598
        %4607 = vst [vmem:[%s244 + $0x20] sm:$0xff] %v4599
        %4608 = vst [vmem:[%s244 + $0x28] sm:$0xff] %v4600
        %4609 = vst [vmem:[%s244 + $0x30] sm:$0xff] %v4601
        %4610 = vst [vmem:[%s244 + $0x38] sm:$0xff] %v4602
        %s4611 = sand.u32 %s159, 1
        %s4612 = scalar_lea.sflag [#allocation3], %s4611
        %s4613 = sand.u32 %s159, 1
        %s4614 = smul.addr %s4613, 64
        %s4615 = scalar_lea.vmem [#allocation2], %s4614
        // Predicated region
        $region45: #{tpu_custom_call.1} parent=43 // pred_check
          %p4616 = pneg %p169
        $region46: #{tpu_custom_call.1} parent=43 // pred_check_branch
          %4618 = sbr.rel (%p4616) target = $region48
        $region47: #{tpu_custom_call.1} parent=43 // pred_region
          %s4620 = ssub.s32 1024, 1024
          %4621 = vsyncadd %s4612, %s4620
          %s4622 = smul.addr %s20, 8
          %s4623 = smul.addr %s4622, 128
          %s4624 = scalar_lea.hbm %s6, %s4623
          %s4625 = sshll.u32 %s4615, 4
          %s4626 = int_to_ptr.vmem [resolvable:$true] %s4625
          %4631 = dma.vmem_to_hbm [thread:$0]  %s4626, 1024, %s4624, %s4612, 256, 256, 16
        $region48: #{tpu_custom_call.1} parent=43 // pred_fallthru
          _
      $region44: #{tpu_custom_call.1} parent=5 // pred_fallthru
        _
      %p4632 = scmp.le.s32.totalorder 2, %s15
      // Predicated region
      $region49: #{tpu_custom_call.1} parent=5 // pred_check
        %p4633 = pneg %p4632
      $region50: #{tpu_custom_call.1} parent=5 // pred_check_branch
        %4635 = sbr.rel (%p4633) target = $region52
      $region51: #{tpu_custom_call.1} parent=5 // pred_region
        %s4636 = ssub.s32 %s15, 2
        // Predicated region
        $region53: #{tpu_custom_call.1} parent=51 // pred_check
          %p4637 = pneg %p175
        $region54: #{tpu_custom_call.1} parent=51 // pred_check_branch
          %4639 = sbr.rel (%p4637) target = $region56
        $region55: #{tpu_custom_call.1} parent=51 // pred_region
          %s4640 = sand.u32 %s160, 1
          %s4641 = scalar_lea.sflag [#allocation3], %s4640
          %s4642 = sand.u32 %s160, 1
          %s4643 = smul.addr %s4642, 64
          %s4644 = scalar_lea.vmem [#allocation2], %s4643
          %4645 = dma.done %s4641, 1024
        $region56: #{tpu_custom_call.1} parent=51 // pred_fallthru
          _
      $region52: #{tpu_custom_call.1} parent=5 // pred_fallthru
        _
    $region6: #{tpu_custom_call.1} parent=1 // loop_footer
      %s19 = sadd.s32 1, %s15
    $region7: #{tpu_custom_call.1} parent=1 // loop_footer_branch
      %14 = sbr.rel target = $region3
    $region8: #{tpu_custom_call.1} parent=1 // loop_exit
      _
    %4646 = vsyncpa [#allocation3], 1
    %s4647 = scalar_lea.sflag [#allocation3], 1
    %4648 = vsyncpa %s4647, 1

</llo_original>
